<compile_context>
chip_gen: v7x
topology: tpu7x:2x2x1
jax: 0.10.0
libtpu: 0.0.40
codegen_flags: <defaults>
</compile_context>

<pallas_src>
import math

import jax
import jax.numpy as jnp
from jax.experimental import pallas as pl
from jax.experimental.pallas import tpu as pltpu

LANES = 128


# ---------------------------------------------------------------------------
# Small helpers (padding / tiling)
# ---------------------------------------------------------------------------
def _round_up(x, m):
    return (x + m - 1) // m * m


def _pad2(a, rows, cols):
    r, c = a.shape
    return jnp.pad(a, ((0, rows - r), (0, cols - c)))


def _m_tiles(m, tm):
    """Pick (padded_m, tile_m, num_tiles) for an M dimension."""
    if m <= tm:
        mp = _round_up(m, 8)
        return mp, mp, 1
    mp = _round_up(m, tm)
    return mp, tm, mp // tm


# ---------------------------------------------------------------------------
# Pallas kernels
# ---------------------------------------------------------------------------
def _conv_relu_pool_kernel(cols_ref, w_ref, b_ref, o_ref):
    """Fused conv-GEMM + bias + ReLU + 2x2 maxpool.

    cols_ref: (4, TM, Kp)  -- the 4 pooling-window corners of the im2col matrix
    w_ref:    (Kp, 128)    -- zero-padded (kh*kw*Cin, Cout) weights
    b_ref:    (1, 128)     -- zero-padded bias
    o_ref:    (TM, 128)    -- pooled, ReLU'd output (lane-dense)
    """
    w = w_ref[...]
    acc = jnp.dot(cols_ref[0], w, preferred_element_type=jnp.float32)
    for i in range(1, 4):
        acc = jnp.maximum(
            acc, jnp.dot(cols_ref[i], w, preferred_element_type=jnp.float32)
        )
    # max_d(dot_d + b) == max_d(dot_d) + b, and ReLU commutes with max-pool.
    acc = acc + b_ref[...]
    o_ref[...] = jnp.maximum(acc, 0.0).astype(o_ref.dtype)


def _fc_head_kernel(x_ref, w1_ref, b1_ref, w2_ref, b2_ref, w3_ref, b3_ref, o_ref):
    """fc1+relu -> fc2+relu -> fc3, all in one kernel (weights resident in VMEM)."""
    h = jnp.dot(x_ref[...], w1_ref[...], preferred_element_type=jnp.float32)
    h = jnp.maximum(h + b1_ref[...], 0.0)
    h = jnp.dot(h, w2_ref[...], preferred_element_type=jnp.float32)
    h = jnp.maximum(h + b2_ref[...], 0.0)
    out = jnp.dot(h, w3_ref[...], preferred_element_type=jnp.float32) + b3_ref[...]
    o_ref[...] = out.astype(o_ref.dtype)


# ---------------------------------------------------------------------------
# Glue: im2col grouped by 2x2 pooling-window corner (indexing/reshapes only)
# ---------------------------------------------------------------------------
def im2col_pool_corners(x, k):
    """x: (N,H,W,C) -> (4, N*Hp*Wp, k*k*C) where Hp,Wp are the pooled dims.

    Corner d of the leading axis holds the im2col rows of the conv-output
    positions (2y+dy, 2x+dx); K ordering is [kh, kw, Cin] (matches the weight
    reshape in prepare_params).
    """
    n, h, w, c = x.shape
    ho, wo = h - k + 1, w - k + 1
    hp, wp = ho // 2, wo // 2
    patches = [x[:, i:i + ho, j:j + wo, :] for i in range(k) for j in range(k)]
    p = jnp.stack(patches, axis=3).reshape(n, ho, wo, k * k * c)
    corners = [
        p[:, dy:2 * hp:2, dx:2 * wp:2, :].reshape(n * hp * wp, k * k * c)
        for dy in (0, 1) for dx in (0, 1)
    ]
    return jnp.stack(corners, axis=0), (n, hp, wp)


# ---------------------------------------------------------------------------
# Wrappers around the Pallas kernels
# ---------------------------------------------------------------------------
def conv_relu_pool(x, w_pad, b_pad, *, k, c_out, tm=256):
    """Fused valid conv(kxk) + ReLU + 2x2/2 maxpool. x: (N,H,W,C) float32."""
    cols, (n, hp, wp) = im2col_pool_corners(x, k)          # (4, M, Kc)
    m, kc = cols.shape[1], cols.shape[2]
    kp = w_pad.shape[0]
    mp, tmb, ntiles = _m_tiles(m, tm)
    cols = jnp.pad(cols, ((0, 0), (0, mp - m), (0, kp - kc)))
    out = pl.pallas_call(
        _conv_relu_pool_kernel,
        out_shape=jax.ShapeDtypeStruct((mp, LANES), jnp.float32),
        grid=(ntiles,),
        in_specs=[
            pl.BlockSpec((4, tmb, kp), lambda i: (0, i, 0)),
            pl.BlockSpec((kp, LANES), lambda i: (0, 0)),
            pl.BlockSpec((1, LANES), lambda i: (0, 0)),
        ],
        out_specs=pl.BlockSpec((tmb, LANES), lambda i: (i, 0)),
        compiler_params=pltpu.CompilerParams(dimension_semantics=("parallel",)),
    )(cols, w_pad, b_pad)
    return out[:m, :c_out].reshape(n, hp, wp, c_out)


def fc_head(flat, p, *, tm=256):
    """Fused fc1(relu) -> fc2(relu) -> fc3. flat: (N, 400) float32 -> (N, 10)."""
    n, kin = flat.shape
    kp = p["fc1_w"].shape[0]                                # 512
    mp, tmb, ntiles = _m_tiles(n, tm)
    x = jnp.pad(flat, ((0, mp - n), (0, kp - kin)))
    const = lambda i: (0, 0)  # noqa: E731
    out = pl.pallas_call(
        _fc_head_kernel,
        out_shape=jax.ShapeDtypeStruct((mp, LANES), jnp.float32),
        grid=(ntiles,),
        in_specs=[
            pl.BlockSpec((tmb, kp), lambda i: (i, 0)),
            pl.BlockSpec((kp, LANES), const),
            pl.BlockSpec((1, LANES), const),
            pl.BlockSpec((LANES, LANES), const),
            pl.BlockSpec((1, LANES), const),
            pl.BlockSpec((LANES, LANES), const),
            pl.BlockSpec((1, LANES), const),
        ],
        out_specs=pl.BlockSpec((tmb, LANES), lambda i: (i, 0)),
        compiler_params=pltpu.CompilerParams(dimension_semantics=("parallel",)),
    )(x, p["fc1_w"], p["fc1_b"], p["fc2_w"], p["fc2_b"], p["fc3_w"], p["fc3_b"])
    return out[:n, :10]


# ---------------------------------------------------------------------------
# Parameters (deterministic, PyTorch-default-style uniform init)
# ---------------------------------------------------------------------------
def init_params(key):
    def u(k, shape, fan_in):
        bound = 1.0 / math.sqrt(fan_in)
        return jax.random.uniform(k, shape, jnp.float32, -bound, bound)

    ks = jax.random.split(key, 10)
    return {
        "conv1_w": u(ks[0], (6, 3, 5, 5), 3 * 5 * 5),    # (Cout,Cin,kh,kw)
        "conv1_b": u(ks[1], (6,), 3 * 5 * 5),
        "conv2_w": u(ks[2], (16, 6, 5, 5), 6 * 5 * 5),
        "conv2_b": u(ks[3], (16,), 6 * 5 * 5),
        "fc1_w": u(ks[4], (120, 400), 400),              # (out,in) like torch
        "fc1_b": u(ks[5], (120,), 400),
        "fc2_w": u(ks[6], (84, 120), 120),
        "fc2_b": u(ks[7], (84,), 120),
        "fc3_w": u(ks[8], (10, 84), 84),
        "fc3_b": u(ks[9], (10,), 84),
    }


def prepare_params(params):
    """One-time weight preprocessing: transpose to GEMM layout and zero-pad to
    lane-dense shapes (K -> mult of 128, N -> 128). Done once, outside the
    jitted forward, so the transposes never re-execute on the critical path."""
    w1 = jnp.transpose(params["conv1_w"], (2, 3, 1, 0)).reshape(75, 6)
    w2 = jnp.transpose(params["conv2_w"], (2, 3, 1, 0)).reshape(150, 16)
    return {
        "c1_w": _pad2(w1, 128, LANES),
        "c1_b": _pad2(params["conv1_b"].reshape(1, 6), 1, LANES),
        "c2_w": _pad2(w2, 256, LANES),
        "c2_b": _pad2(params["conv2_b"].reshape(1, 16), 1, LANES),
        "fc1_w": _pad2(params["fc1_w"].T, 512, LANES),
        "fc1_b": _pad2(params["fc1_b"].reshape(1, -1), 1, LANES),
        "fc2_w": _pad2(params["fc2_w"].T, LANES, LANES),
        "fc2_b": _pad2(params["fc2_b"].reshape(1, -1), 1, LANES),
        "fc3_w": _pad2(params["fc3_w"].T, LANES, LANES),
        "fc3_b": _pad2(params["fc3_b"].reshape(1, -1), 1, LANES),
    }


# ---------------------------------------------------------------------------
# Forward pass (matches Net.forward)
# ---------------------------------------------------------------------------
def net_forward(prepped, x_nchw):
    x = jnp.transpose(x_nchw, (0, 2, 3, 1)).astype(jnp.float32)    # NCHW -> NHWC

    # conv1 (5x5, 3->6) + relu + 2x2 maxpool, one fused Pallas call
    h1 = conv_relu_pool(x, prepped["c1_w"], prepped["c1_b"], k=5, c_out=6)   # (N,14,14,6)
    # conv2 (5x5, 6->16) + relu + 2x2 maxpool, one fused Pallas call
    h2 = conv_relu_pool(h1, prepped["c2_w"], prepped["c2_b"], k=5, c_out=16)  # (N,5,5,16)

    # flatten exactly like torch's x.view(-1, 16*5*5) on NCHW tensors
    n = h2.shape[0]
    flat = jnp.transpose(h2, (0, 3, 1, 2)).reshape(n, 16 * 5 * 5)             # (N,400)

    # fc1+relu, fc2+relu, fc3 in one fused Pallas call
    return fc_head(flat, prepped)                                             # (N,10)


if __name__ == "__main__":
    key = jax.random.PRNGKey(0)
    pkey, xkey = jax.random.split(key)
    params = init_params(pkey)
    prepped = prepare_params(params)     # one-time weight layout/padding prep

    # Net requires 32x32 spatial input (16*5*5 flatten); batch=2, channels=3.
    x = jax.random.normal(xkey, (2, 3, 32, 32), jnp.float32)

    out = jax.jit(net_forward)(prepped, x)
    out = jax.block_until_ready(out)
    assert out.shape == (2, 10) and out.dtype == jnp.float32
    print("KERNEL_OK")
</pallas_src>

<mosaic_0001>
module attributes {stable_mosaic.version = 11 : i64} {
  func.func @_conv_relu_pool_kernel(%arg0: i32, %arg1: memref<4x256x128xf32, #tpu.memory_space<vmem>>, %arg2: memref<128x128xf32, #tpu.memory_space<vmem>>, %arg3: memref<1x128xf32, #tpu.memory_space<vmem>>, %arg4: memref<256x128xf32, #tpu.memory_space<vmem>>) attributes {dimension_semantics = [#tpu.dimension_semantics<parallel>], iteration_bounds = array<i64: 2>, scalar_prefetch = 0 : i64, scratch_operands = 0 : i64, tpu.core_type = #tpu.core_type<tc>, window_params = [{transform_indices = @transform_0, window_bounds = array<i64: 4, 256, 128>}, {pipeline_mode = #tpu.pipeline_mode<synchronous>, transform_indices = @transform_1, window_bounds = array<i64: 128, 128>}, {pipeline_mode = #tpu.pipeline_mode<synchronous>, transform_indices = @transform_2, window_bounds = array<i64: 1, 128>}, {transform_indices = @transform_3, window_bounds = array<i64: 256, 128>}]} {
    %c0 = arith.constant 0 : index
    %c0_0 = arith.constant 0 : index
    %0 = vector.load %arg2[%c0, %c0_0] : memref<128x128xf32, #tpu.memory_space<vmem>>, vector<128x128xf32>
    %c0_1 = arith.constant 0 : index
    %c0_2 = arith.constant 0 : index
    %c0_3 = arith.constant 0 : index
    %1 = vector.load %arg1[%c0_1, %c0_2, %c0_3] : memref<4x256x128xf32, #tpu.memory_space<vmem>>, vector<1x256x128xf32>
    %2 = vector.shape_cast %1 : vector<1x256x128xf32> to vector<256x128xf32>
    %cst = arith.constant dense<0.000000e+00> : vector<256x128xf32>
    %3 = tpu.matmul %2, %0, %cst {dimension_numbers = #tpu.dot_dimension_numbers<[1], [0], [0], [1], [0, 0, 1, 1], [], []>} : vector<256x128xf32>, vector<128x128xf32>, vector<256x128xf32> -> vector<256x128xf32>
    %c1 = arith.constant 1 : index
    %c0_4 = arith.constant 0 : index
    %c0_5 = arith.constant 0 : index
    %4 = vector.load %arg1[%c1, %c0_4, %c0_5] : memref<4x256x128xf32, #tpu.memory_space<vmem>>, vector<1x256x128xf32>
    %5 = vector.shape_cast %4 : vector<1x256x128xf32> to vector<256x128xf32>
    %cst_6 = arith.constant dense<0.000000e+00> : vector<256x128xf32>
    %6 = tpu.matmul %5, %0, %cst_6 {dimension_numbers = #tpu.dot_dimension_numbers<[1], [0], [0], [1], [0, 0, 1, 1], [], []>} : vector<256x128xf32>, vector<128x128xf32>, vector<256x128xf32> -> vector<256x128xf32>
    %7 = arith.maximumf %3, %6 : vector<256x128xf32>
    %c2 = arith.constant 2 : index
    %c0_7 = arith.constant 0 : index
    %c0_8 = arith.constant 0 : index
    %8 = vector.load %arg1[%c2, %c0_7, %c0_8] : memref<4x256x128xf32, #tpu.memory_space<vmem>>, vector<1x256x128xf32>
    %9 = vector.shape_cast %8 : vector<1x256x128xf32> to vector<256x128xf32>
    %cst_9 = arith.constant dense<0.000000e+00> : vector<256x128xf32>
    %10 = tpu.matmul %9, %0, %cst_9 {dimension_numbers = #tpu.dot_dimension_numbers<[1], [0], [0], [1], [0, 0, 1, 1], [], []>} : vector<256x128xf32>, vector<128x128xf32>, vector<256x128xf32> -> vector<256x128xf32>
    %11 = arith.maximumf %7, %10 : vector<256x128xf32>
    %c3 = arith.constant 3 : index
    %c0_10 = arith.constant 0 : index
    %c0_11 = arith.constant 0 : index
    %12 = vector.load %arg1[%c3, %c0_10, %c0_11] : memref<4x256x128xf32, #tpu.memory_space<vmem>>, vector<1x256x128xf32>
    %13 = vector.shape_cast %12 : vector<1x256x128xf32> to vector<256x128xf32>
    %cst_12 = arith.constant dense<0.000000e+00> : vector<256x128xf32>
    %14 = tpu.matmul %13, %0, %cst_12 {dimension_numbers = #tpu.dot_dimension_numbers<[1], [0], [0], [1], [0, 0, 1, 1], [], []>} : vector<256x128xf32>, vector<128x128xf32>, vector<256x128xf32> -> vector<256x128xf32>
    %15 = arith.maximumf %11, %14 : vector<256x128xf32>
    %c0_13 = arith.constant 0 : index
    %c0_14 = arith.constant 0 : index
    %16 = vector.load %arg3[%c0_13, %c0_14] : memref<1x128xf32, #tpu.memory_space<vmem>>, vector<1x128xf32>
    %17 = vector.broadcast %16 : vector<1x128xf32> to vector<256x128xf32>
    %18 = arith.addf %15, %17 : vector<256x128xf32>
    %cst_15 = arith.constant 0.000000e+00 : f32
    %19 = vector.broadcast %cst_15 : f32 to vector<256x128xf32>
    %20 = arith.maximumf %18, %19 : vector<256x128xf32>
    %c0_16 = arith.constant 0 : index
    %c0_17 = arith.constant 0 : index
    %21 = vector.load %arg4[%c0_16, %c0_17] : memref<256x128xf32, #tpu.memory_space<vmem>>, vector<256x128xf32>
    tpu.vector_store %arg4[%c0_16, %c0_17], %20 {strides = array<i32>} : memref<256x128xf32, #tpu.memory_space<vmem>>, vector<256x128xf32>,
    return
  }
  func.func @transform_0(%arg0: i32) -> (i32, i32, i32) {
    %c0_i32 = arith.constant 0 : i32
    %c0_i32_0 = arith.constant 0 : i32
    %c0_i32_1 = arith.constant 0 : i32
    return %c0_i32, %arg0, %c0_i32_0 : i32, i32, i32
  }
  func.func @transform_1(%arg0: i32) -> (i32, i32) {
    %c0_i32 = arith.constant 0 : i32
    %c0_i32_0 = arith.constant 0 : i32
    %c0_i32_1 = arith.constant 0 : i32
    return %c0_i32, %c0_i32_0 : i32, i32
  }
  func.func @transform_2(%arg0: i32) -> (i32, i32) {
    %c0_i32 = arith.constant 0 : i32
    %c0_i32_0 = arith.constant 0 : i32
    %c0_i32_1 = arith.constant 0 : i32
    return %c0_i32, %c0_i32_0 : i32, i32
  }
  func.func @transform_3(%arg0: i32) -> (i32, i32) {
    %c0_i32 = arith.constant 0 : i32
    %c0_i32_0 = arith.constant 0 : i32
    return %arg0, %c0_i32 : i32, i32
  }
}

module attributes {stable_mosaic.version = 11 : i64} {
  func.func @_conv_relu_pool_kernel(%arg0: i32, %arg1: memref<4x56x256xf32, #tpu.memory_space<vmem>>, %arg2: memref<256x128xf32, #tpu.memory_space<vmem>>, %arg3: memref<1x128xf32, #tpu.memory_space<vmem>>, %arg4: memref<56x128xf32, #tpu.memory_space<vmem>>) attributes {dimension_semantics = [#tpu.dimension_semantics<parallel>], iteration_bounds = array<i64: 1>, scalar_prefetch = 0 : i64, scratch_operands = 0 : i64, tpu.core_type = #tpu.core_type<tc>, window_params = [{transform_indices = @transform_0, window_bounds = array<i64: 4, 56, 256>}, {pipeline_mode = #tpu.pipeline_mode<synchronous>, transform_indices = @transform_1, window_bounds = array<i64: 256, 128>}, {pipeline_mode = #tpu.pipeline_mode<synchronous>, transform_indices = @transform_2, window_bounds = array<i64: 1, 128>}, {transform_indices = @transform_3, window_bounds = array<i64: 56, 128>}]} {
    %c0 = arith.constant 0 : index
    %c0_0 = arith.constant 0 : index
    %0 = vector.load %arg2[%c0, %c0_0] : memref<256x128xf32, #tpu.memory_space<vmem>>, vector<256x128xf32>
    %c0_1 = arith.constant 0 : index
    %c0_2 = arith.constant 0 : index
    %c0_3 = arith.constant 0 : index
    %1 = vector.load %arg1[%c0_1, %c0_2, %c0_3] : memref<4x56x256xf32, #tpu.memory_space<vmem>>, vector<1x56x256xf32>
    %2 = vector.shape_cast %1 : vector<1x56x256xf32> to vector<56x256xf32>
    %cst = arith.constant dense<0.000000e+00> : vector<56x128xf32>
    %3 = tpu.matmul %2, %0, %cst {dimension_numbers = #tpu.dot_dimension_numbers<[1], [0], [0], [1], [0, 0, 1, 1], [], []>} : vector<56x256xf32>, vector<256x128xf32>, vector<56x128xf32> -> vector<56x128xf32>
    %c1 = arith.constant 1 : index
    %c0_4 = arith.constant 0 : index
    %c0_5 = arith.constant 0 : index
    %4 = vector.load %arg1[%c1, %c0_4, %c0_5] : memref<4x56x256xf32, #tpu.memory_space<vmem>>, vector<1x56x256xf32>
    %5 = vector.shape_cast %4 : vector<1x56x256xf32> to vector<56x256xf32>
    %cst_6 = arith.constant dense<0.000000e+00> : vector<56x128xf32>
    %6 = tpu.matmul %5, %0, %cst_6 {dimension_numbers = #tpu.dot_dimension_numbers<[1], [0], [0], [1], [0, 0, 1, 1], [], []>} : vector<56x256xf32>, vector<256x128xf32>, vector<56x128xf32> -> vector<56x128xf32>
    %7 = arith.maximumf %3, %6 : vector<56x128xf32>
    %c2 = arith.constant 2 : index
    %c0_7 = arith.constant 0 : index
    %c0_8 = arith.constant 0 : index
    %8 = vector.load %arg1[%c2, %c0_7, %c0_8] : memref<4x56x256xf32, #tpu.memory_space<vmem>>, vector<1x56x256xf32>
    %9 = vector.shape_cast %8 : vector<1x56x256xf32> to vector<56x256xf32>
    %cst_9 = arith.constant dense<0.000000e+00> : vector<56x128xf32>
    %10 = tpu.matmul %9, %0, %cst_9 {dimension_numbers = #tpu.dot_dimension_numbers<[1], [0], [0], [1], [0, 0, 1, 1], [], []>} : vector<56x256xf32>, vector<256x128xf32>, vector<56x128xf32> -> vector<56x128xf32>
    %11 = arith.maximumf %7, %10 : vector<56x128xf32>
    %c3 = arith.constant 3 : index
    %c0_10 = arith.constant 0 : index
    %c0_11 = arith.constant 0 : index
    %12 = vector.load %arg1[%c3, %c0_10, %c0_11] : memref<4x56x256xf32, #tpu.memory_space<vmem>>, vector<1x56x256xf32>
    %13 = vector.shape_cast %12 : vector<1x56x256xf32> to vector<56x256xf32>
    %cst_12 = arith.constant dense<0.000000e+00> : vector<56x128xf32>
    %14 = tpu.matmul %13, %0, %cst_12 {dimension_numbers = #tpu.dot_dimension_numbers<[1], [0], [0], [1], [0, 0, 1, 1], [], []>} : vector<56x256xf32>, vector<256x128xf32>, vector<56x128xf32> -> vector<56x128xf32>
    %15 = arith.maximumf %11, %14 : vector<56x128xf32>
    %c0_13 = arith.constant 0 : index
    %c0_14 = arith.constant 0 : index
    %16 = vector.load %arg3[%c0_13, %c0_14] : memref<1x128xf32, #tpu.memory_space<vmem>>, vector<1x128xf32>
    %17 = vector.broadcast %16 : vector<1x128xf32> to vector<56x128xf32>
    %18 = arith.addf %15, %17 : vector<56x128xf32>
    %cst_15 = arith.constant 0.000000e+00 : f32
    %19 = vector.broadcast %cst_15 : f32 to vector<56x128xf32>
    %20 = arith.maximumf %18, %19 : vector<56x128xf32>
    %c0_16 = arith.constant 0 : index
    %c0_17 = arith.constant 0 : index
    %21 = vector.load %arg4[%c0_16, %c0_17] : memref<56x128xf32, #tpu.memory_space<vmem>>, vector<56x128xf32>
    tpu.vector_store %arg4[%c0_16, %c0_17], %20 {strides = array<i32>} : memref<56x128xf32, #tpu.memory_space<vmem>>, vector<56x128xf32>,
    return
  }
  func.func @transform_0(%arg0: i32) -> (i32, i32, i32) {
    %c0_i32 = arith.constant 0 : i32
    %c0_i32_0 = arith.constant 0 : i32
    %c0_i32_1 = arith.constant 0 : i32
    return %c0_i32, %arg0, %c0_i32_0 : i32, i32, i32
  }
  func.func @transform_1(%arg0: i32) -> (i32, i32) {
    %c0_i32 = arith.constant 0 : i32
    %c0_i32_0 = arith.constant 0 : i32
    %c0_i32_1 = arith.constant 0 : i32
    return %c0_i32, %c0_i32_0 : i32, i32
  }
  func.func @transform_2(%arg0: i32) -> (i32, i32) {
    %c0_i32 = arith.constant 0 : i32
    %c0_i32_0 = arith.constant 0 : i32
    %c0_i32_1 = arith.constant 0 : i32
    return %c0_i32, %c0_i32_0 : i32, i32
  }
  func.func @transform_3(%arg0: i32) -> (i32, i32) {
    %c0_i32 = arith.constant 0 : i32
    %c0_i32_0 = arith.constant 0 : i32
    return %arg0, %c0_i32 : i32, i32
  }
}

module attributes {stable_mosaic.version = 11 : i64} {
  func.func @_fc_head_kernel(%arg0: i32, %arg1: memref<8x512xf32, #tpu.memory_space<vmem>>, %arg2: memref<512x128xf32, #tpu.memory_space<vmem>>, %arg3: memref<1x128xf32, #tpu.memory_space<vmem>>, %arg4: memref<128x128xf32, #tpu.memory_space<vmem>>, %arg5: memref<1x128xf32, #tpu.memory_space<vmem>>, %arg6: memref<128x128xf32, #tpu.memory_space<vmem>>, %arg7: memref<1x128xf32, #tpu.memory_space<vmem>>, %arg8: memref<8x128xf32, #tpu.memory_space<vmem>>) attributes {dimension_semantics = [#tpu.dimension_semantics<parallel>], iteration_bounds = array<i64: 1>, scalar_prefetch = 0 : i64, scratch_operands = 0 : i64, tpu.core_type = #tpu.core_type<tc>, window_params = [{transform_indices = @transform_0, window_bounds = array<i64: 8, 512>}, {pipeline_mode = #tpu.pipeline_mode<synchronous>, transform_indices = @transform_1, window_bounds = array<i64: 512, 128>}, {pipeline_mode = #tpu.pipeline_mode<synchronous>, transform_indices = @transform_2, window_bounds = array<i64: 1, 128>}, {pipeline_mode = #tpu.pipeline_mode<synchronous>, transform_indices = @transform_3, window_bounds = array<i64: 128, 128>}, {pipeline_mode = #tpu.pipeline_mode<synchronous>, transform_indices = @transform_4, window_bounds = array<i64: 1, 128>}, {pipeline_mode = #tpu.pipeline_mode<synchronous>, transform_indices = @transform_5, window_bounds = array<i64: 128, 128>}, {pipeline_mode = #tpu.pipeline_mode<synchronous>, transform_indices = @transform_6, window_bounds = array<i64: 1, 128>}, {transform_indices = @transform_7, window_bounds = array<i64: 8, 128>}]} {
    %c0 = arith.constant 0 : index
    %c0_0 = arith.constant 0 : index
    %0 = vector.load %arg1[%c0, %c0_0] : memref<8x512xf32, #tpu.memory_space<vmem>>, vector<8x512xf32>
    %c0_1 = arith.constant 0 : index
    %c0_2 = arith.constant 0 : index
    %1 = vector.load %arg2[%c0_1, %c0_2] : memref<512x128xf32, #tpu.memory_space<vmem>>, vector<512x128xf32>
    %cst = arith.constant dense<0.000000e+00> : vector<8x128xf32>
    %2 = tpu.matmul %0, %1, %cst {dimension_numbers = #tpu.dot_dimension_numbers<[1], [0], [0], [1], [0, 0, 1, 1], [], []>} : vector<8x512xf32>, vector<512x128xf32>, vector<8x128xf32> -> vector<8x128xf32>
    %c0_3 = arith.constant 0 : index
    %c0_4 = arith.constant 0 : index
    %3 = vector.load %arg3[%c0_3, %c0_4] : memref<1x128xf32, #tpu.memory_space<vmem>>, vector<1x128xf32>
    %4 = vector.broadcast %3 : vector<1x128xf32> to vector<8x128xf32>
    %5 = arith.addf %2, %4 : vector<8x128xf32>
    %cst_5 = arith.constant 0.000000e+00 : f32
    %6 = vector.broadcast %cst_5 : f32 to vector<8x128xf32>
    %7 = arith.maximumf %5, %6 : vector<8x128xf32>
    %c0_6 = arith.constant 0 : index
    %c0_7 = arith.constant 0 : index
    %8 = vector.load %arg4[%c0_6, %c0_7] : memref<128x128xf32, #tpu.memory_space<vmem>>, vector<128x128xf32>
    %cst_8 = arith.constant dense<0.000000e+00> : vector<8x128xf32>
    %9 = tpu.matmul %7, %8, %cst_8 {dimension_numbers = #tpu.dot_dimension_numbers<[1], [0], [0], [1], [0, 0, 1, 1], [], []>} : vector<8x128xf32>, vector<128x128xf32>, vector<8x128xf32> -> vector<8x128xf32>
    %c0_9 = arith.constant 0 : index
    %c0_10 = arith.constant 0 : index
    %10 = vector.load %arg5[%c0_9, %c0_10] : memref<1x128xf32, #tpu.memory_space<vmem>>, vector<1x128xf32>
    %11 = vector.broadcast %10 : vector<1x128xf32> to vector<8x128xf32>
    %12 = arith.addf %9, %11 : vector<8x128xf32>
    %cst_11 = arith.constant 0.000000e+00 : f32
    %13 = vector.broadcast %cst_11 : f32 to vector<8x128xf32>
    %14 = arith.maximumf %12, %13 : vector<8x128xf32>
    %c0_12 = arith.constant 0 : index
    %c0_13 = arith.constant 0 : index
    %15 = vector.load %arg6[%c0_12, %c0_13] : memref<128x128xf32, #tpu.memory_space<vmem>>, vector<128x128xf32>
    %cst_14 = arith.constant dense<0.000000e+00> : vector<8x128xf32>
    %16 = tpu.matmul %14, %15, %cst_14 {dimension_numbers = #tpu.dot_dimension_numbers<[1], [0], [0], [1], [0, 0, 1, 1], [], []>} : vector<8x128xf32>, vector<128x128xf32>, vector<8x128xf32> -> vector<8x128xf32>
    %c0_15 = arith.constant 0 : index
    %c0_16 = arith.constant 0 : index
    %17 = vector.load %arg7[%c0_15, %c0_16] : memref<1x128xf32, #tpu.memory_space<vmem>>, vector<1x128xf32>
    %18 = vector.broadcast %17 : vector<1x128xf32> to vector<8x128xf32>
    %19 = arith.addf %16, %18 : vector<8x128xf32>
    %c0_17 = arith.constant 0 : index
    %c0_18 = arith.constant 0 : index
    %20 = vector.load %arg8[%c0_17, %c0_18] : memref<8x128xf32, #tpu.memory_space<vmem>>, vector<8x128xf32>
    tpu.vector_store %arg8[%c0_17, %c0_18], %19 {strides = array<i32>} : memref<8x128xf32, #tpu.memory_space<vmem>>, vector<8x128xf32>,
    return
  }
  func.func @transform_0(%arg0: i32) -> (i32, i32) {
    %c0_i32 = arith.constant 0 : i32
    %c0_i32_0 = arith.constant 0 : i32
    return %arg0, %c0_i32 : i32, i32
  }
  func.func @transform_1(%arg0: i32) -> (i32, i32) {
    %c0_i32 = arith.constant 0 : i32
    %c0_i32_0 = arith.constant 0 : i32
    %c0_i32_1 = arith.constant 0 : i32
    return %c0_i32, %c0_i32_0 : i32, i32
  }
  func.func @transform_2(%arg0: i32) -> (i32, i32) {
    %c0_i32 = arith.constant 0 : i32
    %c0_i32_0 = arith.constant 0 : i32
    %c0_i32_1 = arith.constant 0 : i32
    return %c0_i32, %c0_i32_0 : i32, i32
  }
  func.func @transform_3(%arg0: i32) -> (i32, i32) {
    %c0_i32 = arith.constant 0 : i32
    %c0_i32_0 = arith.constant 0 : i32
    %c0_i32_1 = arith.constant 0 : i32
    return %c0_i32, %c0_i32_0 : i32, i32
  }
  func.func @transform_4(%arg0: i32) -> (i32, i32) {
    %c0_i32 = arith.constant 0 : i32
    %c0_i32_0 = arith.constant 0 : i32
    %c0_i32_1 = arith.constant 0 : i32
    return %c0_i32, %c0_i32_0 : i32, i32
  }
  func.func @transform_5(%arg0: i32) -> (i32, i32) {
    %c0_i32 = arith.constant 0 : i32
    %c0_i32_0 = arith.constant 0 : i32
    %c0_i32_1 = arith.constant 0 : i32
    return %c0_i32, %c0_i32_0 : i32, i32
  }
  func.func @transform_6(%arg0: i32) -> (i32, i32) {
    %c0_i32 = arith.constant 0 : i32
    %c0_i32_0 = arith.constant 0 : i32
    %c0_i32_1 = arith.constant 0 : i32
    return %c0_i32, %c0_i32_0 : i32, i32
  }
  func.func @transform_7(%arg0: i32) -> (i32, i32) {
    %c0_i32 = arith.constant 0 : i32
    %c0_i32_0 = arith.constant 0 : i32
    return %arg0, %c0_i32 : i32, i32
  }
}

</mosaic_0001>

<llo_original>
// kernel: net_forward.3
$region0: #{net_forward.3}
  #allocation0 [shape = 'u32[]', space=smem, size = 0x4, offset = 0x4, fixed_abs, tag = 'smem constant byte address 0x4 - core index']
  #allocation1 [shape = 'u32[144,128]{1,0:T(1,128)}', space=vmem, size = 0x12000, scoped, tag = 'internal scratch']
  %s0 = inlined_call_operand.vmem [shape: f32[4,512,128], index: 0, kind: input, shape index: {}]
  %s1 = inlined_call_operand.vmem [shape: f32[128,128], index: 1, kind: input, shape index: {}]
  %s2 = inlined_call_operand.vmem [shape: f32[1,128], index: 2, kind: input, shape index: {}]
  %s3 = inlined_call_operand.vmem [shape: f32[512,128], index: 3, kind: output, shape index: {}]
  %s4 = sld [smem:[#allocation0]]
  $region83: #{net_forward.3} parent=0
    _
  %s6 = ssub.s32 1, %s4
  %s7 = scalar_select 0, %s6, %s4
  $region1: #{net_forward.3} parent=0
    #allocation2 [shape = 'u8[1048576]{0}', space=vmem, size = 0x100000, scoped, tag = 'input window, operand 0']
    loop: start=0, step=1, limit=4
    $region2: #{net_forward.3} parent=1 // loop_pre_header
      _
    $region3: #{net_forward.3} parent=1 // loop_header
      %s9 = sphi 0, %s13
      %p10 = scmp.ge.s32.totalorder %s9, 4
      %s19 = sphi 0, %s21
      %s22 = sphi 0, %s19
      %s23 = sphi 0, %s22
      %s39 = sphi 0, %s23
      %s43 = sphi 0, %s43
      %s45 = sphi 0, %s43
      %s46 = sphi 0, %s45
      %s60 = sphi 0, %s46
      %s64 = sphi 0, %s64
      %s66 = sphi 0, %s64
      %s67 = sphi 0, %s66
      %s81 = sphi 0, %s67
      %s87 = sphi 0, %s89
      %s90 = sphi 0, %s87
      %s91 = sphi 0, %s90
      %s107 = sphi 0, %s91
    $region4: #{net_forward.3} parent=1 // loop_header_branch
      %12 = sbr.rel (%p10) target = $region8
    $region5: #{net_forward.3} parent=1 // loop_body
      %s14 = ssub.s32 %s9, 1
      %s15 = ssub.s32 %s9, 2
      %s16 = sadd.s32 %s9, 1
      %s17 = ssub.s32 %s9, %s16
      %p18 = scmp.eq.s32.totalorder %s17, 0
      %s20 = sadd.s32 %s19, 1
      %s21 = scalar_select %p18, %s19, %s20
      %p24 = pneg %p18
      %p25 = scmp.eq.s32.totalorder %s9, 1
      %p26 = por %p24, %p25
      %p27 = scmp.ne.s32.totalorder %s19, %s22
      %p28 = scmp.eq.s32.totalorder %s9, 0
      %p29 = por %p27, %p28
      %p30 = scmp.ne.s32.totalorder %s19, %s22
      %p31 = scmp.eq.s32.totalorder %s14, 1
      %p32 = por %p30, %p31
      %p33 = scmp.ne.s32.totalorder %s22, %s23
      %p34 = scmp.eq.s32.totalorder %s14, 0
      %p35 = por %p33, %p34
      %p36 = scmp.ne.s32.totalorder %s22, %s23
      %p37 = scmp.eq.s32.totalorder %s15, 1
      %p38 = por %p36, %p37
      %p40 = scmp.ne.s32.totalorder %s23, %s39
      %p41 = scmp.eq.s32.totalorder %s15, 0
      %p42 = por %p40, %p41
      %s44 = sadd.s32 %s43, 1
      %p47 = scmp.eq.s32.totalorder %s9, 1
      %p48 = scmp.ne.s32.totalorder %s43, %s45
      %p49 = scmp.eq.s32.totalorder %s9, 0
      %p50 = por %p48, %p49
      %p51 = scmp.ne.s32.totalorder %s43, %s45
      %p52 = scmp.eq.s32.totalorder %s14, 1
      %p53 = por %p51, %p52
      %p54 = scmp.ne.s32.totalorder %s45, %s46
      %p55 = scmp.eq.s32.totalorder %s14, 0
      %p56 = por %p54, %p55
      %p57 = scmp.ne.s32.totalorder %s45, %s46
      %p58 = scmp.eq.s32.totalorder %s15, 1
      %p59 = por %p57, %p58
      %p61 = scmp.ne.s32.totalorder %s46, %s60
      %p62 = scmp.eq.s32.totalorder %s15, 0
      %p63 = por %p61, %p62
      %s65 = sadd.s32 %s64, 1
      %p68 = scmp.eq.s32.totalorder %s9, 1
      %p69 = scmp.ne.s32.totalorder %s64, %s66
      %p70 = scmp.eq.s32.totalorder %s9, 0
      %p71 = por %p69, %p70
      %p72 = scmp.ne.s32.totalorder %s64, %s66
      %p73 = scmp.eq.s32.totalorder %s14, 1
      %p74 = por %p72, %p73
      %p75 = scmp.ne.s32.totalorder %s66, %s67
      %p76 = scmp.eq.s32.totalorder %s14, 0
      %p77 = por %p75, %p76
      %p78 = scmp.ne.s32.totalorder %s66, %s67
      %p79 = scmp.eq.s32.totalorder %s15, 1
      %p80 = por %p78, %p79
      %p82 = scmp.ne.s32.totalorder %s67, %s81
      %p83 = scmp.eq.s32.totalorder %s15, 0
      %p84 = por %p82, %p83
      %s85 = ssub.s32 %s9, %s16
      %p86 = scmp.eq.s32.totalorder %s85, 0
      %s88 = sadd.s32 %s87, 1
      %s89 = scalar_select %p86, %s87, %s88
      %p92 = pneg %p86
      %p93 = scmp.eq.s32.totalorder %s9, 1
      %p94 = por %p92, %p93
      %p95 = scmp.ne.s32.totalorder %s87, %s90
      %p96 = scmp.eq.s32.totalorder %s9, 0
      %p97 = por %p95, %p96
      %p98 = scmp.ne.s32.totalorder %s87, %s90
      %p99 = scmp.eq.s32.totalorder %s14, 1
      %p100 = por %p98, %p99
      %p101 = scmp.ne.s32.totalorder %s90, %s91
      %p102 = scmp.eq.s32.totalorder %s14, 0
      %p103 = por %p101, %p102
      %p104 = scmp.ne.s32.totalorder %s90, %s91
      %p105 = scmp.eq.s32.totalorder %s15, 1
      %p106 = por %p104, %p105
      %p108 = scmp.ne.s32.totalorder %s91, %s107
      %p109 = scmp.eq.s32.totalorder %s15, 0
      %p110 = por %p108, %p109
      %p111 = scmp.le.s32.totalorder 1, %s9
      %p112 = scmp.lt.s32.totalorder %s9, 3
      %p113 = pnand %p111, %p112
      %p114 = pneg %p113
      // Predicated region
      $region9: #{net_forward.3} parent=5 // pred_check
        _
      $region10: #{net_forward.3} parent=5 // pred_check_branch
        %116 = sbr.rel (%p113) target = $region12
      $region11: #{net_forward.3} parent=5 // pred_region
        %s117 = ssub.s32 %s9, 1
        // Predicated region
        $region13: #{net_forward.3} parent=11 // pred_check
          %p118 = pneg %p56
        $region14: #{net_forward.3} parent=11 // pred_check_branch
          %120 = sbr.rel (%p118) target = $region16
        $region15: #{net_forward.3} parent=11 // pred_region
          _
        $region16: #{net_forward.3} parent=11 // pred_fallthru
          _
        // Predicated region
        $region17: #{net_forward.3} parent=11 // pred_check
          %p121 = pneg %p77
        $region18: #{net_forward.3} parent=11 // pred_check_branch
          %123 = sbr.rel (%p121) target = $region20
        $region19: #{net_forward.3} parent=11 // pred_region
          _
        $region20: #{net_forward.3} parent=11 // pred_fallthru
          _
      $region12: #{net_forward.3} parent=5 // pred_fallthru
        _
      %p124 = scmp.lt.s32.totalorder %s9, 2
      // Predicated region
      $region21: #{net_forward.3} parent=5 // pred_check
        %p125 = pneg %p124
      $region22: #{net_forward.3} parent=5 // pred_check_branch
        %127 = sbr.rel (%p125) target = $region24
      $region23: #{net_forward.3} parent=5 // pred_region
        // Predicated region
        $region25: #{net_forward.3} parent=23 // pred_check
          %p128 = pneg %p29
        $region26: #{net_forward.3} parent=23 // pred_check_branch
          %130 = sbr.rel (%p128) target = $region28
        $region27: #{net_forward.3} parent=23 // pred_region
          %s131 = sand.u32 %s19, 1
          %s132 = sand.u32 %s19, 1
          %s133 = smul.addr %s132, 1024
          %s134 = scalar_lea.vmem [#allocation2], %s133
          %s135 = smul.u32 32, %s9
          %s136 = smul.addr %s135, 8
          %s137 = scalar_lea.vmem %s0, %s136
          // Predicated region
          $region29: #{net_forward.3} parent=27 // pred_check
            _
          $region30: #{net_forward.3} parent=27 // pred_check_branch
            %139 = sbr.rel (0) target = $region32
          $region31: #{net_forward.3} parent=27 // pred_region
            // Predicated region
            $region33: #{net_forward.3} parent=31 // pred_check
              _
            $region34: #{net_forward.3} parent=31 // pred_check_branch
              %141 = sbr.rel (0) target = $region36
            $region35: #{net_forward.3} parent=31 // pred_region
              // Predicated region
              $region48: #{net_forward.3} parent=35 // pred_check
                _
              $region49: #{net_forward.3} parent=35 // pred_check_branch
                %410 = sbr.rel (0) target = $region51
              $region50: #{net_forward.3} parent=35 // pred_region
                loop: start=0, step=1, limit=1
                $region52: #{net_forward.3} parent=50 // loop_pre_header
                  _
                $region53: #{net_forward.3} parent=50 // loop_header
                  %s412 = sphi 0, %s416
                  %p413 = scmp.ge.s32.totalorder %s412, 1
                  %s417 = sphi %s137, %s137
                  %s418 = sphi %s134, %s134
                $region54: #{net_forward.3} parent=50 // loop_header_branch
                  %415 = sbr.rel (%p413) target = $region58
                $region55: #{net_forward.3} parent=50 // loop_body
                  %v419 = vld [vmem:[%s417] sm:$0xff]
                  %420 = vst [vmem:[%s418] sm:$0xff] %v419
                  %v421 = vld [vmem:[%s417 + $0x8] sm:$0xff]
                  %422 = vst [vmem:[%s418 + $0x8] sm:$0xff] %v421
                  %v423 = vld [vmem:[%s417 + $0x10] sm:$0xff]
                  %424 = vst [vmem:[%s418 + $0x10] sm:$0xff] %v423
                  %v425 = vld [vmem:[%s417 + $0x18] sm:$0xff]
                  %426 = vst [vmem:[%s418 + $0x18] sm:$0xff] %v425
                  %v427 = vld [vmem:[%s417 + $0x20] sm:$0xff]
                  %428 = vst [vmem:[%s418 + $0x20] sm:$0xff] %v427
                  %v429 = vld [vmem:[%s417 + $0x28] sm:$0xff]
                  %430 = vst [vmem:[%s418 + $0x28] sm:$0xff] %v429
                  %v431 = vld [vmem:[%s417 + $0x30] sm:$0xff]
                  %432 = vst [vmem:[%s418 + $0x30] sm:$0xff] %v431
                  %v433 = vld [vmem:[%s417 + $0x38] sm:$0xff]
                  %434 = vst [vmem:[%s418 + $0x38] sm:$0xff] %v433
                  %v435 = vld [vmem:[%s417 + $0x40] sm:$0xff]
                  %436 = vst [vmem:[%s418 + $0x40] sm:$0xff] %v435
                  %v437 = vld [vmem:[%s417 + $0x48] sm:$0xff]
                  %438 = vst [vmem:[%s418 + $0x48] sm:$0xff] %v437
                  %v439 = vld [vmem:[%s417 + $0x50] sm:$0xff]
                  %440 = vst [vmem:[%s418 + $0x50] sm:$0xff] %v439
                  %v441 = vld [vmem:[%s417 + $0x58] sm:$0xff]
                  %442 = vst [vmem:[%s418 + $0x58] sm:$0xff] %v441
                  %v443 = vld [vmem:[%s417 + $0x60] sm:$0xff]
                  %444 = vst [vmem:[%s418 + $0x60] sm:$0xff] %v443
                  %v445 = vld [vmem:[%s417 + $0x68] sm:$0xff]
                  %446 = vst [vmem:[%s418 + $0x68] sm:$0xff] %v445
                  %v447 = vld [vmem:[%s417 + $0x70] sm:$0xff]
                  %448 = vst [vmem:[%s418 + $0x70] sm:$0xff] %v447
                  %v449 = vld [vmem:[%s417 + $0x78] sm:$0xff]
                  %450 = vst [vmem:[%s418 + $0x78] sm:$0xff] %v449
                  %v451 = vld [vmem:[%s417 + $0x80] sm:$0xff]
                  %452 = vst [vmem:[%s418 + $0x80] sm:$0xff] %v451
                  %v453 = vld [vmem:[%s417 + $0x88] sm:$0xff]
                  %454 = vst [vmem:[%s418 + $0x88] sm:$0xff] %v453
                  %v455 = vld [vmem:[%s417 + $0x90] sm:$0xff]
                  %456 = vst [vmem:[%s418 + $0x90] sm:$0xff] %v455
                  %v457 = vld [vmem:[%s417 + $0x98] sm:$0xff]
                  %458 = vst [vmem:[%s418 + $0x98] sm:$0xff] %v457
                  %v459 = vld [vmem:[%s417 + $0xa0] sm:$0xff]
                  %460 = vst [vmem:[%s418 + $0xa0] sm:$0xff] %v459
                  %v461 = vld [vmem:[%s417 + $0xa8] sm:$0xff]
                  %462 = vst [vmem:[%s418 + $0xa8] sm:$0xff] %v461
                  %v463 = vld [vmem:[%s417 + $0xb0] sm:$0xff]
                  %464 = vst [vmem:[%s418 + $0xb0] sm:$0xff] %v463
                  %v465 = vld [vmem:[%s417 + $0xb8] sm:$0xff]
                  %466 = vst [vmem:[%s418 + $0xb8] sm:$0xff] %v465
                  %v467 = vld [vmem:[%s417 + $0xc0] sm:$0xff]
                  %468 = vst [vmem:[%s418 + $0xc0] sm:$0xff] %v467
                  %v469 = vld [vmem:[%s417 + $0xc8] sm:$0xff]
                  %470 = vst [vmem:[%s418 + $0xc8] sm:$0xff] %v469
                  %v471 = vld [vmem:[%s417 + $0xd0] sm:$0xff]
                  %472 = vst [vmem:[%s418 + $0xd0] sm:$0xff] %v471
                  %v473 = vld [vmem:[%s417 + $0xd8] sm:$0xff]
                  %474 = vst [vmem:[%s418 + $0xd8] sm:$0xff] %v473
                  %v475 = vld [vmem:[%s417 + $0xe0] sm:$0xff]
                  %476 = vst [vmem:[%s418 + $0xe0] sm:$0xff] %v475
                  %v477 = vld [vmem:[%s417 + $0xe8] sm:$0xff]
                  %478 = vst [vmem:[%s418 + $0xe8] sm:$0xff] %v477
                  %v479 = vld [vmem:[%s417 + $0xf0] sm:$0xff]
                  %480 = vst [vmem:[%s418 + $0xf0] sm:$0xff] %v479
                  %v481 = vld [vmem:[%s417 + $0xf8] sm:$0xff]
                  %482 = vst [vmem:[%s418 + $0xf8] sm:$0xff] %v481
                  %v483 = vld [vmem:[%s417 + $0x200] sm:$0xff]
                  %484 = vst [vmem:[%s418 + $0x100] sm:$0xff] %v483
                  %v485 = vld [vmem:[%s417 + $0x208] sm:$0xff]
                  %486 = vst [vmem:[%s418 + $0x108] sm:$0xff] %v485
                  %v487 = vld [vmem:[%s417 + $0x210] sm:$0xff]
                  %488 = vst [vmem:[%s418 + $0x110] sm:$0xff] %v487
                  %v489 = vld [vmem:[%s417 + $0x218] sm:$0xff]
                  %490 = vst [vmem:[%s418 + $0x118] sm:$0xff] %v489
                  %v491 = vld [vmem:[%s417 + $0x220] sm:$0xff]
                  %492 = vst [vmem:[%s418 + $0x120] sm:$0xff] %v491
                  %v493 = vld [vmem:[%s417 + $0x228] sm:$0xff]
                  %494 = vst [vmem:[%s418 + $0x128] sm:$0xff] %v493
                  %v495 = vld [vmem:[%s417 + $0x230] sm:$0xff]
                  %496 = vst [vmem:[%s418 + $0x130] sm:$0xff] %v495
                  %v497 = vld [vmem:[%s417 + $0x238] sm:$0xff]
                  %498 = vst [vmem:[%s418 + $0x138] sm:$0xff] %v497
                  %v499 = vld [vmem:[%s417 + $0x240] sm:$0xff]
                  %500 = vst [vmem:[%s418 + $0x140] sm:$0xff] %v499
                  %v501 = vld [vmem:[%s417 + $0x248] sm:$0xff]
                  %502 = vst [vmem:[%s418 + $0x148] sm:$0xff] %v501
                  %v503 = vld [vmem:[%s417 + $0x250] sm:$0xff]
                  %504 = vst [vmem:[%s418 + $0x150] sm:$0xff] %v503
                  %v505 = vld [vmem:[%s417 + $0x258] sm:$0xff]
                  %506 = vst [vmem:[%s418 + $0x158] sm:$0xff] %v505
                  %v507 = vld [vmem:[%s417 + $0x260] sm:$0xff]
                  %508 = vst [vmem:[%s418 + $0x160] sm:$0xff] %v507
                  %v509 = vld [vmem:[%s417 + $0x268] sm:$0xff]
                  %510 = vst [vmem:[%s418 + $0x168] sm:$0xff] %v509
                  %v511 = vld [vmem:[%s417 + $0x270] sm:$0xff]
                  %512 = vst [vmem:[%s418 + $0x170] sm:$0xff] %v511
                  %v513 = vld [vmem:[%s417 + $0x278] sm:$0xff]
                  %514 = vst [vmem:[%s418 + $0x178] sm:$0xff] %v513
                  %v515 = vld [vmem:[%s417 + $0x280] sm:$0xff]
                  %516 = vst [vmem:[%s418 + $0x180] sm:$0xff] %v515
                  %v517 = vld [vmem:[%s417 + $0x288] sm:$0xff]
                  %518 = vst [vmem:[%s418 + $0x188] sm:$0xff] %v517
                  %v519 = vld [vmem:[%s417 + $0x290] sm:$0xff]
                  %520 = vst [vmem:[%s418 + $0x190] sm:$0xff] %v519
                  %v521 = vld [vmem:[%s417 + $0x298] sm:$0xff]
                  %522 = vst [vmem:[%s418 + $0x198] sm:$0xff] %v521
                  %v523 = vld [vmem:[%s417 + $0x2a0] sm:$0xff]
                  %524 = vst [vmem:[%s418 + $0x1a0] sm:$0xff] %v523
                  %v525 = vld [vmem:[%s417 + $0x2a8] sm:$0xff]
                  %526 = vst [vmem:[%s418 + $0x1a8] sm:$0xff] %v525
                  %v527 = vld [vmem:[%s417 + $0x2b0] sm:$0xff]
                  %528 = vst [vmem:[%s418 + $0x1b0] sm:$0xff] %v527
                  %v529 = vld [vmem:[%s417 + $0x2b8] sm:$0xff]
                  %530 = vst [vmem:[%s418 + $0x1b8] sm:$0xff] %v529
                  %v531 = vld [vmem:[%s417 + $0x2c0] sm:$0xff]
                  %532 = vst [vmem:[%s418 + $0x1c0] sm:$0xff] %v531
                  %v533 = vld [vmem:[%s417 + $0x2c8] sm:$0xff]
                  %534 = vst [vmem:[%s418 + $0x1c8] sm:$0xff] %v533
                  %v535 = vld [vmem:[%s417 + $0x2d0] sm:$0xff]
                  %536 = vst [vmem:[%s418 + $0x1d0] sm:$0xff] %v535
                  %v537 = vld [vmem:[%s417 + $0x2d8] sm:$0xff]
                  %538 = vst [vmem:[%s418 + $0x1d8] sm:$0xff] %v537
                  %v539 = vld [vmem:[%s417 + $0x2e0] sm:$0xff]
                  %540 = vst [vmem:[%s418 + $0x1e0] sm:$0xff] %v539
                  %v541 = vld [vmem:[%s417 + $0x2e8] sm:$0xff]
                  %542 = vst [vmem:[%s418 + $0x1e8] sm:$0xff] %v541
                  %v543 = vld [vmem:[%s417 + $0x2f0] sm:$0xff]
                  %544 = vst [vmem:[%s418 + $0x1f0] sm:$0xff] %v543
                  %v545 = vld [vmem:[%s417 + $0x2f8] sm:$0xff]
                  %546 = vst [vmem:[%s418 + $0x1f8] sm:$0xff] %v545
                  %v547 = vld [vmem:[%s417 + $0x400] sm:$0xff]
                  %548 = vst [vmem:[%s418 + $0x200] sm:$0xff] %v547
                  %v549 = vld [vmem:[%s417 + $0x408] sm:$0xff]
                  %550 = vst [vmem:[%s418 + $0x208] sm:$0xff] %v549
                  %v551 = vld [vmem:[%s417 + $0x410] sm:$0xff]
                  %552 = vst [vmem:[%s418 + $0x210] sm:$0xff] %v551
                  %v553 = vld [vmem:[%s417 + $0x418] sm:$0xff]
                  %554 = vst [vmem:[%s418 + $0x218] sm:$0xff] %v553
                  %v555 = vld [vmem:[%s417 + $0x420] sm:$0xff]
                  %556 = vst [vmem:[%s418 + $0x220] sm:$0xff] %v555
                  %v557 = vld [vmem:[%s417 + $0x428] sm:$0xff]
                  %558 = vst [vmem:[%s418 + $0x228] sm:$0xff] %v557
                  %v559 = vld [vmem:[%s417 + $0x430] sm:$0xff]
                  %560 = vst [vmem:[%s418 + $0x230] sm:$0xff] %v559
                  %v561 = vld [vmem:[%s417 + $0x438] sm:$0xff]
                  %562 = vst [vmem:[%s418 + $0x238] sm:$0xff] %v561
                  %v563 = vld [vmem:[%s417 + $0x440] sm:$0xff]
                  %564 = vst [vmem:[%s418 + $0x240] sm:$0xff] %v563
                  %v565 = vld [vmem:[%s417 + $0x448] sm:$0xff]
                  %566 = vst [vmem:[%s418 + $0x248] sm:$0xff] %v565
                  %v567 = vld [vmem:[%s417 + $0x450] sm:$0xff]
                  %568 = vst [vmem:[%s418 + $0x250] sm:$0xff] %v567
                  %v569 = vld [vmem:[%s417 + $0x458] sm:$0xff]
                  %570 = vst [vmem:[%s418 + $0x258] sm:$0xff] %v569
                  %v571 = vld [vmem:[%s417 + $0x460] sm:$0xff]
                  %572 = vst [vmem:[%s418 + $0x260] sm:$0xff] %v571
                  %v573 = vld [vmem:[%s417 + $0x468] sm:$0xff]
                  %574 = vst [vmem:[%s418 + $0x268] sm:$0xff] %v573
                  %v575 = vld [vmem:[%s417 + $0x470] sm:$0xff]
                  %576 = vst [vmem:[%s418 + $0x270] sm:$0xff] %v575
                  %v577 = vld [vmem:[%s417 + $0x478] sm:$0xff]
                  %578 = vst [vmem:[%s418 + $0x278] sm:$0xff] %v577
                  %v579 = vld [vmem:[%s417 + $0x480] sm:$0xff]
                  %580 = vst [vmem:[%s418 + $0x280] sm:$0xff] %v579
                  %v581 = vld [vmem:[%s417 + $0x488] sm:$0xff]
                  %582 = vst [vmem:[%s418 + $0x288] sm:$0xff] %v581
                  %v583 = vld [vmem:[%s417 + $0x490] sm:$0xff]
                  %584 = vst [vmem:[%s418 + $0x290] sm:$0xff] %v583
                  %v585 = vld [vmem:[%s417 + $0x498] sm:$0xff]
                  %586 = vst [vmem:[%s418 + $0x298] sm:$0xff] %v585
                  %v587 = vld [vmem:[%s417 + $0x4a0] sm:$0xff]
                  %588 = vst [vmem:[%s418 + $0x2a0] sm:$0xff] %v587
                  %v589 = vld [vmem:[%s417 + $0x4a8] sm:$0xff]
                  %590 = vst [vmem:[%s418 + $0x2a8] sm:$0xff] %v589
                  %v591 = vld [vmem:[%s417 + $0x4b0] sm:$0xff]
                  %592 = vst [vmem:[%s418 + $0x2b0] sm:$0xff] %v591
                  %v593 = vld [vmem:[%s417 + $0x4b8] sm:$0xff]
                  %594 = vst [vmem:[%s418 + $0x2b8] sm:$0xff] %v593
                  %v595 = vld [vmem:[%s417 + $0x4c0] sm:$0xff]
                  %596 = vst [vmem:[%s418 + $0x2c0] sm:$0xff] %v595
                  %v597 = vld [vmem:[%s417 + $0x4c8] sm:$0xff]
                  %598 = vst [vmem:[%s418 + $0x2c8] sm:$0xff] %v597
                  %v599 = vld [vmem:[%s417 + $0x4d0] sm:$0xff]
                  %600 = vst [vmem:[%s418 + $0x2d0] sm:$0xff] %v599
                  %v601 = vld [vmem:[%s417 + $0x4d8] sm:$0xff]
                  %602 = vst [vmem:[%s418 + $0x2d8] sm:$0xff] %v601
                  %v603 = vld [vmem:[%s417 + $0x4e0] sm:$0xff]
                  %604 = vst [vmem:[%s418 + $0x2e0] sm:$0xff] %v603
                  %v605 = vld [vmem:[%s417 + $0x4e8] sm:$0xff]
                  %606 = vst [vmem:[%s418 + $0x2e8] sm:$0xff] %v605
                  %v607 = vld [vmem:[%s417 + $0x4f0] sm:$0xff]
                  %608 = vst [vmem:[%s418 + $0x2f0] sm:$0xff] %v607
                  %v609 = vld [vmem:[%s417 + $0x4f8] sm:$0xff]
                  %610 = vst [vmem:[%s418 + $0x2f8] sm:$0xff] %v609
                  %v611 = vld [vmem:[%s417 + $0x600] sm:$0xff]
                  %612 = vst [vmem:[%s418 + $0x300] sm:$0xff] %v611
                  %v613 = vld [vmem:[%s417 + $0x608] sm:$0xff]
                  %614 = vst [vmem:[%s418 + $0x308] sm:$0xff] %v613
                  %v615 = vld [vmem:[%s417 + $0x610] sm:$0xff]
                  %616 = vst [vmem:[%s418 + $0x310] sm:$0xff] %v615
                  %v617 = vld [vmem:[%s417 + $0x618] sm:$0xff]
                  %618 = vst [vmem:[%s418 + $0x318] sm:$0xff] %v617
                  %v619 = vld [vmem:[%s417 + $0x620] sm:$0xff]
                  %620 = vst [vmem:[%s418 + $0x320] sm:$0xff] %v619
                  %v621 = vld [vmem:[%s417 + $0x628] sm:$0xff]
                  %622 = vst [vmem:[%s418 + $0x328] sm:$0xff] %v621
                  %v623 = vld [vmem:[%s417 + $0x630] sm:$0xff]
                  %624 = vst [vmem:[%s418 + $0x330] sm:$0xff] %v623
                  %v625 = vld [vmem:[%s417 + $0x638] sm:$0xff]
                  %626 = vst [vmem:[%s418 + $0x338] sm:$0xff] %v625
                  %v627 = vld [vmem:[%s417 + $0x640] sm:$0xff]
                  %628 = vst [vmem:[%s418 + $0x340] sm:$0xff] %v627
                  %v629 = vld [vmem:[%s417 + $0x648] sm:$0xff]
                  %630 = vst [vmem:[%s418 + $0x348] sm:$0xff] %v629
                  %v631 = vld [vmem:[%s417 + $0x650] sm:$0xff]
                  %632 = vst [vmem:[%s418 + $0x350] sm:$0xff] %v631
                  %v633 = vld [vmem:[%s417 + $0x658] sm:$0xff]
                  %634 = vst [vmem:[%s418 + $0x358] sm:$0xff] %v633
                  %v635 = vld [vmem:[%s417 + $0x660] sm:$0xff]
                  %636 = vst [vmem:[%s418 + $0x360] sm:$0xff] %v635
                  %v637 = vld [vmem:[%s417 + $0x668] sm:$0xff]
                  %638 = vst [vmem:[%s418 + $0x368] sm:$0xff] %v637
                  %v639 = vld [vmem:[%s417 + $0x670] sm:$0xff]
                  %640 = vst [vmem:[%s418 + $0x370] sm:$0xff] %v639
                  %v641 = vld [vmem:[%s417 + $0x678] sm:$0xff]
                  %642 = vst [vmem:[%s418 + $0x378] sm:$0xff] %v641
                  %v643 = vld [vmem:[%s417 + $0x680] sm:$0xff]
                  %644 = vst [vmem:[%s418 + $0x380] sm:$0xff] %v643
                  %v645 = vld [vmem:[%s417 + $0x688] sm:$0xff]
                  %646 = vst [vmem:[%s418 + $0x388] sm:$0xff] %v645
                  %v647 = vld [vmem:[%s417 + $0x690] sm:$0xff]
                  %648 = vst [vmem:[%s418 + $0x390] sm:$0xff] %v647
                  %v649 = vld [vmem:[%s417 + $0x698] sm:$0xff]
                  %650 = vst [vmem:[%s418 + $0x398] sm:$0xff] %v649
                  %v651 = vld [vmem:[%s417 + $0x6a0] sm:$0xff]
                  %652 = vst [vmem:[%s418 + $0x3a0] sm:$0xff] %v651
                  %v653 = vld [vmem:[%s417 + $0x6a8] sm:$0xff]
                  %654 = vst [vmem:[%s418 + $0x3a8] sm:$0xff] %v653
                  %v655 = vld [vmem:[%s417 + $0x6b0] sm:$0xff]
                  %656 = vst [vmem:[%s418 + $0x3b0] sm:$0xff] %v655
                  %v657 = vld [vmem:[%s417 + $0x6b8] sm:$0xff]
                  %658 = vst [vmem:[%s418 + $0x3b8] sm:$0xff] %v657
                  %v659 = vld [vmem:[%s417 + $0x6c0] sm:$0xff]
                  %660 = vst [vmem:[%s418 + $0x3c0] sm:$0xff] %v659
                  %v661 = vld [vmem:[%s417 + $0x6c8] sm:$0xff]
                  %662 = vst [vmem:[%s418 + $0x3c8] sm:$0xff] %v661
                  %v663 = vld [vmem:[%s417 + $0x6d0] sm:$0xff]
                  %664 = vst [vmem:[%s418 + $0x3d0] sm:$0xff] %v663
                  %v665 = vld [vmem:[%s417 + $0x6d8] sm:$0xff]
                  %666 = vst [vmem:[%s418 + $0x3d8] sm:$0xff] %v665
                  %v667 = vld [vmem:[%s417 + $0x6e0] sm:$0xff]
                  %668 = vst [vmem:[%s418 + $0x3e0] sm:$0xff] %v667
                  %v669 = vld [vmem:[%s417 + $0x6e8] sm:$0xff]
                  %670 = vst [vmem:[%s418 + $0x3e8] sm:$0xff] %v669
                  %v671 = vld [vmem:[%s417 + $0x6f0] sm:$0xff]
                  %672 = vst [vmem:[%s418 + $0x3f0] sm:$0xff] %v671
                  %v673 = vld [vmem:[%s417 + $0x6f8] sm:$0xff]
                  %674 = vst [vmem:[%s418 + $0x3f8] sm:$0xff] %v673
                $region56: #{net_forward.3} parent=50 // loop_footer
                  %s416 = sadd.s32 1, %s412
                $region57: #{net_forward.3} parent=50 // loop_footer_branch
                  %411 = sbr.rel target = $region53
                $region58: #{net_forward.3} parent=50 // loop_exit
                  _
              $region51: #{net_forward.3} parent=35 // pred_fallthru
                _
              // Predicated region
              $region59: #{net_forward.3} parent=35 // pred_check
                _
              $region60: #{net_forward.3} parent=35 // pred_check_branch
                %676 = sbr.rel target = $region62
              $region61: #{net_forward.3} parent=35 // pred_region
                _
              $region62: #{net_forward.3} parent=35 // pred_fallthru
                _
            $region36: #{net_forward.3} parent=31 // pred_fallthru
              _
            // Predicated region
            $region37: #{net_forward.3} parent=31 // pred_check
              _
            $region38: #{net_forward.3} parent=31 // pred_check_branch
              %143 = sbr.rel target = $region40
            $region39: #{net_forward.3} parent=31 // pred_region
              loop: start=0, step=1, limit=1
              $region41: #{net_forward.3} parent=39 // loop_pre_header
                _
              $region42: #{net_forward.3} parent=39 // loop_header
                %s146 = sphi 0, %s150
                %p147 = scmp.ge.s32.totalorder %s146, 1
                %s151 = sphi %s137, %s137
                %s152 = sphi %s134, %s134
              $region43: #{net_forward.3} parent=39 // loop_header_branch
                %149 = sbr.rel (%p147) target = $region47
              $region44: #{net_forward.3} parent=39 // loop_body
                %v153 = vld [vmem:[%s151] sm:$0xff]
                %154 = vst [vmem:[%s152] sm:$0xff] %v153
                %v155 = vld [vmem:[%s151 + $0x8] sm:$0xff]
                %156 = vst [vmem:[%s152 + $0x8] sm:$0xff] %v155
                %v157 = vld [vmem:[%s151 + $0x10] sm:$0xff]
                %158 = vst [vmem:[%s152 + $0x10] sm:$0xff] %v157
                %v159 = vld [vmem:[%s151 + $0x18] sm:$0xff]
                %160 = vst [vmem:[%s152 + $0x18] sm:$0xff] %v159
                %v161 = vld [vmem:[%s151 + $0x20] sm:$0xff]
                %162 = vst [vmem:[%s152 + $0x20] sm:$0xff] %v161
                %v163 = vld [vmem:[%s151 + $0x28] sm:$0xff]
                %164 = vst [vmem:[%s152 + $0x28] sm:$0xff] %v163
                %v165 = vld [vmem:[%s151 + $0x30] sm:$0xff]
                %166 = vst [vmem:[%s152 + $0x30] sm:$0xff] %v165
                %v167 = vld [vmem:[%s151 + $0x38] sm:$0xff]
                %168 = vst [vmem:[%s152 + $0x38] sm:$0xff] %v167
                %v169 = vld [vmem:[%s151 + $0x40] sm:$0xff]
                %170 = vst [vmem:[%s152 + $0x40] sm:$0xff] %v169
                %v171 = vld [vmem:[%s151 + $0x48] sm:$0xff]
                %172 = vst [vmem:[%s152 + $0x48] sm:$0xff] %v171
                %v173 = vld [vmem:[%s151 + $0x50] sm:$0xff]
                %174 = vst [vmem:[%s152 + $0x50] sm:$0xff] %v173
                %v175 = vld [vmem:[%s151 + $0x58] sm:$0xff]
                %176 = vst [vmem:[%s152 + $0x58] sm:$0xff] %v175
                %v177 = vld [vmem:[%s151 + $0x60] sm:$0xff]
                %178 = vst [vmem:[%s152 + $0x60] sm:$0xff] %v177
                %v179 = vld [vmem:[%s151 + $0x68] sm:$0xff]
                %180 = vst [vmem:[%s152 + $0x68] sm:$0xff] %v179
                %v181 = vld [vmem:[%s151 + $0x70] sm:$0xff]
                %182 = vst [vmem:[%s152 + $0x70] sm:$0xff] %v181
                %v183 = vld [vmem:[%s151 + $0x78] sm:$0xff]
                %184 = vst [vmem:[%s152 + $0x78] sm:$0xff] %v183
                %v185 = vld [vmem:[%s151 + $0x80] sm:$0xff]
                %186 = vst [vmem:[%s152 + $0x80] sm:$0xff] %v185
                %v187 = vld [vmem:[%s151 + $0x88] sm:$0xff]
                %188 = vst [vmem:[%s152 + $0x88] sm:$0xff] %v187
                %v189 = vld [vmem:[%s151 + $0x90] sm:$0xff]
                %190 = vst [vmem:[%s152 + $0x90] sm:$0xff] %v189
                %v191 = vld [vmem:[%s151 + $0x98] sm:$0xff]
                %192 = vst [vmem:[%s152 + $0x98] sm:$0xff] %v191
                %v193 = vld [vmem:[%s151 + $0xa0] sm:$0xff]
                %194 = vst [vmem:[%s152 + $0xa0] sm:$0xff] %v193
                %v195 = vld [vmem:[%s151 + $0xa8] sm:$0xff]
                %196 = vst [vmem:[%s152 + $0xa8] sm:$0xff] %v195
                %v197 = vld [vmem:[%s151 + $0xb0] sm:$0xff]
                %198 = vst [vmem:[%s152 + $0xb0] sm:$0xff] %v197
                %v199 = vld [vmem:[%s151 + $0xb8] sm:$0xff]
                %200 = vst [vmem:[%s152 + $0xb8] sm:$0xff] %v199
                %v201 = vld [vmem:[%s151 + $0xc0] sm:$0xff]
                %202 = vst [vmem:[%s152 + $0xc0] sm:$0xff] %v201
                %v203 = vld [vmem:[%s151 + $0xc8] sm:$0xff]
                %204 = vst [vmem:[%s152 + $0xc8] sm:$0xff] %v203
                %v205 = vld [vmem:[%s151 + $0xd0] sm:$0xff]
                %206 = vst [vmem:[%s152 + $0xd0] sm:$0xff] %v205
                %v207 = vld [vmem:[%s151 + $0xd8] sm:$0xff]
                %208 = vst [vmem:[%s152 + $0xd8] sm:$0xff] %v207
                %v209 = vld [vmem:[%s151 + $0xe0] sm:$0xff]
                %210 = vst [vmem:[%s152 + $0xe0] sm:$0xff] %v209
                %v211 = vld [vmem:[%s151 + $0xe8] sm:$0xff]
                %212 = vst [vmem:[%s152 + $0xe8] sm:$0xff] %v211
                %v213 = vld [vmem:[%s151 + $0xf0] sm:$0xff]
                %214 = vst [vmem:[%s152 + $0xf0] sm:$0xff] %v213
                %v215 = vld [vmem:[%s151 + $0xf8] sm:$0xff]
                %216 = vst [vmem:[%s152 + $0xf8] sm:$0xff] %v215
                %v217 = vld [vmem:[%s151 + $0x200] sm:$0xff]
                %218 = vst [vmem:[%s152 + $0x100] sm:$0xff] %v217
                %v219 = vld [vmem:[%s151 + $0x208] sm:$0xff]
                %220 = vst [vmem:[%s152 + $0x108] sm:$0xff] %v219
                %v221 = vld [vmem:[%s151 + $0x210] sm:$0xff]
                %222 = vst [vmem:[%s152 + $0x110] sm:$0xff] %v221
                %v223 = vld [vmem:[%s151 + $0x218] sm:$0xff]
                %224 = vst [vmem:[%s152 + $0x118] sm:$0xff] %v223
                %v225 = vld [vmem:[%s151 + $0x220] sm:$0xff]
                %226 = vst [vmem:[%s152 + $0x120] sm:$0xff] %v225
                %v227 = vld [vmem:[%s151 + $0x228] sm:$0xff]
                %228 = vst [vmem:[%s152 + $0x128] sm:$0xff] %v227
                %v229 = vld [vmem:[%s151 + $0x230] sm:$0xff]
                %230 = vst [vmem:[%s152 + $0x130] sm:$0xff] %v229
                %v231 = vld [vmem:[%s151 + $0x238] sm:$0xff]
                %232 = vst [vmem:[%s152 + $0x138] sm:$0xff] %v231
                %v233 = vld [vmem:[%s151 + $0x240] sm:$0xff]
                %234 = vst [vmem:[%s152 + $0x140] sm:$0xff] %v233
                %v235 = vld [vmem:[%s151 + $0x248] sm:$0xff]
                %236 = vst [vmem:[%s152 + $0x148] sm:$0xff] %v235
                %v237 = vld [vmem:[%s151 + $0x250] sm:$0xff]
                %238 = vst [vmem:[%s152 + $0x150] sm:$0xff] %v237
                %v239 = vld [vmem:[%s151 + $0x258] sm:$0xff]
                %240 = vst [vmem:[%s152 + $0x158] sm:$0xff] %v239
                %v241 = vld [vmem:[%s151 + $0x260] sm:$0xff]
                %242 = vst [vmem:[%s152 + $0x160] sm:$0xff] %v241
                %v243 = vld [vmem:[%s151 + $0x268] sm:$0xff]
                %244 = vst [vmem:[%s152 + $0x168] sm:$0xff] %v243
                %v245 = vld [vmem:[%s151 + $0x270] sm:$0xff]
                %246 = vst [vmem:[%s152 + $0x170] sm:$0xff] %v245
                %v247 = vld [vmem:[%s151 + $0x278] sm:$0xff]
                %248 = vst [vmem:[%s152 + $0x178] sm:$0xff] %v247
                %v249 = vld [vmem:[%s151 + $0x280] sm:$0xff]
                %250 = vst [vmem:[%s152 + $0x180] sm:$0xff] %v249
                %v251 = vld [vmem:[%s151 + $0x288] sm:$0xff]
                %252 = vst [vmem:[%s152 + $0x188] sm:$0xff] %v251
                %v253 = vld [vmem:[%s151 + $0x290] sm:$0xff]
                %254 = vst [vmem:[%s152 + $0x190] sm:$0xff] %v253
                %v255 = vld [vmem:[%s151 + $0x298] sm:$0xff]
                %256 = vst [vmem:[%s152 + $0x198] sm:$0xff] %v255
                %v257 = vld [vmem:[%s151 + $0x2a0] sm:$0xff]
                %258 = vst [vmem:[%s152 + $0x1a0] sm:$0xff] %v257
                %v259 = vld [vmem:[%s151 + $0x2a8] sm:$0xff]
                %260 = vst [vmem:[%s152 + $0x1a8] sm:$0xff] %v259
                %v261 = vld [vmem:[%s151 + $0x2b0] sm:$0xff]
                %262 = vst [vmem:[%s152 + $0x1b0] sm:$0xff] %v261
                %v263 = vld [vmem:[%s151 + $0x2b8] sm:$0xff]
                %264 = vst [vmem:[%s152 + $0x1b8] sm:$0xff] %v263
                %v265 = vld [vmem:[%s151 + $0x2c0] sm:$0xff]
                %266 = vst [vmem:[%s152 + $0x1c0] sm:$0xff] %v265
                %v267 = vld [vmem:[%s151 + $0x2c8] sm:$0xff]
                %268 = vst [vmem:[%s152 + $0x1c8] sm:$0xff] %v267
                %v269 = vld [vmem:[%s151 + $0x2d0] sm:$0xff]
                %270 = vst [vmem:[%s152 + $0x1d0] sm:$0xff] %v269
                %v271 = vld [vmem:[%s151 + $0x2d8] sm:$0xff]
                %272 = vst [vmem:[%s152 + $0x1d8] sm:$0xff] %v271
                %v273 = vld [vmem:[%s151 + $0x2e0] sm:$0xff]
                %274 = vst [vmem:[%s152 + $0x1e0] sm:$0xff] %v273
                %v275 = vld [vmem:[%s151 + $0x2e8] sm:$0xff]
                %276 = vst [vmem:[%s152 + $0x1e8] sm:$0xff] %v275
                %v277 = vld [vmem:[%s151 + $0x2f0] sm:$0xff]
                %278 = vst [vmem:[%s152 + $0x1f0] sm:$0xff] %v277
                %v279 = vld [vmem:[%s151 + $0x2f8] sm:$0xff]
                %280 = vst [vmem:[%s152 + $0x1f8] sm:$0xff] %v279
                %v281 = vld [vmem:[%s151 + $0x400] sm:$0xff]
                %282 = vst [vmem:[%s152 + $0x200] sm:$0xff] %v281
                %v283 = vld [vmem:[%s151 + $0x408] sm:$0xff]
                %284 = vst [vmem:[%s152 + $0x208] sm:$0xff] %v283
                %v285 = vld [vmem:[%s151 + $0x410] sm:$0xff]
                %286 = vst [vmem:[%s152 + $0x210] sm:$0xff] %v285
                %v287 = vld [vmem:[%s151 + $0x418] sm:$0xff]
                %288 = vst [vmem:[%s152 + $0x218] sm:$0xff] %v287
                %v289 = vld [vmem:[%s151 + $0x420] sm:$0xff]
                %290 = vst [vmem:[%s152 + $0x220] sm:$0xff] %v289
                %v291 = vld [vmem:[%s151 + $0x428] sm:$0xff]
                %292 = vst [vmem:[%s152 + $0x228] sm:$0xff] %v291
                %v293 = vld [vmem:[%s151 + $0x430] sm:$0xff]
                %294 = vst [vmem:[%s152 + $0x230] sm:$0xff] %v293
                %v295 = vld [vmem:[%s151 + $0x438] sm:$0xff]
                %296 = vst [vmem:[%s152 + $0x238] sm:$0xff] %v295
                %v297 = vld [vmem:[%s151 + $0x440] sm:$0xff]
                %298 = vst [vmem:[%s152 + $0x240] sm:$0xff] %v297
                %v299 = vld [vmem:[%s151 + $0x448] sm:$0xff]
                %300 = vst [vmem:[%s152 + $0x248] sm:$0xff] %v299
                %v301 = vld [vmem:[%s151 + $0x450] sm:$0xff]
                %302 = vst [vmem:[%s152 + $0x250] sm:$0xff] %v301
                %v303 = vld [vmem:[%s151 + $0x458] sm:$0xff]
                %304 = vst [vmem:[%s152 + $0x258] sm:$0xff] %v303
                %v305 = vld [vmem:[%s151 + $0x460] sm:$0xff]
                %306 = vst [vmem:[%s152 + $0x260] sm:$0xff] %v305
                %v307 = vld [vmem:[%s151 + $0x468] sm:$0xff]
                %308 = vst [vmem:[%s152 + $0x268] sm:$0xff] %v307
                %v309 = vld [vmem:[%s151 + $0x470] sm:$0xff]
                %310 = vst [vmem:[%s152 + $0x270] sm:$0xff] %v309
                %v311 = vld [vmem:[%s151 + $0x478] sm:$0xff]
                %312 = vst [vmem:[%s152 + $0x278] sm:$0xff] %v311
                %v313 = vld [vmem:[%s151 + $0x480] sm:$0xff]
                %314 = vst [vmem:[%s152 + $0x280] sm:$0xff] %v313
                %v315 = vld [vmem:[%s151 + $0x488] sm:$0xff]
                %316 = vst [vmem:[%s152 + $0x288] sm:$0xff] %v315
                %v317 = vld [vmem:[%s151 + $0x490] sm:$0xff]
                %318 = vst [vmem:[%s152 + $0x290] sm:$0xff] %v317
                %v319 = vld [vmem:[%s151 + $0x498] sm:$0xff]
                %320 = vst [vmem:[%s152 + $0x298] sm:$0xff] %v319
                %v321 = vld [vmem:[%s151 + $0x4a0] sm:$0xff]
                %322 = vst [vmem:[%s152 + $0x2a0] sm:$0xff] %v321
                %v323 = vld [vmem:[%s151 + $0x4a8] sm:$0xff]
                %324 = vst [vmem:[%s152 + $0x2a8] sm:$0xff] %v323
                %v325 = vld [vmem:[%s151 + $0x4b0] sm:$0xff]
                %326 = vst [vmem:[%s152 + $0x2b0] sm:$0xff] %v325
                %v327 = vld [vmem:[%s151 + $0x4b8] sm:$0xff]
                %328 = vst [vmem:[%s152 + $0x2b8] sm:$0xff] %v327
                %v329 = vld [vmem:[%s151 + $0x4c0] sm:$0xff]
                %330 = vst [vmem:[%s152 + $0x2c0] sm:$0xff] %v329
                %v331 = vld [vmem:[%s151 + $0x4c8] sm:$0xff]
                %332 = vst [vmem:[%s152 + $0x2c8] sm:$0xff] %v331
                %v333 = vld [vmem:[%s151 + $0x4d0] sm:$0xff]
                %334 = vst [vmem:[%s152 + $0x2d0] sm:$0xff] %v333
                %v335 = vld [vmem:[%s151 + $0x4d8] sm:$0xff]
                %336 = vst [vmem:[%s152 + $0x2d8] sm:$0xff] %v335
                %v337 = vld [vmem:[%s151 + $0x4e0] sm:$0xff]
                %338 = vst [vmem:[%s152 + $0x2e0] sm:$0xff] %v337
                %v339 = vld [vmem:[%s151 + $0x4e8] sm:$0xff]
                %340 = vst [vmem:[%s152 + $0x2e8] sm:$0xff] %v339
                %v341 = vld [vmem:[%s151 + $0x4f0] sm:$0xff]
                %342 = vst [vmem:[%s152 + $0x2f0] sm:$0xff] %v341
                %v343 = vld [vmem:[%s151 + $0x4f8] sm:$0xff]
                %344 = vst [vmem:[%s152 + $0x2f8] sm:$0xff] %v343
                %v345 = vld [vmem:[%s151 + $0x600] sm:$0xff]
                %346 = vst [vmem:[%s152 + $0x300] sm:$0xff] %v345
                %v347 = vld [vmem:[%s151 + $0x608] sm:$0xff]
                %348 = vst [vmem:[%s152 + $0x308] sm:$0xff] %v347
                %v349 = vld [vmem:[%s151 + $0x610] sm:$0xff]
                %350 = vst [vmem:[%s152 + $0x310] sm:$0xff] %v349
                %v351 = vld [vmem:[%s151 + $0x618] sm:$0xff]
                %352 = vst [vmem:[%s152 + $0x318] sm:$0xff] %v351
                %v353 = vld [vmem:[%s151 + $0x620] sm:$0xff]
                %354 = vst [vmem:[%s152 + $0x320] sm:$0xff] %v353
                %v355 = vld [vmem:[%s151 + $0x628] sm:$0xff]
                %356 = vst [vmem:[%s152 + $0x328] sm:$0xff] %v355
                %v357 = vld [vmem:[%s151 + $0x630] sm:$0xff]
                %358 = vst [vmem:[%s152 + $0x330] sm:$0xff] %v357
                %v359 = vld [vmem:[%s151 + $0x638] sm:$0xff]
                %360 = vst [vmem:[%s152 + $0x338] sm:$0xff] %v359
                %v361 = vld [vmem:[%s151 + $0x640] sm:$0xff]
                %362 = vst [vmem:[%s152 + $0x340] sm:$0xff] %v361
                %v363 = vld [vmem:[%s151 + $0x648] sm:$0xff]
                %364 = vst [vmem:[%s152 + $0x348] sm:$0xff] %v363
                %v365 = vld [vmem:[%s151 + $0x650] sm:$0xff]
                %366 = vst [vmem:[%s152 + $0x350] sm:$0xff] %v365
                %v367 = vld [vmem:[%s151 + $0x658] sm:$0xff]
                %368 = vst [vmem:[%s152 + $0x358] sm:$0xff] %v367
                %v369 = vld [vmem:[%s151 + $0x660] sm:$0xff]
                %370 = vst [vmem:[%s152 + $0x360] sm:$0xff] %v369
                %v371 = vld [vmem:[%s151 + $0x668] sm:$0xff]
                %372 = vst [vmem:[%s152 + $0x368] sm:$0xff] %v371
                %v373 = vld [vmem:[%s151 + $0x670] sm:$0xff]
                %374 = vst [vmem:[%s152 + $0x370] sm:$0xff] %v373
                %v375 = vld [vmem:[%s151 + $0x678] sm:$0xff]
                %376 = vst [vmem:[%s152 + $0x378] sm:$0xff] %v375
                %v377 = vld [vmem:[%s151 + $0x680] sm:$0xff]
                %378 = vst [vmem:[%s152 + $0x380] sm:$0xff] %v377
                %v379 = vld [vmem:[%s151 + $0x688] sm:$0xff]
                %380 = vst [vmem:[%s152 + $0x388] sm:$0xff] %v379
                %v381 = vld [vmem:[%s151 + $0x690] sm:$0xff]
                %382 = vst [vmem:[%s152 + $0x390] sm:$0xff] %v381
                %v383 = vld [vmem:[%s151 + $0x698] sm:$0xff]
                %384 = vst [vmem:[%s152 + $0x398] sm:$0xff] %v383
                %v385 = vld [vmem:[%s151 + $0x6a0] sm:$0xff]
                %386 = vst [vmem:[%s152 + $0x3a0] sm:$0xff] %v385
                %v387 = vld [vmem:[%s151 + $0x6a8] sm:$0xff]
                %388 = vst [vmem:[%s152 + $0x3a8] sm:$0xff] %v387
                %v389 = vld [vmem:[%s151 + $0x6b0] sm:$0xff]
                %390 = vst [vmem:[%s152 + $0x3b0] sm:$0xff] %v389
                %v391 = vld [vmem:[%s151 + $0x6b8] sm:$0xff]
                %392 = vst [vmem:[%s152 + $0x3b8] sm:$0xff] %v391
                %v393 = vld [vmem:[%s151 + $0x6c0] sm:$0xff]
                %394 = vst [vmem:[%s152 + $0x3c0] sm:$0xff] %v393
                %v395 = vld [vmem:[%s151 + $0x6c8] sm:$0xff]
                %396 = vst [vmem:[%s152 + $0x3c8] sm:$0xff] %v395
                %v397 = vld [vmem:[%s151 + $0x6d0] sm:$0xff]
                %398 = vst [vmem:[%s152 + $0x3d0] sm:$0xff] %v397
                %v399 = vld [vmem:[%s151 + $0x6d8] sm:$0xff]
                %400 = vst [vmem:[%s152 + $0x3d8] sm:$0xff] %v399
                %v401 = vld [vmem:[%s151 + $0x6e0] sm:$0xff]
                %402 = vst [vmem:[%s152 + $0x3e0] sm:$0xff] %v401
                %v403 = vld [vmem:[%s151 + $0x6e8] sm:$0xff]
                %404 = vst [vmem:[%s152 + $0x3e8] sm:$0xff] %v403
                %v405 = vld [vmem:[%s151 + $0x6f0] sm:$0xff]
                %406 = vst [vmem:[%s152 + $0x3f0] sm:$0xff] %v405
                %v407 = vld [vmem:[%s151 + $0x6f8] sm:$0xff]
                %408 = vst [vmem:[%s152 + $0x3f8] sm:$0xff] %v407
              $region45: #{net_forward.3} parent=39 // loop_footer
                %s150 = sadd.s32 1, %s146
              $region46: #{net_forward.3} parent=39 // loop_footer_branch
                %145 = sbr.rel target = $region42
              $region47: #{net_forward.3} parent=39 // loop_exit
                _
            $region40: #{net_forward.3} parent=31 // pred_fallthru
              _
          $region32: #{net_forward.3} parent=27 // pred_fallthru
            _
          %677 = vnop
        $region28: #{net_forward.3} parent=23 // pred_fallthru
          _
      $region24: #{net_forward.3} parent=5 // pred_fallthru
        _
      %p678 = scmp.le.s32.totalorder 1, %s9
      %p679 = scmp.lt.s32.totalorder %s9, 3
      %p680 = pnand %p678, %p679
      %p681 = pneg %p680
      // Predicated region
      $region63: #{net_forward.3} parent=5 // pred_check
        _
      $region64: #{net_forward.3} parent=5 // pred_check_branch
        %683 = sbr.rel (%p680) target = $region66
      $region65: #{net_forward.3} parent=5 // pred_region
        %s684 = ssub.s32 %s9, 1
        %s685 = sand.u32 %s22, 1
        %s686 = sand.u32 %s22, 1
        %s687 = smul.addr %s686, 1024
        %s688 = scalar_lea.vmem [#allocation2], %s687
        // Predicated region
        $region67: #{net_forward.3} parent=65 // pred_check
          %p689 = pneg %p35
        $region68: #{net_forward.3} parent=65 // pred_check_branch
          %691 = sbr.rel (%p689) target = $region70
        $region69: #{net_forward.3} parent=65 // pred_region
          _
        $region70: #{net_forward.3} parent=65 // pred_fallthru
          _
        %s692 = sand.u32 %s22, 1
        %s693 = sand.u32 %s22, 1
        %s694 = smul.addr %s693, 1024
        %s695 = scalar_lea.vmem [#allocation2], %s694
        %p696 = pneg %p35
        %p697 = pneg %p32
        %p698 = pneg %p56
        %p699 = pneg %p53
        %p700 = pneg %p77
        %p701 = pneg %p74
        %p702 = pneg %p103
        %p703 = pneg %p100
        %s704 = smul.u32 32, %s14
        %p705 = scmp.lt.s32.totalorder %s704, 63
        %s706 = scalar_select %p705, %s704, 63
        %s707 = smul.addr %s706, 8
        %s708 = scalar_lea.vmem %s3, %s707
        %s709 = smul.u32 32, %s14
        %s710 = smul.u32 32, %s14
        %p711 = scmp.lt.s32.totalorder %s710, 63
        %s712 = scalar_select %p711, %s710, 63
        %s713 = smul.addr %s712, 8
        %s714 = scalar_lea.vmem %s3, %s713
        %s715 = smul.u32 32, %s14
        %v716 = vld [vmem:[%s1] sm:$0xff]
        %v717 = vld [vmem:[%s1 + $0x8] sm:$0xff]
        %v718 = vld [vmem:[%s1 + $0x10] sm:$0xff]
        %v719 = vld [vmem:[%s1 + $0x18] sm:$0xff]
        %v720 = vld [vmem:[%s1 + $0x20] sm:$0xff]
        %v721 = vld [vmem:[%s1 + $0x28] sm:$0xff]
        %v722 = vld [vmem:[%s1 + $0x30] sm:$0xff]
        %v723 = vld [vmem:[%s1 + $0x38] sm:$0xff]
        %v724 = vld [vmem:[%s1 + $0x40] sm:$0xff]
        %v725 = vld [vmem:[%s1 + $0x48] sm:$0xff]
        %v726 = vld [vmem:[%s1 + $0x50] sm:$0xff]
        %v727 = vld [vmem:[%s1 + $0x58] sm:$0xff]
        %v728 = vld [vmem:[%s1 + $0x60] sm:$0xff]
        %v729 = vld [vmem:[%s1 + $0x68] sm:$0xff]
        %v730 = vld [vmem:[%s1 + $0x70] sm:$0xff]
        %v731 = vld [vmem:[%s1 + $0x78] sm:$0xff]
        %v732 = vld [vmem:[%s688] sm:$0xff]
        %v733 = vld [vmem:[%s688 + $0x8] sm:$0xff]
        %v734 = vld [vmem:[%s688 + $0x10] sm:$0xff]
        %v735 = vld [vmem:[%s688 + $0x18] sm:$0xff]
        %v736 = vld [vmem:[%s688 + $0x20] sm:$0xff]
        %v737 = vld [vmem:[%s688 + $0x28] sm:$0xff]
        %v738 = vld [vmem:[%s688 + $0x30] sm:$0xff]
        %v739 = vld [vmem:[%s688 + $0x38] sm:$0xff]
        %v740 = vld [vmem:[%s688 + $0x40] sm:$0xff]
        %v741 = vld [vmem:[%s688 + $0x48] sm:$0xff]
        %v742 = vld [vmem:[%s688 + $0x50] sm:$0xff]
        %v743 = vld [vmem:[%s688 + $0x58] sm:$0xff]
        %v744 = vld [vmem:[%s688 + $0x60] sm:$0xff]
        %v745 = vld [vmem:[%s688 + $0x68] sm:$0xff]
        %v746 = vld [vmem:[%s688 + $0x70] sm:$0xff]
        %v747 = vld [vmem:[%s688 + $0x78] sm:$0xff]
        %v748 = vld [vmem:[%s688 + $0x80] sm:$0xff]
        %v749 = vld [vmem:[%s688 + $0x88] sm:$0xff]
        %v750 = vld [vmem:[%s688 + $0x90] sm:$0xff]
        %v751 = vld [vmem:[%s688 + $0x98] sm:$0xff]
        %v752 = vld [vmem:[%s688 + $0xa0] sm:$0xff]
        %v753 = vld [vmem:[%s688 + $0xa8] sm:$0xff]
        %v754 = vld [vmem:[%s688 + $0xb0] sm:$0xff]
        %v755 = vld [vmem:[%s688 + $0xb8] sm:$0xff]
        %v756 = vld [vmem:[%s688 + $0xc0] sm:$0xff]
        %v757 = vld [vmem:[%s688 + $0xc8] sm:$0xff]
        %v758 = vld [vmem:[%s688 + $0xd0] sm:$0xff]
        %v759 = vld [vmem:[%s688 + $0xd8] sm:$0xff]
        %v760 = vld [vmem:[%s688 + $0xe0] sm:$0xff]
        %v761 = vld [vmem:[%s688 + $0xe8] sm:$0xff]
        %v762 = vld [vmem:[%s688 + $0xf0] sm:$0xff]
        %v763 = vld [vmem:[%s688 + $0xf8] sm:$0xff]
        %764 = vmatprep.subr.mxu0 0.0
        %765 = vmatpush1.msra.mxu0 %v716
        %766 = vmatprep.subr.mxu0 0.0
        %767 = vmatpush1.msra.mxu0 %v717
        %768 = vmatprep.subr.mxu0 0.0
        %769 = vmatpush1.msra.mxu0 %v718
        %770 = vmatprep.subr.mxu0 0.0
        %771 = vmatpush1.msra.mxu0 %v719
        %772 = vmatprep.subr.mxu0 0.0
        %773 = vmatpush1.msra.mxu0 %v720
        %774 = vmatprep.subr.mxu0 0.0
        %775 = vmatpush1.msra.mxu0 %v721
        %776 = vmatprep.subr.mxu0 0.0
        %777 = vmatpush1.msra.mxu0 %v722
        %778 = vmatprep.subr.mxu0 0.0
        %779 = vmatpush1.msra.mxu0 %v723
        %780 = vmatprep.subr.mxu0 0.0
        %781 = vmatpush1.msra.mxu0 %v724
        %782 = vmatprep.subr.mxu0 0.0
        %783 = vmatpush1.msra.mxu0 %v725
        %784 = vmatprep.subr.mxu0 0.0
        %785 = vmatpush1.msra.mxu0 %v726
        %786 = vmatprep.subr.mxu0 0.0
        %787 = vmatpush1.msra.mxu0 %v727
        %788 = vmatprep.subr.mxu0 0.0
        %789 = vmatpush1.msra.mxu0 %v728
        %790 = vmatprep.subr.mxu0 0.0
        %791 = vmatpush1.msra.mxu0 %v729
        %792 = vmatprep.subr.mxu0 0.0
        %793 = vmatpush1.msra.mxu0 %v730
        %794 = vmatprep.subr.mxu0 0.0
        %795 = vmatpush1.msra.mxu0 %v731
        %796 = vmatprep.subr.mxu0 0.0
        %797 = vmatpush1.msra.mxu0 0.0
        %798 = vmatprep.subr.mxu0 0.0
        %799 = vmatpush1.msra.mxu0 0.0
        %800 = vmatprep.subr.mxu0 0.0
        %801 = vmatpush1.msra.mxu0 0.0
        %802 = vmatprep.subr.mxu0 0.0
        %803 = vmatpush1.msra.mxu0 0.0
        %804 = vmatprep.subr.mxu0 0.0
        %805 = vmatpush1.msra.mxu0 0.0
        %806 = vmatprep.subr.mxu0 0.0
        %807 = vmatpush1.msra.mxu0 0.0
        %808 = vmatprep.subr.mxu0 0.0
        %809 = vmatpush1.msra.mxu0 0.0
        %810 = vmatprep.subr.mxu0 0.0
        %811 = vmatpush1.msra.mxu0 0.0
        %812 = vmatprep.subr.mxu0 0.0
        %813 = vmatpush1.msra.mxu0 0.0
        %814 = vmatprep.subr.mxu0 0.0
        %815 = vmatpush1.msra.mxu0 0.0
        %816 = vmatprep.subr.mxu0 0.0
        %817 = vmatpush1.msra.mxu0 0.0
        %818 = vmatprep.subr.mxu0 0.0
        %819 = vmatpush1.msra.mxu0 0.0
        %820 = vmatprep.subr.mxu0 0.0
        %821 = vmatpush1.msra.mxu0 0.0
        %822 = vmatprep.subr.mxu0 0.0
        %823 = vmatpush1.msra.mxu0 0.0
        %824 = vmatprep.subr.mxu0 0.0
        %825 = vmatpush1.msra.mxu0 0.0
        %826 = vmatprep.subr.mxu0 0.0
        %827 = vmatpush1.msra.mxu0 0.0
        %828 = vmatprep.mubr.f32.mxu0 0.0
        %829 = vmatmul.mubr.f32.gmra.mrb[0].mxu0 %v732
        %v830 = vpop.f32.mrb[0].mxu0
        %v831 = vadd.f32 0.0, %v830
        %v832 = vpop.f32.mrb[0].mxu0
        %833 = vmatprep.mubr.f32.mxu0 0.0
        %834 = vmatmul.mubr.f32.gmra.mrb[0].mxu0 %v733
        %v835 = vpop.f32.mrb[0].mxu0
        %v836 = vadd.f32 0.0, %v835
        %v837 = vpop.f32.mrb[0].mxu0
        %838 = vmatprep.mubr.f32.mxu0 0.0
        %839 = vmatmul.mubr.f32.gmra.mrb[0].mxu0 %v734
        %v840 = vpop.f32.mrb[0].mxu0
        %v841 = vadd.f32 0.0, %v840
        %v842 = vpop.f32.mrb[0].mxu0
        %843 = vmatprep.mubr.f32.mxu0 0.0
        %844 = vmatmul.mubr.f32.gmra.mrb[0].mxu0 %v735
        %v845 = vpop.f32.mrb[0].mxu0
        %v846 = vadd.f32 0.0, %v845
        %v847 = vpop.f32.mrb[0].mxu0
        %848 = vmatprep.mubr.f32.mxu0 0.0
        %849 = vmatmul.mubr.f32.gmra.mrb[0].mxu0 %v736
        %v850 = vpop.f32.mrb[0].mxu0
        %v851 = vadd.f32 0.0, %v850
        %v852 = vpop.f32.mrb[0].mxu0
        %853 = vmatprep.mubr.f32.mxu0 0.0
        %854 = vmatmul.mubr.f32.gmra.mrb[0].mxu0 %v737
        %v855 = vpop.f32.mrb[0].mxu0
        %v856 = vadd.f32 0.0, %v855
        %v857 = vpop.f32.mrb[0].mxu0
        %858 = vmatprep.mubr.f32.mxu0 0.0
        %859 = vmatmul.mubr.f32.gmra.mrb[0].mxu0 %v738
        %v860 = vpop.f32.mrb[0].mxu0
        %v861 = vadd.f32 0.0, %v860
        %v862 = vpop.f32.mrb[0].mxu0
        %863 = vmatprep.mubr.f32.mxu0 0.0
        %864 = vmatmul.mubr.f32.gmra.mrb[0].mxu0 %v739
        %v865 = vpop.f32.mrb[0].mxu0
        %v866 = vadd.f32 0.0, %v865
        %v867 = vpop.f32.mrb[0].mxu0
        %868 = vmatprep.mubr.f32.mxu0 0.0
        %869 = vmatmul.mubr.f32.gmra.mrb[0].mxu0 %v740
        %v870 = vpop.f32.mrb[0].mxu0
        %v871 = vadd.f32 0.0, %v870
        %v872 = vpop.f32.mrb[0].mxu0
        %873 = vmatprep.mubr.f32.mxu0 0.0
        %874 = vmatmul.mubr.f32.gmra.mrb[0].mxu0 %v741
        %v875 = vpop.f32.mrb[0].mxu0
        %v876 = vadd.f32 0.0, %v875
        %v877 = vpop.f32.mrb[0].mxu0
        %878 = vmatprep.mubr.f32.mxu0 0.0
        %879 = vmatmul.mubr.f32.gmra.mrb[0].mxu0 %v742
        %v880 = vpop.f32.mrb[0].mxu0
        %v881 = vadd.f32 0.0, %v880
        %v882 = vpop.f32.mrb[0].mxu0
        %883 = vmatprep.mubr.f32.mxu0 0.0
        %884 = vmatmul.mubr.f32.gmra.mrb[0].mxu0 %v743
        %v885 = vpop.f32.mrb[0].mxu0
        %v886 = vadd.f32 0.0, %v885
        %v887 = vpop.f32.mrb[0].mxu0
        %888 = vmatprep.mubr.f32.mxu0 0.0
        %889 = vmatmul.mubr.f32.gmra.mrb[0].mxu0 %v744
        %v890 = vpop.f32.mrb[0].mxu0
        %v891 = vadd.f32 0.0, %v890
        %v892 = vpop.f32.mrb[0].mxu0
        %893 = vmatprep.mubr.f32.mxu0 0.0
        %894 = vmatmul.mubr.f32.gmra.mrb[0].mxu0 %v745
        %v895 = vpop.f32.mrb[0].mxu0
        %v896 = vadd.f32 0.0, %v895
        %v897 = vpop.f32.mrb[0].mxu0
        %898 = vmatprep.mubr.f32.mxu0 0.0
        %899 = vmatmul.mubr.f32.gmra.mrb[0].mxu0 %v746
        %v900 = vpop.f32.mrb[0].mxu0
        %v901 = vadd.f32 0.0, %v900
        %v902 = vpop.f32.mrb[0].mxu0
        %903 = vmatprep.mubr.f32.mxu0 0.0
        %904 = vmatmul.mubr.f32.gmra.mrb[0].mxu0 %v747
        %v905 = vpop.f32.mrb[0].mxu0
        %v906 = vadd.f32 0.0, %v905
        %v907 = vpop.f32.mrb[0].mxu0
        %908 = vmatprep.mubr.f32.mxu0 0.0
        %909 = vmatmul.mubr.f32.gmra.mrb[0].mxu0 %v748
        %v910 = vpop.f32.mrb[0].mxu0
        %v911 = vadd.f32 0.0, %v910
        %v912 = vpop.f32.mrb[0].mxu0
        %913 = vmatprep.mubr.f32.mxu0 0.0
        %914 = vmatmul.mubr.f32.gmra.mrb[0].mxu0 %v749
        %v915 = vpop.f32.mrb[0].mxu0
        %v916 = vadd.f32 0.0, %v915
        %v917 = vpop.f32.mrb[0].mxu0
        %918 = vmatprep.mubr.f32.mxu0 0.0
        %919 = vmatmul.mubr.f32.gmra.mrb[0].mxu0 %v750
        %v920 = vpop.f32.mrb[0].mxu0
        %v921 = vadd.f32 0.0, %v920
        %v922 = vpop.f32.mrb[0].mxu0
        %923 = vmatprep.mubr.f32.mxu0 0.0
        %924 = vmatmul.mubr.f32.gmra.mrb[0].mxu0 %v751
        %v925 = vpop.f32.mrb[0].mxu0
        %v926 = vadd.f32 0.0, %v925
        %v927 = vpop.f32.mrb[0].mxu0
        %928 = vmatprep.mubr.f32.mxu0 0.0
        %929 = vmatmul.mubr.f32.gmra.mrb[0].mxu0 %v752
        %v930 = vpop.f32.mrb[0].mxu0
        %v931 = vadd.f32 0.0, %v930
        %v932 = vpop.f32.mrb[0].mxu0
        %933 = vmatprep.mubr.f32.mxu0 0.0
        %934 = vmatmul.mubr.f32.gmra.mrb[0].mxu0 %v753
        %v935 = vpop.f32.mrb[0].mxu0
        %v936 = vadd.f32 0.0, %v935
        %v937 = vpop.f32.mrb[0].mxu0
        %938 = vmatprep.mubr.f32.mxu0 0.0
        %939 = vmatmul.mubr.f32.gmra.mrb[0].mxu0 %v754
        %v940 = vpop.f32.mrb[0].mxu0
        %v941 = vadd.f32 0.0, %v940
        %v942 = vpop.f32.mrb[0].mxu0
        %943 = vmatprep.mubr.f32.mxu0 0.0
        %944 = vmatmul.mubr.f32.gmra.mrb[0].mxu0 %v755
        %v945 = vpop.f32.mrb[0].mxu0
        %v946 = vadd.f32 0.0, %v945
        %v947 = vpop.f32.mrb[0].mxu0
        %948 = vmatprep.mubr.f32.mxu0 0.0
        %949 = vmatmul.mubr.f32.gmra.mrb[0].mxu0 %v756
        %v950 = vpop.f32.mrb[0].mxu0
        %v951 = vadd.f32 0.0, %v950
        %v952 = vpop.f32.mrb[0].mxu0
        %953 = vmatprep.mubr.f32.mxu0 0.0
        %954 = vmatmul.mubr.f32.gmra.mrb[0].mxu0 %v757
        %v955 = vpop.f32.mrb[0].mxu0
        %v956 = vadd.f32 0.0, %v955
        %v957 = vpop.f32.mrb[0].mxu0
        %958 = vmatprep.mubr.f32.mxu0 0.0
        %959 = vmatmul.mubr.f32.gmra.mrb[0].mxu0 %v758
        %v960 = vpop.f32.mrb[0].mxu0
        %v961 = vadd.f32 0.0, %v960
        %v962 = vpop.f32.mrb[0].mxu0
        %963 = vmatprep.mubr.f32.mxu0 0.0
        %964 = vmatmul.mubr.f32.gmra.mrb[0].mxu0 %v759
        %v965 = vpop.f32.mrb[0].mxu0
        %v966 = vadd.f32 0.0, %v965
        %v967 = vpop.f32.mrb[0].mxu0
        %968 = vmatprep.mubr.f32.mxu0 0.0
        %969 = vmatmul.mubr.f32.gmra.mrb[0].mxu0 %v760
        %v970 = vpop.f32.mrb[0].mxu0
        %v971 = vadd.f32 0.0, %v970
        %v972 = vpop.f32.mrb[0].mxu0
        %973 = vmatprep.mubr.f32.mxu0 0.0
        %974 = vmatmul.mubr.f32.gmra.mrb[0].mxu0 %v761
        %v975 = vpop.f32.mrb[0].mxu0
        %v976 = vadd.f32 0.0, %v975
        %v977 = vpop.f32.mrb[0].mxu0
        %978 = vmatprep.mubr.f32.mxu0 0.0
        %979 = vmatmul.mubr.f32.gmra.mrb[0].mxu0 %v762
        %v980 = vpop.f32.mrb[0].mxu0
        %v981 = vadd.f32 0.0, %v980
        %v982 = vpop.f32.mrb[0].mxu0
        %983 = vmatprep.mubr.f32.mxu0 0.0
        %984 = vmatmul.mubr.f32.gmra.mrb[0].mxu0 %v763
        %v985 = vpop.f32.mrb[0].mxu0
        %v986 = vadd.f32 0.0, %v985
        %v987 = vpop.f32.mrb[0].mxu0
        %988 = vdwg.mxu0
        %s989 = scalar_lea.vmem %s688, 256 [#allocation2]
        %v990 = vld [vmem:[%s989] sm:$0xff]
        %v991 = vld [vmem:[%s989 + $0x8] sm:$0xff]
        %v992 = vld [vmem:[%s989 + $0x10] sm:$0xff]
        %v993 = vld [vmem:[%s989 + $0x18] sm:$0xff]
        %v994 = vld [vmem:[%s989 + $0x20] sm:$0xff]
        %v995 = vld [vmem:[%s989 + $0x28] sm:$0xff]
        %v996 = vld [vmem:[%s989 + $0x30] sm:$0xff]
        %v997 = vld [vmem:[%s989 + $0x38] sm:$0xff]
        %v998 = vld [vmem:[%s989 + $0x40] sm:$0xff]
        %v999 = vld [vmem:[%s989 + $0x48] sm:$0xff]
        %v1000 = vld [vmem:[%s989 + $0x50] sm:$0xff]
        %v1001 = vld [vmem:[%s989 + $0x58] sm:$0xff]
        %v1002 = vld [vmem:[%s989 + $0x60] sm:$0xff]
        %v1003 = vld [vmem:[%s989 + $0x68] sm:$0xff]
        %v1004 = vld [vmem:[%s989 + $0x70] sm:$0xff]
        %v1005 = vld [vmem:[%s989 + $0x78] sm:$0xff]
        %v1006 = vld [vmem:[%s989 + $0x80] sm:$0xff]
        %v1007 = vld [vmem:[%s989 + $0x88] sm:$0xff]
        %v1008 = vld [vmem:[%s989 + $0x90] sm:$0xff]
        %v1009 = vld [vmem:[%s989 + $0x98] sm:$0xff]
        %v1010 = vld [vmem:[%s989 + $0xa0] sm:$0xff]
        %v1011 = vld [vmem:[%s989 + $0xa8] sm:$0xff]
        %v1012 = vld [vmem:[%s989 + $0xb0] sm:$0xff]
        %v1013 = vld [vmem:[%s989 + $0xb8] sm:$0xff]
        %v1014 = vld [vmem:[%s989 + $0xc0] sm:$0xff]
        %v1015 = vld [vmem:[%s989 + $0xc8] sm:$0xff]
        %v1016 = vld [vmem:[%s989 + $0xd0] sm:$0xff]
        %v1017 = vld [vmem:[%s989 + $0xd8] sm:$0xff]
        %v1018 = vld [vmem:[%s989 + $0xe0] sm:$0xff]
        %v1019 = vld [vmem:[%s989 + $0xe8] sm:$0xff]
        %v1020 = vld [vmem:[%s989 + $0xf0] sm:$0xff]
        %v1021 = vld [vmem:[%s989 + $0xf8] sm:$0xff]
        %1022 = vmatprep.subr.mxu0 0.0
        %1023 = vmatpush1.msra.mxu0 %v716
        %1024 = vmatprep.subr.mxu0 0.0
        %1025 = vmatpush1.msra.mxu0 %v717
        %1026 = vmatprep.subr.mxu0 0.0
        %1027 = vmatpush1.msra.mxu0 %v718
        %1028 = vmatprep.subr.mxu0 0.0
        %1029 = vmatpush1.msra.mxu0 %v719
        %1030 = vmatprep.subr.mxu0 0.0
        %1031 = vmatpush1.msra.mxu0 %v720
        %1032 = vmatprep.subr.mxu0 0.0
        %1033 = vmatpush1.msra.mxu0 %v721
        %1034 = vmatprep.subr.mxu0 0.0
        %1035 = vmatpush1.msra.mxu0 %v722
        %1036 = vmatprep.subr.mxu0 0.0
        %1037 = vmatpush1.msra.mxu0 %v723
        %1038 = vmatprep.subr.mxu0 0.0
        %1039 = vmatpush1.msra.mxu0 %v724
        %1040 = vmatprep.subr.mxu0 0.0
        %1041 = vmatpush1.msra.mxu0 %v725
        %1042 = vmatprep.subr.mxu0 0.0
        %1043 = vmatpush1.msra.mxu0 %v726
        %1044 = vmatprep.subr.mxu0 0.0
        %1045 = vmatpush1.msra.mxu0 %v727
        %1046 = vmatprep.subr.mxu0 0.0
        %1047 = vmatpush1.msra.mxu0 %v728
        %1048 = vmatprep.subr.mxu0 0.0
        %1049 = vmatpush1.msra.mxu0 %v729
        %1050 = vmatprep.subr.mxu0 0.0
        %1051 = vmatpush1.msra.mxu0 %v730
        %1052 = vmatprep.subr.mxu0 0.0
        %1053 = vmatpush1.msra.mxu0 %v731
        %1054 = vmatprep.subr.mxu0 0.0
        %1055 = vmatpush1.msra.mxu0 0.0
        %1056 = vmatprep.subr.mxu0 0.0
        %1057 = vmatpush1.msra.mxu0 0.0
        %1058 = vmatprep.subr.mxu0 0.0
        %1059 = vmatpush1.msra.mxu0 0.0
        %1060 = vmatprep.subr.mxu0 0.0
        %1061 = vmatpush1.msra.mxu0 0.0
        %1062 = vmatprep.subr.mxu0 0.0
        %1063 = vmatpush1.msra.mxu0 0.0
        %1064 = vmatprep.subr.mxu0 0.0
        %1065 = vmatpush1.msra.mxu0 0.0
        %1066 = vmatprep.subr.mxu0 0.0
        %1067 = vmatpush1.msra.mxu0 0.0
        %1068 = vmatprep.subr.mxu0 0.0
        %1069 = vmatpush1.msra.mxu0 0.0
        %1070 = vmatprep.subr.mxu0 0.0
        %1071 = vmatpush1.msra.mxu0 0.0
        %1072 = vmatprep.subr.mxu0 0.0
        %1073 = vmatpush1.msra.mxu0 0.0
        %1074 = vmatprep.subr.mxu0 0.0
        %1075 = vmatpush1.msra.mxu0 0.0
        %1076 = vmatprep.subr.mxu0 0.0
        %1077 = vmatpush1.msra.mxu0 0.0
        %1078 = vmatprep.subr.mxu0 0.0
        %1079 = vmatpush1.msra.mxu0 0.0
        %1080 = vmatprep.subr.mxu0 0.0
        %1081 = vmatpush1.msra.mxu0 0.0
        %1082 = vmatprep.subr.mxu0 0.0
        %1083 = vmatpush1.msra.mxu0 0.0
        %1084 = vmatprep.subr.mxu0 0.0
        %1085 = vmatpush1.msra.mxu0 0.0
        %1086 = vmatprep.mubr.f32.mxu0 0.0
        %1087 = vmatmul.mubr.f32.gmra.mrb[0].mxu0 %v990
        %v1088 = vpop.f32.mrb[0].mxu0
        %v1089 = vadd.f32 0.0, %v1088
        %v1090 = vpop.f32.mrb[0].mxu0
        %1091 = vmatprep.mubr.f32.mxu0 0.0
        %1092 = vmatmul.mubr.f32.gmra.mrb[0].mxu0 %v991
        %v1093 = vpop.f32.mrb[0].mxu0
        %v1094 = vadd.f32 0.0, %v1093
        %v1095 = vpop.f32.mrb[0].mxu0
        %1096 = vmatprep.mubr.f32.mxu0 0.0
        %1097 = vmatmul.mubr.f32.gmra.mrb[0].mxu0 %v992
        %v1098 = vpop.f32.mrb[0].mxu0
        %v1099 = vadd.f32 0.0, %v1098
        %v1100 = vpop.f32.mrb[0].mxu0
        %1101 = vmatprep.mubr.f32.mxu0 0.0
        %1102 = vmatmul.mubr.f32.gmra.mrb[0].mxu0 %v993
        %v1103 = vpop.f32.mrb[0].mxu0
        %v1104 = vadd.f32 0.0, %v1103
        %v1105 = vpop.f32.mrb[0].mxu0
        %1106 = vmatprep.mubr.f32.mxu0 0.0
        %1107 = vmatmul.mubr.f32.gmra.mrb[0].mxu0 %v994
        %v1108 = vpop.f32.mrb[0].mxu0
        %v1109 = vadd.f32 0.0, %v1108
        %v1110 = vpop.f32.mrb[0].mxu0
        %1111 = vmatprep.mubr.f32.mxu0 0.0
        %1112 = vmatmul.mubr.f32.gmra.mrb[0].mxu0 %v995
        %v1113 = vpop.f32.mrb[0].mxu0
        %v1114 = vadd.f32 0.0, %v1113
        %v1115 = vpop.f32.mrb[0].mxu0
        %1116 = vmatprep.mubr.f32.mxu0 0.0
        %1117 = vmatmul.mubr.f32.gmra.mrb[0].mxu0 %v996
        %v1118 = vpop.f32.mrb[0].mxu0
        %v1119 = vadd.f32 0.0, %v1118
        %v1120 = vpop.f32.mrb[0].mxu0
        %1121 = vmatprep.mubr.f32.mxu0 0.0
        %1122 = vmatmul.mubr.f32.gmra.mrb[0].mxu0 %v997
        %v1123 = vpop.f32.mrb[0].mxu0
        %v1124 = vadd.f32 0.0, %v1123
        %v1125 = vpop.f32.mrb[0].mxu0
        %1126 = vmatprep.mubr.f32.mxu0 0.0
        %1127 = vmatmul.mubr.f32.gmra.mrb[0].mxu0 %v998
        %v1128 = vpop.f32.mrb[0].mxu0
        %v1129 = vadd.f32 0.0, %v1128
        %v1130 = vpop.f32.mrb[0].mxu0
        %1131 = vmatprep.mubr.f32.mxu0 0.0
        %1132 = vmatmul.mubr.f32.gmra.mrb[0].mxu0 %v999
        %v1133 = vpop.f32.mrb[0].mxu0
        %v1134 = vadd.f32 0.0, %v1133
        %v1135 = vpop.f32.mrb[0].mxu0
        %1136 = vmatprep.mubr.f32.mxu0 0.0
        %1137 = vmatmul.mubr.f32.gmra.mrb[0].mxu0 %v1000
        %v1138 = vpop.f32.mrb[0].mxu0
        %v1139 = vadd.f32 0.0, %v1138
        %v1140 = vpop.f32.mrb[0].mxu0
        %1141 = vmatprep.mubr.f32.mxu0 0.0
        %1142 = vmatmul.mubr.f32.gmra.mrb[0].mxu0 %v1001
        %v1143 = vpop.f32.mrb[0].mxu0
        %v1144 = vadd.f32 0.0, %v1143
        %v1145 = vpop.f32.mrb[0].mxu0
        %1146 = vmatprep.mubr.f32.mxu0 0.0
        %1147 = vmatmul.mubr.f32.gmra.mrb[0].mxu0 %v1002
        %v1148 = vpop.f32.mrb[0].mxu0
        %v1149 = vadd.f32 0.0, %v1148
        %v1150 = vpop.f32.mrb[0].mxu0
        %1151 = vmatprep.mubr.f32.mxu0 0.0
        %1152 = vmatmul.mubr.f32.gmra.mrb[0].mxu0 %v1003
        %v1153 = vpop.f32.mrb[0].mxu0
        %v1154 = vadd.f32 0.0, %v1153
        %v1155 = vpop.f32.mrb[0].mxu0
        %1156 = vmatprep.mubr.f32.mxu0 0.0
        %1157 = vmatmul.mubr.f32.gmra.mrb[0].mxu0 %v1004
        %v1158 = vpop.f32.mrb[0].mxu0
        %v1159 = vadd.f32 0.0, %v1158
        %v1160 = vpop.f32.mrb[0].mxu0
        %1161 = vmatprep.mubr.f32.mxu0 0.0
        %1162 = vmatmul.mubr.f32.gmra.mrb[0].mxu0 %v1005
        %v1163 = vpop.f32.mrb[0].mxu0
        %v1164 = vadd.f32 0.0, %v1163
        %v1165 = vpop.f32.mrb[0].mxu0
        %1166 = vmatprep.mubr.f32.mxu0 0.0
        %1167 = vmatmul.mubr.f32.gmra.mrb[0].mxu0 %v1006
        %v1168 = vpop.f32.mrb[0].mxu0
        %v1169 = vadd.f32 0.0, %v1168
        %v1170 = vpop.f32.mrb[0].mxu0
        %1171 = vmatprep.mubr.f32.mxu0 0.0
        %1172 = vmatmul.mubr.f32.gmra.mrb[0].mxu0 %v1007
        %v1173 = vpop.f32.mrb[0].mxu0
        %v1174 = vadd.f32 0.0, %v1173
        %v1175 = vpop.f32.mrb[0].mxu0
        %1176 = vmatprep.mubr.f32.mxu0 0.0
        %1177 = vmatmul.mubr.f32.gmra.mrb[0].mxu0 %v1008
        %v1178 = vpop.f32.mrb[0].mxu0
        %v1179 = vadd.f32 0.0, %v1178
        %v1180 = vpop.f32.mrb[0].mxu0
        %1181 = vmatprep.mubr.f32.mxu0 0.0
        %1182 = vmatmul.mubr.f32.gmra.mrb[0].mxu0 %v1009
        %v1183 = vpop.f32.mrb[0].mxu0
        %v1184 = vadd.f32 0.0, %v1183
        %v1185 = vpop.f32.mrb[0].mxu0
        %1186 = vmatprep.mubr.f32.mxu0 0.0
        %1187 = vmatmul.mubr.f32.gmra.mrb[0].mxu0 %v1010
        %v1188 = vpop.f32.mrb[0].mxu0
        %v1189 = vadd.f32 0.0, %v1188
        %v1190 = vpop.f32.mrb[0].mxu0
        %1191 = vmatprep.mubr.f32.mxu0 0.0
        %1192 = vmatmul.mubr.f32.gmra.mrb[0].mxu0 %v1011
        %v1193 = vpop.f32.mrb[0].mxu0
        %v1194 = vadd.f32 0.0, %v1193
        %v1195 = vpop.f32.mrb[0].mxu0
        %1196 = vmatprep.mubr.f32.mxu0 0.0
        %1197 = vmatmul.mubr.f32.gmra.mrb[0].mxu0 %v1012
        %v1198 = vpop.f32.mrb[0].mxu0
        %v1199 = vadd.f32 0.0, %v1198
        %v1200 = vpop.f32.mrb[0].mxu0
        %1201 = vmatprep.mubr.f32.mxu0 0.0
        %1202 = vmatmul.mubr.f32.gmra.mrb[0].mxu0 %v1013
        %v1203 = vpop.f32.mrb[0].mxu0
        %v1204 = vadd.f32 0.0, %v1203
        %v1205 = vpop.f32.mrb[0].mxu0
        %1206 = vmatprep.mubr.f32.mxu0 0.0
        %1207 = vmatmul.mubr.f32.gmra.mrb[0].mxu0 %v1014
        %v1208 = vpop.f32.mrb[0].mxu0
        %v1209 = vadd.f32 0.0, %v1208
        %v1210 = vpop.f32.mrb[0].mxu0
        %1211 = vmatprep.mubr.f32.mxu0 0.0
        %1212 = vmatmul.mubr.f32.gmra.mrb[0].mxu0 %v1015
        %v1213 = vpop.f32.mrb[0].mxu0
        %v1214 = vadd.f32 0.0, %v1213
        %v1215 = vpop.f32.mrb[0].mxu0
        %1216 = vmatprep.mubr.f32.mxu0 0.0
        %1217 = vmatmul.mubr.f32.gmra.mrb[0].mxu0 %v1016
        %v1218 = vpop.f32.mrb[0].mxu0
        %v1219 = vadd.f32 0.0, %v1218
        %v1220 = vpop.f32.mrb[0].mxu0
        %1221 = vmatprep.mubr.f32.mxu0 0.0
        %1222 = vmatmul.mubr.f32.gmra.mrb[0].mxu0 %v1017
        %v1223 = vpop.f32.mrb[0].mxu0
        %v1224 = vadd.f32 0.0, %v1223
        %v1225 = vpop.f32.mrb[0].mxu0
        %1226 = vmatprep.mubr.f32.mxu0 0.0
        %1227 = vmatmul.mubr.f32.gmra.mrb[0].mxu0 %v1018
        %v1228 = vpop.f32.mrb[0].mxu0
        %v1229 = vadd.f32 0.0, %v1228
        %v1230 = vpop.f32.mrb[0].mxu0
        %1231 = vmatprep.mubr.f32.mxu0 0.0
        %1232 = vmatmul.mubr.f32.gmra.mrb[0].mxu0 %v1019
        %v1233 = vpop.f32.mrb[0].mxu0
        %v1234 = vadd.f32 0.0, %v1233
        %v1235 = vpop.f32.mrb[0].mxu0
        %1236 = vmatprep.mubr.f32.mxu0 0.0
        %1237 = vmatmul.mubr.f32.gmra.mrb[0].mxu0 %v1020
        %v1238 = vpop.f32.mrb[0].mxu0
        %v1239 = vadd.f32 0.0, %v1238
        %v1240 = vpop.f32.mrb[0].mxu0
        %1241 = vmatprep.mubr.f32.mxu0 0.0
        %1242 = vmatmul.mubr.f32.gmra.mrb[0].mxu0 %v1021
        %v1243 = vpop.f32.mrb[0].mxu0
        %v1244 = vadd.f32 0.0, %v1243
        %v1245 = vpop.f32.mrb[0].mxu0
        %1246 = vdwg.mxu0
        %v1247 = vmax.f32 %v831, %v1089
        %v1248 = vmax.f32 %v836, %v1094
        %v1249 = vmax.f32 %v841, %v1099
        %v1250 = vmax.f32 %v846, %v1104
        %v1251 = vmax.f32 %v851, %v1109
        %v1252 = vmax.f32 %v856, %v1114
        %v1253 = vmax.f32 %v861, %v1119
        %v1254 = vmax.f32 %v866, %v1124
        %v1255 = vmax.f32 %v871, %v1129
        %v1256 = vmax.f32 %v876, %v1134
        %v1257 = vmax.f32 %v881, %v1139
        %v1258 = vmax.f32 %v886, %v1144
        %v1259 = vmax.f32 %v891, %v1149
        %v1260 = vmax.f32 %v896, %v1154
        %v1261 = vmax.f32 %v901, %v1159
        %v1262 = vmax.f32 %v906, %v1164
        %v1263 = vmax.f32 %v911, %v1169
        %v1264 = vmax.f32 %v916, %v1174
        %v1265 = vmax.f32 %v921, %v1179
        %v1266 = vmax.f32 %v926, %v1184
        %v1267 = vmax.f32 %v931, %v1189
        %v1268 = vmax.f32 %v936, %v1194
        %v1269 = vmax.f32 %v941, %v1199
        %v1270 = vmax.f32 %v946, %v1204
        %v1271 = vmax.f32 %v951, %v1209
        %v1272 = vmax.f32 %v956, %v1214
        %v1273 = vmax.f32 %v961, %v1219
        %v1274 = vmax.f32 %v966, %v1224
        %v1275 = vmax.f32 %v971, %v1229
        %v1276 = vmax.f32 %v976, %v1234
        %v1277 = vmax.f32 %v981, %v1239
        %v1278 = vmax.f32 %v986, %v1244
        %s1279 = scalar_lea.vmem %s688, 512 [#allocation2]
        %v1280 = vld [vmem:[%s1279] sm:$0xff]
        %v1281 = vld [vmem:[%s1279 + $0x8] sm:$0xff]
        %v1282 = vld [vmem:[%s1279 + $0x10] sm:$0xff]
        %v1283 = vld [vmem:[%s1279 + $0x18] sm:$0xff]
        %v1284 = vld [vmem:[%s1279 + $0x20] sm:$0xff]
        %v1285 = vld [vmem:[%s1279 + $0x28] sm:$0xff]
        %v1286 = vld [vmem:[%s1279 + $0x30] sm:$0xff]
        %v1287 = vld [vmem:[%s1279 + $0x38] sm:$0xff]
        %v1288 = vld [vmem:[%s1279 + $0x40] sm:$0xff]
        %v1289 = vld [vmem:[%s1279 + $0x48] sm:$0xff]
        %v1290 = vld [vmem:[%s1279 + $0x50] sm:$0xff]
        %v1291 = vld [vmem:[%s1279 + $0x58] sm:$0xff]
        %v1292 = vld [vmem:[%s1279 + $0x60] sm:$0xff]
        %v1293 = vld [vmem:[%s1279 + $0x68] sm:$0xff]
        %v1294 = vld [vmem:[%s1279 + $0x70] sm:$0xff]
        %v1295 = vld [vmem:[%s1279 + $0x78] sm:$0xff]
        %v1296 = vld [vmem:[%s1279 + $0x80] sm:$0xff]
        %v1297 = vld [vmem:[%s1279 + $0x88] sm:$0xff]
        %v1298 = vld [vmem:[%s1279 + $0x90] sm:$0xff]
        %v1299 = vld [vmem:[%s1279 + $0x98] sm:$0xff]
        %v1300 = vld [vmem:[%s1279 + $0xa0] sm:$0xff]
        %v1301 = vld [vmem:[%s1279 + $0xa8] sm:$0xff]
        %v1302 = vld [vmem:[%s1279 + $0xb0] sm:$0xff]
        %v1303 = vld [vmem:[%s1279 + $0xb8] sm:$0xff]
        %v1304 = vld [vmem:[%s1279 + $0xc0] sm:$0xff]
        %v1305 = vld [vmem:[%s1279 + $0xc8] sm:$0xff]
        %v1306 = vld [vmem:[%s1279 + $0xd0] sm:$0xff]
        %v1307 = vld [vmem:[%s1279 + $0xd8] sm:$0xff]
        %v1308 = vld [vmem:[%s1279 + $0xe0] sm:$0xff]
        %v1309 = vld [vmem:[%s1279 + $0xe8] sm:$0xff]
        %v1310 = vld [vmem:[%s1279 + $0xf0] sm:$0xff]
        %v1311 = vld [vmem:[%s1279 + $0xf8] sm:$0xff]
        %1312 = vmatprep.subr.mxu0 0.0
        %1313 = vmatpush1.msra.mxu0 %v716
        %1314 = vmatprep.subr.mxu0 0.0
        %1315 = vmatpush1.msra.mxu0 %v717
        %1316 = vmatprep.subr.mxu0 0.0
        %1317 = vmatpush1.msra.mxu0 %v718
        %1318 = vmatprep.subr.mxu0 0.0
        %1319 = vmatpush1.msra.mxu0 %v719
        %1320 = vmatprep.subr.mxu0 0.0
        %1321 = vmatpush1.msra.mxu0 %v720
        %1322 = vmatprep.subr.mxu0 0.0
        %1323 = vmatpush1.msra.mxu0 %v721
        %1324 = vmatprep.subr.mxu0 0.0
        %1325 = vmatpush1.msra.mxu0 %v722
        %1326 = vmatprep.subr.mxu0 0.0
        %1327 = vmatpush1.msra.mxu0 %v723
        %1328 = vmatprep.subr.mxu0 0.0
        %1329 = vmatpush1.msra.mxu0 %v724
        %1330 = vmatprep.subr.mxu0 0.0
        %1331 = vmatpush1.msra.mxu0 %v725
        %1332 = vmatprep.subr.mxu0 0.0
        %1333 = vmatpush1.msra.mxu0 %v726
        %1334 = vmatprep.subr.mxu0 0.0
        %1335 = vmatpush1.msra.mxu0 %v727
        %1336 = vmatprep.subr.mxu0 0.0
        %1337 = vmatpush1.msra.mxu0 %v728
        %1338 = vmatprep.subr.mxu0 0.0
        %1339 = vmatpush1.msra.mxu0 %v729
        %1340 = vmatprep.subr.mxu0 0.0
        %1341 = vmatpush1.msra.mxu0 %v730
        %1342 = vmatprep.subr.mxu0 0.0
        %1343 = vmatpush1.msra.mxu0 %v731
        %1344 = vmatprep.subr.mxu0 0.0
        %1345 = vmatpush1.msra.mxu0 0.0
        %1346 = vmatprep.subr.mxu0 0.0
        %1347 = vmatpush1.msra.mxu0 0.0
        %1348 = vmatprep.subr.mxu0 0.0
        %1349 = vmatpush1.msra.mxu0 0.0
        %1350 = vmatprep.subr.mxu0 0.0
        %1351 = vmatpush1.msra.mxu0 0.0
        %1352 = vmatprep.subr.mxu0 0.0
        %1353 = vmatpush1.msra.mxu0 0.0
        %1354 = vmatprep.subr.mxu0 0.0
        %1355 = vmatpush1.msra.mxu0 0.0
        %1356 = vmatprep.subr.mxu0 0.0
        %1357 = vmatpush1.msra.mxu0 0.0
        %1358 = vmatprep.subr.mxu0 0.0
        %1359 = vmatpush1.msra.mxu0 0.0
        %1360 = vmatprep.subr.mxu0 0.0
        %1361 = vmatpush1.msra.mxu0 0.0
        %1362 = vmatprep.subr.mxu0 0.0
        %1363 = vmatpush1.msra.mxu0 0.0
        %1364 = vmatprep.subr.mxu0 0.0
        %1365 = vmatpush1.msra.mxu0 0.0
        %1366 = vmatprep.subr.mxu0 0.0
        %1367 = vmatpush1.msra.mxu0 0.0
        %1368 = vmatprep.subr.mxu0 0.0
        %1369 = vmatpush1.msra.mxu0 0.0
        %1370 = vmatprep.subr.mxu0 0.0
        %1371 = vmatpush1.msra.mxu0 0.0
        %1372 = vmatprep.subr.mxu0 0.0
        %1373 = vmatpush1.msra.mxu0 0.0
        %1374 = vmatprep.subr.mxu0 0.0
        %1375 = vmatpush1.msra.mxu0 0.0
        %1376 = vmatprep.mubr.f32.mxu0 0.0
        %1377 = vmatmul.mubr.f32.gmra.mrb[0].mxu0 %v1280
        %v1378 = vpop.f32.mrb[0].mxu0
        %v1379 = vadd.f32 0.0, %v1378
        %v1380 = vpop.f32.mrb[0].mxu0
        %1381 = vmatprep.mubr.f32.mxu0 0.0
        %1382 = vmatmul.mubr.f32.gmra.mrb[0].mxu0 %v1281
        %v1383 = vpop.f32.mrb[0].mxu0
        %v1384 = vadd.f32 0.0, %v1383
        %v1385 = vpop.f32.mrb[0].mxu0
        %1386 = vmatprep.mubr.f32.mxu0 0.0
        %1387 = vmatmul.mubr.f32.gmra.mrb[0].mxu0 %v1282
        %v1388 = vpop.f32.mrb[0].mxu0
        %v1389 = vadd.f32 0.0, %v1388
        %v1390 = vpop.f32.mrb[0].mxu0
        %1391 = vmatprep.mubr.f32.mxu0 0.0
        %1392 = vmatmul.mubr.f32.gmra.mrb[0].mxu0 %v1283
        %v1393 = vpop.f32.mrb[0].mxu0
        %v1394 = vadd.f32 0.0, %v1393
        %v1395 = vpop.f32.mrb[0].mxu0
        %1396 = vmatprep.mubr.f32.mxu0 0.0
        %1397 = vmatmul.mubr.f32.gmra.mrb[0].mxu0 %v1284
        %v1398 = vpop.f32.mrb[0].mxu0
        %v1399 = vadd.f32 0.0, %v1398
        %v1400 = vpop.f32.mrb[0].mxu0
        %1401 = vmatprep.mubr.f32.mxu0 0.0
        %1402 = vmatmul.mubr.f32.gmra.mrb[0].mxu0 %v1285
        %v1403 = vpop.f32.mrb[0].mxu0
        %v1404 = vadd.f32 0.0, %v1403
        %v1405 = vpop.f32.mrb[0].mxu0
        %1406 = vmatprep.mubr.f32.mxu0 0.0
        %1407 = vmatmul.mubr.f32.gmra.mrb[0].mxu0 %v1286
        %v1408 = vpop.f32.mrb[0].mxu0
        %v1409 = vadd.f32 0.0, %v1408
        %v1410 = vpop.f32.mrb[0].mxu0
        %1411 = vmatprep.mubr.f32.mxu0 0.0
        %1412 = vmatmul.mubr.f32.gmra.mrb[0].mxu0 %v1287
        %v1413 = vpop.f32.mrb[0].mxu0
        %v1414 = vadd.f32 0.0, %v1413
        %v1415 = vpop.f32.mrb[0].mxu0
        %1416 = vmatprep.mubr.f32.mxu0 0.0
        %1417 = vmatmul.mubr.f32.gmra.mrb[0].mxu0 %v1288
        %v1418 = vpop.f32.mrb[0].mxu0
        %v1419 = vadd.f32 0.0, %v1418
        %v1420 = vpop.f32.mrb[0].mxu0
        %1421 = vmatprep.mubr.f32.mxu0 0.0
        %1422 = vmatmul.mubr.f32.gmra.mrb[0].mxu0 %v1289
        %v1423 = vpop.f32.mrb[0].mxu0
        %v1424 = vadd.f32 0.0, %v1423
        %v1425 = vpop.f32.mrb[0].mxu0
        %1426 = vmatprep.mubr.f32.mxu0 0.0
        %1427 = vmatmul.mubr.f32.gmra.mrb[0].mxu0 %v1290
        %v1428 = vpop.f32.mrb[0].mxu0
        %v1429 = vadd.f32 0.0, %v1428
        %v1430 = vpop.f32.mrb[0].mxu0
        %1431 = vmatprep.mubr.f32.mxu0 0.0
        %1432 = vmatmul.mubr.f32.gmra.mrb[0].mxu0 %v1291
        %v1433 = vpop.f32.mrb[0].mxu0
        %v1434 = vadd.f32 0.0, %v1433
        %v1435 = vpop.f32.mrb[0].mxu0
        %1436 = vmatprep.mubr.f32.mxu0 0.0
        %1437 = vmatmul.mubr.f32.gmra.mrb[0].mxu0 %v1292
        %v1438 = vpop.f32.mrb[0].mxu0
        %v1439 = vadd.f32 0.0, %v1438
        %v1440 = vpop.f32.mrb[0].mxu0
        %1441 = vmatprep.mubr.f32.mxu0 0.0
        %1442 = vmatmul.mubr.f32.gmra.mrb[0].mxu0 %v1293
        %v1443 = vpop.f32.mrb[0].mxu0
        %v1444 = vadd.f32 0.0, %v1443
        %v1445 = vpop.f32.mrb[0].mxu0
        %1446 = vmatprep.mubr.f32.mxu0 0.0
        %1447 = vmatmul.mubr.f32.gmra.mrb[0].mxu0 %v1294
        %v1448 = vpop.f32.mrb[0].mxu0
        %v1449 = vadd.f32 0.0, %v1448
        %v1450 = vpop.f32.mrb[0].mxu0
        %1451 = vmatprep.mubr.f32.mxu0 0.0
        %1452 = vmatmul.mubr.f32.gmra.mrb[0].mxu0 %v1295
        %v1453 = vpop.f32.mrb[0].mxu0
        %v1454 = vadd.f32 0.0, %v1453
        %v1455 = vpop.f32.mrb[0].mxu0
        %1456 = vmatprep.mubr.f32.mxu0 0.0
        %1457 = vmatmul.mubr.f32.gmra.mrb[0].mxu0 %v1296
        %v1458 = vpop.f32.mrb[0].mxu0
        %v1459 = vadd.f32 0.0, %v1458
        %v1460 = vpop.f32.mrb[0].mxu0
        %1461 = vmatprep.mubr.f32.mxu0 0.0
        %1462 = vmatmul.mubr.f32.gmra.mrb[0].mxu0 %v1297
        %v1463 = vpop.f32.mrb[0].mxu0
        %v1464 = vadd.f32 0.0, %v1463
        %v1465 = vpop.f32.mrb[0].mxu0
        %1466 = vmatprep.mubr.f32.mxu0 0.0
        %1467 = vmatmul.mubr.f32.gmra.mrb[0].mxu0 %v1298
        %v1468 = vpop.f32.mrb[0].mxu0
        %v1469 = vadd.f32 0.0, %v1468
        %v1470 = vpop.f32.mrb[0].mxu0
        %1471 = vmatprep.mubr.f32.mxu0 0.0
        %1472 = vmatmul.mubr.f32.gmra.mrb[0].mxu0 %v1299
        %v1473 = vpop.f32.mrb[0].mxu0
        %v1474 = vadd.f32 0.0, %v1473
        %v1475 = vpop.f32.mrb[0].mxu0
        %1476 = vmatprep.mubr.f32.mxu0 0.0
        %1477 = vmatmul.mubr.f32.gmra.mrb[0].mxu0 %v1300
        %v1478 = vpop.f32.mrb[0].mxu0
        %v1479 = vadd.f32 0.0, %v1478
        %v1480 = vpop.f32.mrb[0].mxu0
        %1481 = vmatprep.mubr.f32.mxu0 0.0
        %1482 = vmatmul.mubr.f32.gmra.mrb[0].mxu0 %v1301
        %v1483 = vpop.f32.mrb[0].mxu0
        %v1484 = vadd.f32 0.0, %v1483
        %v1485 = vpop.f32.mrb[0].mxu0
        %1486 = vmatprep.mubr.f32.mxu0 0.0
        %1487 = vmatmul.mubr.f32.gmra.mrb[0].mxu0 %v1302
        %v1488 = vpop.f32.mrb[0].mxu0
        %v1489 = vadd.f32 0.0, %v1488
        %v1490 = vpop.f32.mrb[0].mxu0
        %1491 = vmatprep.mubr.f32.mxu0 0.0
        %1492 = vmatmul.mubr.f32.gmra.mrb[0].mxu0 %v1303
        %v1493 = vpop.f32.mrb[0].mxu0
        %v1494 = vadd.f32 0.0, %v1493
        %v1495 = vpop.f32.mrb[0].mxu0
        %1496 = vmatprep.mubr.f32.mxu0 0.0
        %1497 = vmatmul.mubr.f32.gmra.mrb[0].mxu0 %v1304
        %v1498 = vpop.f32.mrb[0].mxu0
        %v1499 = vadd.f32 0.0, %v1498
        %v1500 = vpop.f32.mrb[0].mxu0
        %1501 = vmatprep.mubr.f32.mxu0 0.0
        %1502 = vmatmul.mubr.f32.gmra.mrb[0].mxu0 %v1305
        %v1503 = vpop.f32.mrb[0].mxu0
        %v1504 = vadd.f32 0.0, %v1503
        %v1505 = vpop.f32.mrb[0].mxu0
        %1506 = vmatprep.mubr.f32.mxu0 0.0
        %1507 = vmatmul.mubr.f32.gmra.mrb[0].mxu0 %v1306
        %v1508 = vpop.f32.mrb[0].mxu0
        %v1509 = vadd.f32 0.0, %v1508
        %v1510 = vpop.f32.mrb[0].mxu0
        %1511 = vmatprep.mubr.f32.mxu0 0.0
        %1512 = vmatmul.mubr.f32.gmra.mrb[0].mxu0 %v1307
        %v1513 = vpop.f32.mrb[0].mxu0
        %v1514 = vadd.f32 0.0, %v1513
        %v1515 = vpop.f32.mrb[0].mxu0
        %1516 = vmatprep.mubr.f32.mxu0 0.0
        %1517 = vmatmul.mubr.f32.gmra.mrb[0].mxu0 %v1308
        %v1518 = vpop.f32.mrb[0].mxu0
        %v1519 = vadd.f32 0.0, %v1518
        %v1520 = vpop.f32.mrb[0].mxu0
        %1521 = vmatprep.mubr.f32.mxu0 0.0
        %1522 = vmatmul.mubr.f32.gmra.mrb[0].mxu0 %v1309
        %v1523 = vpop.f32.mrb[0].mxu0
        %v1524 = vadd.f32 0.0, %v1523
        %v1525 = vpop.f32.mrb[0].mxu0
        %1526 = vmatprep.mubr.f32.mxu0 0.0
        %1527 = vmatmul.mubr.f32.gmra.mrb[0].mxu0 %v1310
        %v1528 = vpop.f32.mrb[0].mxu0
        %v1529 = vadd.f32 0.0, %v1528
        %v1530 = vpop.f32.mrb[0].mxu0
        %1531 = vmatprep.mubr.f32.mxu0 0.0
        %1532 = vmatmul.mubr.f32.gmra.mrb[0].mxu0 %v1311
        %v1533 = vpop.f32.mrb[0].mxu0
        %v1534 = vadd.f32 0.0, %v1533
        %v1535 = vpop.f32.mrb[0].mxu0
        %1536 = vdwg.mxu0
        %v1537 = vmax.f32 %v1247, %v1379
        %v1538 = vmax.f32 %v1248, %v1384
        %v1539 = vmax.f32 %v1249, %v1389
        %v1540 = vmax.f32 %v1250, %v1394
        %v1541 = vmax.f32 %v1251, %v1399
        %v1542 = vmax.f32 %v1252, %v1404
        %v1543 = vmax.f32 %v1253, %v1409
        %v1544 = vmax.f32 %v1254, %v1414
        %v1545 = vmax.f32 %v1255, %v1419
        %v1546 = vmax.f32 %v1256, %v1424
        %v1547 = vmax.f32 %v1257, %v1429
        %v1548 = vmax.f32 %v1258, %v1434
        %v1549 = vmax.f32 %v1259, %v1439
        %v1550 = vmax.f32 %v1260, %v1444
        %v1551 = vmax.f32 %v1261, %v1449
        %v1552 = vmax.f32 %v1262, %v1454
        %v1553 = vmax.f32 %v1263, %v1459
        %v1554 = vmax.f32 %v1264, %v1464
        %v1555 = vmax.f32 %v1265, %v1469
        %v1556 = vmax.f32 %v1266, %v1474
        %v1557 = vmax.f32 %v1267, %v1479
        %v1558 = vmax.f32 %v1268, %v1484
        %v1559 = vmax.f32 %v1269, %v1489
        %v1560 = vmax.f32 %v1270, %v1494
        %v1561 = vmax.f32 %v1271, %v1499
        %v1562 = vmax.f32 %v1272, %v1504
        %v1563 = vmax.f32 %v1273, %v1509
        %v1564 = vmax.f32 %v1274, %v1514
        %v1565 = vmax.f32 %v1275, %v1519
        %v1566 = vmax.f32 %v1276, %v1524
        %v1567 = vmax.f32 %v1277, %v1529
        %v1568 = vmax.f32 %v1278, %v1534
        %s1569 = scalar_lea.vmem %s688, 768 [#allocation2]
        %v1570 = vld [vmem:[%s1569] sm:$0xff]
        %v1571 = vld [vmem:[%s1569 + $0x8] sm:$0xff]
        %v1572 = vld [vmem:[%s1569 + $0x10] sm:$0xff]
        %v1573 = vld [vmem:[%s1569 + $0x18] sm:$0xff]
        %v1574 = vld [vmem:[%s1569 + $0x20] sm:$0xff]
        %v1575 = vld [vmem:[%s1569 + $0x28] sm:$0xff]
        %v1576 = vld [vmem:[%s1569 + $0x30] sm:$0xff]
        %v1577 = vld [vmem:[%s1569 + $0x38] sm:$0xff]
        %v1578 = vld [vmem:[%s1569 + $0x40] sm:$0xff]
        %v1579 = vld [vmem:[%s1569 + $0x48] sm:$0xff]
        %v1580 = vld [vmem:[%s1569 + $0x50] sm:$0xff]
        %v1581 = vld [vmem:[%s1569 + $0x58] sm:$0xff]
        %v1582 = vld [vmem:[%s1569 + $0x60] sm:$0xff]
        %v1583 = vld [vmem:[%s1569 + $0x68] sm:$0xff]
        %v1584 = vld [vmem:[%s1569 + $0x70] sm:$0xff]
        %v1585 = vld [vmem:[%s1569 + $0x78] sm:$0xff]
        %v1586 = vld [vmem:[%s1569 + $0x80] sm:$0xff]
        %v1587 = vld [vmem:[%s1569 + $0x88] sm:$0xff]
        %v1588 = vld [vmem:[%s1569 + $0x90] sm:$0xff]
        %v1589 = vld [vmem:[%s1569 + $0x98] sm:$0xff]
        %v1590 = vld [vmem:[%s1569 + $0xa0] sm:$0xff]
        %v1591 = vld [vmem:[%s1569 + $0xa8] sm:$0xff]
        %v1592 = vld [vmem:[%s1569 + $0xb0] sm:$0xff]
        %v1593 = vld [vmem:[%s1569 + $0xb8] sm:$0xff]
        %v1594 = vld [vmem:[%s1569 + $0xc0] sm:$0xff]
        %v1595 = vld [vmem:[%s1569 + $0xc8] sm:$0xff]
        %v1596 = vld [vmem:[%s1569 + $0xd0] sm:$0xff]
        %v1597 = vld [vmem:[%s1569 + $0xd8] sm:$0xff]
        %v1598 = vld [vmem:[%s1569 + $0xe0] sm:$0xff]
        %v1599 = vld [vmem:[%s1569 + $0xe8] sm:$0xff]
        %v1600 = vld [vmem:[%s1569 + $0xf0] sm:$0xff]
        %v1601 = vld [vmem:[%s1569 + $0xf8] sm:$0xff]
        %1602 = vmatprep.subr.mxu0 0.0
        %1603 = vmatpush1.msra.mxu0 %v716
        %1604 = vmatprep.subr.mxu0 0.0
        %1605 = vmatpush1.msra.mxu0 %v717
        %1606 = vmatprep.subr.mxu0 0.0
        %1607 = vmatpush1.msra.mxu0 %v718
        %1608 = vmatprep.subr.mxu0 0.0
        %1609 = vmatpush1.msra.mxu0 %v719
        %1610 = vmatprep.subr.mxu0 0.0
        %1611 = vmatpush1.msra.mxu0 %v720
        %1612 = vmatprep.subr.mxu0 0.0
        %1613 = vmatpush1.msra.mxu0 %v721
        %1614 = vmatprep.subr.mxu0 0.0
        %1615 = vmatpush1.msra.mxu0 %v722
        %1616 = vmatprep.subr.mxu0 0.0
        %1617 = vmatpush1.msra.mxu0 %v723
        %1618 = vmatprep.subr.mxu0 0.0
        %1619 = vmatpush1.msra.mxu0 %v724
        %1620 = vmatprep.subr.mxu0 0.0
        %1621 = vmatpush1.msra.mxu0 %v725
        %1622 = vmatprep.subr.mxu0 0.0
        %1623 = vmatpush1.msra.mxu0 %v726
        %1624 = vmatprep.subr.mxu0 0.0
        %1625 = vmatpush1.msra.mxu0 %v727
        %1626 = vmatprep.subr.mxu0 0.0
        %1627 = vmatpush1.msra.mxu0 %v728
        %1628 = vmatprep.subr.mxu0 0.0
        %1629 = vmatpush1.msra.mxu0 %v729
        %1630 = vmatprep.subr.mxu0 0.0
        %1631 = vmatpush1.msra.mxu0 %v730
        %1632 = vmatprep.subr.mxu0 0.0
        %1633 = vmatpush1.msra.mxu0 %v731
        %1634 = vmatprep.subr.mxu0 0.0
        %1635 = vmatpush1.msra.mxu0 0.0
        %1636 = vmatprep.subr.mxu0 0.0
        %1637 = vmatpush1.msra.mxu0 0.0
        %1638 = vmatprep.subr.mxu0 0.0
        %1639 = vmatpush1.msra.mxu0 0.0
        %1640 = vmatprep.subr.mxu0 0.0
        %1641 = vmatpush1.msra.mxu0 0.0
        %1642 = vmatprep.subr.mxu0 0.0
        %1643 = vmatpush1.msra.mxu0 0.0
        %1644 = vmatprep.subr.mxu0 0.0
        %1645 = vmatpush1.msra.mxu0 0.0
        %1646 = vmatprep.subr.mxu0 0.0
        %1647 = vmatpush1.msra.mxu0 0.0
        %1648 = vmatprep.subr.mxu0 0.0
        %1649 = vmatpush1.msra.mxu0 0.0
        %1650 = vmatprep.subr.mxu0 0.0
        %1651 = vmatpush1.msra.mxu0 0.0
        %1652 = vmatprep.subr.mxu0 0.0
        %1653 = vmatpush1.msra.mxu0 0.0
        %1654 = vmatprep.subr.mxu0 0.0
        %1655 = vmatpush1.msra.mxu0 0.0
        %1656 = vmatprep.subr.mxu0 0.0
        %1657 = vmatpush1.msra.mxu0 0.0
        %1658 = vmatprep.subr.mxu0 0.0
        %1659 = vmatpush1.msra.mxu0 0.0
        %1660 = vmatprep.subr.mxu0 0.0
        %1661 = vmatpush1.msra.mxu0 0.0
        %1662 = vmatprep.subr.mxu0 0.0
        %1663 = vmatpush1.msra.mxu0 0.0
        %1664 = vmatprep.subr.mxu0 0.0
        %1665 = vmatpush1.msra.mxu0 0.0
        %1666 = vmatprep.mubr.f32.mxu0 0.0
        %1667 = vmatmul.mubr.f32.gmra.mrb[0].mxu0 %v1570
        %v1668 = vpop.f32.mrb[0].mxu0
        %v1669 = vadd.f32 0.0, %v1668
        %v1670 = vpop.f32.mrb[0].mxu0
        %1671 = vmatprep.mubr.f32.mxu0 0.0
        %1672 = vmatmul.mubr.f32.gmra.mrb[0].mxu0 %v1571
        %v1673 = vpop.f32.mrb[0].mxu0
        %v1674 = vadd.f32 0.0, %v1673
        %v1675 = vpop.f32.mrb[0].mxu0
        %1676 = vmatprep.mubr.f32.mxu0 0.0
        %1677 = vmatmul.mubr.f32.gmra.mrb[0].mxu0 %v1572
        %v1678 = vpop.f32.mrb[0].mxu0
        %v1679 = vadd.f32 0.0, %v1678
        %v1680 = vpop.f32.mrb[0].mxu0
        %1681 = vmatprep.mubr.f32.mxu0 0.0
        %1682 = vmatmul.mubr.f32.gmra.mrb[0].mxu0 %v1573
        %v1683 = vpop.f32.mrb[0].mxu0
        %v1684 = vadd.f32 0.0, %v1683
        %v1685 = vpop.f32.mrb[0].mxu0
        %1686 = vmatprep.mubr.f32.mxu0 0.0
        %1687 = vmatmul.mubr.f32.gmra.mrb[0].mxu0 %v1574
        %v1688 = vpop.f32.mrb[0].mxu0
        %v1689 = vadd.f32 0.0, %v1688
        %v1690 = vpop.f32.mrb[0].mxu0
        %1691 = vmatprep.mubr.f32.mxu0 0.0
        %1692 = vmatmul.mubr.f32.gmra.mrb[0].mxu0 %v1575
        %v1693 = vpop.f32.mrb[0].mxu0
        %v1694 = vadd.f32 0.0, %v1693
        %v1695 = vpop.f32.mrb[0].mxu0
        %1696 = vmatprep.mubr.f32.mxu0 0.0
        %1697 = vmatmul.mubr.f32.gmra.mrb[0].mxu0 %v1576
        %v1698 = vpop.f32.mrb[0].mxu0
        %v1699 = vadd.f32 0.0, %v1698
        %v1700 = vpop.f32.mrb[0].mxu0
        %1701 = vmatprep.mubr.f32.mxu0 0.0
        %1702 = vmatmul.mubr.f32.gmra.mrb[0].mxu0 %v1577
        %v1703 = vpop.f32.mrb[0].mxu0
        %v1704 = vadd.f32 0.0, %v1703
        %v1705 = vpop.f32.mrb[0].mxu0
        %1706 = vmatprep.mubr.f32.mxu0 0.0
        %1707 = vmatmul.mubr.f32.gmra.mrb[0].mxu0 %v1578
        %v1708 = vpop.f32.mrb[0].mxu0
        %v1709 = vadd.f32 0.0, %v1708
        %v1710 = vpop.f32.mrb[0].mxu0
        %1711 = vmatprep.mubr.f32.mxu0 0.0
        %1712 = vmatmul.mubr.f32.gmra.mrb[0].mxu0 %v1579
        %v1713 = vpop.f32.mrb[0].mxu0
        %v1714 = vadd.f32 0.0, %v1713
        %v1715 = vpop.f32.mrb[0].mxu0
        %1716 = vmatprep.mubr.f32.mxu0 0.0
        %1717 = vmatmul.mubr.f32.gmra.mrb[0].mxu0 %v1580
        %v1718 = vpop.f32.mrb[0].mxu0
        %v1719 = vadd.f32 0.0, %v1718
        %v1720 = vpop.f32.mrb[0].mxu0
        %1721 = vmatprep.mubr.f32.mxu0 0.0
        %1722 = vmatmul.mubr.f32.gmra.mrb[0].mxu0 %v1581
        %v1723 = vpop.f32.mrb[0].mxu0
        %v1724 = vadd.f32 0.0, %v1723
        %v1725 = vpop.f32.mrb[0].mxu0
        %1726 = vmatprep.mubr.f32.mxu0 0.0
        %1727 = vmatmul.mubr.f32.gmra.mrb[0].mxu0 %v1582
        %v1728 = vpop.f32.mrb[0].mxu0
        %v1729 = vadd.f32 0.0, %v1728
        %v1730 = vpop.f32.mrb[0].mxu0
        %1731 = vmatprep.mubr.f32.mxu0 0.0
        %1732 = vmatmul.mubr.f32.gmra.mrb[0].mxu0 %v1583
        %v1733 = vpop.f32.mrb[0].mxu0
        %v1734 = vadd.f32 0.0, %v1733
        %v1735 = vpop.f32.mrb[0].mxu0
        %1736 = vmatprep.mubr.f32.mxu0 0.0
        %1737 = vmatmul.mubr.f32.gmra.mrb[0].mxu0 %v1584
        %v1738 = vpop.f32.mrb[0].mxu0
        %v1739 = vadd.f32 0.0, %v1738
        %v1740 = vpop.f32.mrb[0].mxu0
        %1741 = vmatprep.mubr.f32.mxu0 0.0
        %1742 = vmatmul.mubr.f32.gmra.mrb[0].mxu0 %v1585
        %v1743 = vpop.f32.mrb[0].mxu0
        %v1744 = vadd.f32 0.0, %v1743
        %v1745 = vpop.f32.mrb[0].mxu0
        %1746 = vmatprep.mubr.f32.mxu0 0.0
        %1747 = vmatmul.mubr.f32.gmra.mrb[0].mxu0 %v1586
        %v1748 = vpop.f32.mrb[0].mxu0
        %v1749 = vadd.f32 0.0, %v1748
        %v1750 = vpop.f32.mrb[0].mxu0
        %1751 = vmatprep.mubr.f32.mxu0 0.0
        %1752 = vmatmul.mubr.f32.gmra.mrb[0].mxu0 %v1587
        %v1753 = vpop.f32.mrb[0].mxu0
        %v1754 = vadd.f32 0.0, %v1753
        %v1755 = vpop.f32.mrb[0].mxu0
        %1756 = vmatprep.mubr.f32.mxu0 0.0
        %1757 = vmatmul.mubr.f32.gmra.mrb[0].mxu0 %v1588
        %v1758 = vpop.f32.mrb[0].mxu0
        %v1759 = vadd.f32 0.0, %v1758
        %v1760 = vpop.f32.mrb[0].mxu0
        %1761 = vmatprep.mubr.f32.mxu0 0.0
        %1762 = vmatmul.mubr.f32.gmra.mrb[0].mxu0 %v1589
        %v1763 = vpop.f32.mrb[0].mxu0
        %v1764 = vadd.f32 0.0, %v1763
        %v1765 = vpop.f32.mrb[0].mxu0
        %1766 = vmatprep.mubr.f32.mxu0 0.0
        %1767 = vmatmul.mubr.f32.gmra.mrb[0].mxu0 %v1590
        %v1768 = vpop.f32.mrb[0].mxu0
        %v1769 = vadd.f32 0.0, %v1768
        %v1770 = vpop.f32.mrb[0].mxu0
        %1771 = vmatprep.mubr.f32.mxu0 0.0
        %1772 = vmatmul.mubr.f32.gmra.mrb[0].mxu0 %v1591
        %v1773 = vpop.f32.mrb[0].mxu0
        %v1774 = vadd.f32 0.0, %v1773
        %v1775 = vpop.f32.mrb[0].mxu0
        %1776 = vmatprep.mubr.f32.mxu0 0.0
        %1777 = vmatmul.mubr.f32.gmra.mrb[0].mxu0 %v1592
        %v1778 = vpop.f32.mrb[0].mxu0
        %v1779 = vadd.f32 0.0, %v1778
        %v1780 = vpop.f32.mrb[0].mxu0
        %1781 = vmatprep.mubr.f32.mxu0 0.0
        %1782 = vmatmul.mubr.f32.gmra.mrb[0].mxu0 %v1593
        %v1783 = vpop.f32.mrb[0].mxu0
        %v1784 = vadd.f32 0.0, %v1783
        %v1785 = vpop.f32.mrb[0].mxu0
        %1786 = vmatprep.mubr.f32.mxu0 0.0
        %1787 = vmatmul.mubr.f32.gmra.mrb[0].mxu0 %v1594
        %v1788 = vpop.f32.mrb[0].mxu0
        %v1789 = vadd.f32 0.0, %v1788
        %v1790 = vpop.f32.mrb[0].mxu0
        %1791 = vmatprep.mubr.f32.mxu0 0.0
        %1792 = vmatmul.mubr.f32.gmra.mrb[0].mxu0 %v1595
        %v1793 = vpop.f32.mrb[0].mxu0
        %v1794 = vadd.f32 0.0, %v1793
        %v1795 = vpop.f32.mrb[0].mxu0
        %1796 = vmatprep.mubr.f32.mxu0 0.0
        %1797 = vmatmul.mubr.f32.gmra.mrb[0].mxu0 %v1596
        %v1798 = vpop.f32.mrb[0].mxu0
        %v1799 = vadd.f32 0.0, %v1798
        %v1800 = vpop.f32.mrb[0].mxu0
        %1801 = vmatprep.mubr.f32.mxu0 0.0
        %1802 = vmatmul.mubr.f32.gmra.mrb[0].mxu0 %v1597
        %v1803 = vpop.f32.mrb[0].mxu0
        %v1804 = vadd.f32 0.0, %v1803
        %v1805 = vpop.f32.mrb[0].mxu0
        %1806 = vmatprep.mubr.f32.mxu0 0.0
        %1807 = vmatmul.mubr.f32.gmra.mrb[0].mxu0 %v1598
        %v1808 = vpop.f32.mrb[0].mxu0
        %v1809 = vadd.f32 0.0, %v1808
        %v1810 = vpop.f32.mrb[0].mxu0
        %1811 = vmatprep.mubr.f32.mxu0 0.0
        %1812 = vmatmul.mubr.f32.gmra.mrb[0].mxu0 %v1599
        %v1813 = vpop.f32.mrb[0].mxu0
        %v1814 = vadd.f32 0.0, %v1813
        %v1815 = vpop.f32.mrb[0].mxu0
        %1816 = vmatprep.mubr.f32.mxu0 0.0
        %1817 = vmatmul.mubr.f32.gmra.mrb[0].mxu0 %v1600
        %v1818 = vpop.f32.mrb[0].mxu0
        %v1819 = vadd.f32 0.0, %v1818
        %v1820 = vpop.f32.mrb[0].mxu0
        %1821 = vmatprep.mubr.f32.mxu0 0.0
        %1822 = vmatmul.mubr.f32.gmra.mrb[0].mxu0 %v1601
        %v1823 = vpop.f32.mrb[0].mxu0
        %v1824 = vadd.f32 0.0, %v1823
        %v1825 = vpop.f32.mrb[0].mxu0
        %1826 = vdwg.mxu0
        %v1827 = vmax.f32 %v1537, %v1669
        %v1828 = vmax.f32 %v1538, %v1674
        %v1829 = vmax.f32 %v1539, %v1679
        %v1830 = vmax.f32 %v1540, %v1684
        %v1831 = vmax.f32 %v1541, %v1689
        %v1832 = vmax.f32 %v1542, %v1694
        %v1833 = vmax.f32 %v1543, %v1699
        %v1834 = vmax.f32 %v1544, %v1704
        %v1835 = vmax.f32 %v1545, %v1709
        %v1836 = vmax.f32 %v1546, %v1714
        %v1837 = vmax.f32 %v1547, %v1719
        %v1838 = vmax.f32 %v1548, %v1724
        %v1839 = vmax.f32 %v1549, %v1729
        %v1840 = vmax.f32 %v1550, %v1734
        %v1841 = vmax.f32 %v1551, %v1739
        %v1842 = vmax.f32 %v1552, %v1744
        %v1843 = vmax.f32 %v1553, %v1749
        %v1844 = vmax.f32 %v1554, %v1754
        %v1845 = vmax.f32 %v1555, %v1759
        %v1846 = vmax.f32 %v1556, %v1764
        %v1847 = vmax.f32 %v1557, %v1769
        %v1848 = vmax.f32 %v1558, %v1774
        %v1849 = vmax.f32 %v1559, %v1779
        %v1850 = vmax.f32 %v1560, %v1784
        %v1851 = vmax.f32 %v1561, %v1789
        %v1852 = vmax.f32 %v1562, %v1794
        %v1853 = vmax.f32 %v1563, %v1799
        %v1854 = vmax.f32 %v1564, %v1804
        %v1855 = vmax.f32 %v1565, %v1809
        %v1856 = vmax.f32 %v1566, %v1814
        %v1857 = vmax.f32 %v1567, %v1819
        %v1858 = vmax.f32 %v1568, %v1824
        %v1859 = vld [vmem:[%s2] sm:$0x1]
        %v1861 = vlaneseq
        %v1862 = vshrl.u32 %v1861, 7
        %v1863 = vsub.s32 0, %v1862
        %v1864 = vrot.slane %v1859, %v1863
        %v1866 = vadd.f32 %v1827, %v1864
        %v1867 = vadd.f32 %v1828, %v1864
        %v1868 = vadd.f32 %v1829, %v1864
        %v1869 = vadd.f32 %v1830, %v1864
        %v1870 = vadd.f32 %v1831, %v1864
        %v1871 = vadd.f32 %v1832, %v1864
        %v1872 = vadd.f32 %v1833, %v1864
        %v1873 = vadd.f32 %v1834, %v1864
        %v1874 = vadd.f32 %v1835, %v1864
        %v1875 = vadd.f32 %v1836, %v1864
        %v1876 = vadd.f32 %v1837, %v1864
        %v1877 = vadd.f32 %v1838, %v1864
        %v1878 = vadd.f32 %v1839, %v1864
        %v1879 = vadd.f32 %v1840, %v1864
        %v1880 = vadd.f32 %v1841, %v1864
        %v1881 = vadd.f32 %v1842, %v1864
        %v1882 = vadd.f32 %v1843, %v1864
        %v1883 = vadd.f32 %v1844, %v1864
        %v1884 = vadd.f32 %v1845, %v1864
        %v1885 = vadd.f32 %v1846, %v1864
        %v1886 = vadd.f32 %v1847, %v1864
        %v1887 = vadd.f32 %v1848, %v1864
        %v1888 = vadd.f32 %v1849, %v1864
        %v1889 = vadd.f32 %v1850, %v1864
        %v1890 = vadd.f32 %v1851, %v1864
        %v1891 = vadd.f32 %v1852, %v1864
        %v1892 = vadd.f32 %v1853, %v1864
        %v1893 = vadd.f32 %v1854, %v1864
        %v1894 = vadd.f32 %v1855, %v1864
        %v1895 = vadd.f32 %v1856, %v1864
        %v1896 = vadd.f32 %v1857, %v1864
        %v1897 = vadd.f32 %v1858, %v1864
        %v1898 = vmax.f32 %v1866, 0.0
        %v1899 = vmax.f32 %v1867, 0.0
        %v1900 = vmax.f32 %v1868, 0.0
        %v1901 = vmax.f32 %v1869, 0.0
        %v1902 = vmax.f32 %v1870, 0.0
        %v1903 = vmax.f32 %v1871, 0.0
        %v1904 = vmax.f32 %v1872, 0.0
        %v1905 = vmax.f32 %v1873, 0.0
        %v1906 = vmax.f32 %v1874, 0.0
        %v1907 = vmax.f32 %v1875, 0.0
        %v1908 = vmax.f32 %v1876, 0.0
        %v1909 = vmax.f32 %v1877, 0.0
        %v1910 = vmax.f32 %v1878, 0.0
        %v1911 = vmax.f32 %v1879, 0.0
        %v1912 = vmax.f32 %v1880, 0.0
        %v1913 = vmax.f32 %v1881, 0.0
        %v1914 = vmax.f32 %v1882, 0.0
        %v1915 = vmax.f32 %v1883, 0.0
        %v1916 = vmax.f32 %v1884, 0.0
        %v1917 = vmax.f32 %v1885, 0.0
        %v1918 = vmax.f32 %v1886, 0.0
        %v1919 = vmax.f32 %v1887, 0.0
        %v1920 = vmax.f32 %v1888, 0.0
        %v1921 = vmax.f32 %v1889, 0.0
        %v1922 = vmax.f32 %v1890, 0.0
        %v1923 = vmax.f32 %v1891, 0.0
        %v1924 = vmax.f32 %v1892, 0.0
        %v1925 = vmax.f32 %v1893, 0.0
        %v1926 = vmax.f32 %v1894, 0.0
        %v1927 = vmax.f32 %v1895, 0.0
        %v1928 = vmax.f32 %v1896, 0.0
        %v1929 = vmax.f32 %v1897, 0.0
        %1930 = vst [vmem:[%s714] sm:$0xff] %v1898
        %1931 = vst [vmem:[%s714 + $0x8] sm:$0xff] %v1899
        %1932 = vst [vmem:[%s714 + $0x10] sm:$0xff] %v1900
        %1933 = vst [vmem:[%s714 + $0x18] sm:$0xff] %v1901
        %1934 = vst [vmem:[%s714 + $0x20] sm:$0xff] %v1902
        %1935 = vst [vmem:[%s714 + $0x28] sm:$0xff] %v1903
        %1936 = vst [vmem:[%s714 + $0x30] sm:$0xff] %v1904
        %1937 = vst [vmem:[%s714 + $0x38] sm:$0xff] %v1905
        %1938 = vst [vmem:[%s714 + $0x40] sm:$0xff] %v1906
        %1939 = vst [vmem:[%s714 + $0x48] sm:$0xff] %v1907
        %1940 = vst [vmem:[%s714 + $0x50] sm:$0xff] %v1908
        %1941 = vst [vmem:[%s714 + $0x58] sm:$0xff] %v1909
        %1942 = vst [vmem:[%s714 + $0x60] sm:$0xff] %v1910
        %1943 = vst [vmem:[%s714 + $0x68] sm:$0xff] %v1911
        %1944 = vst [vmem:[%s714 + $0x70] sm:$0xff] %v1912
        %1945 = vst [vmem:[%s714 + $0x78] sm:$0xff] %v1913
        %1946 = vst [vmem:[%s714 + $0x80] sm:$0xff] %v1914
        %1947 = vst [vmem:[%s714 + $0x88] sm:$0xff] %v1915
        %1948 = vst [vmem:[%s714 + $0x90] sm:$0xff] %v1916
        %1949 = vst [vmem:[%s714 + $0x98] sm:$0xff] %v1917
        %1950 = vst [vmem:[%s714 + $0xa0] sm:$0xff] %v1918
        %1951 = vst [vmem:[%s714 + $0xa8] sm:$0xff] %v1919
        %1952 = vst [vmem:[%s714 + $0xb0] sm:$0xff] %v1920
        %1953 = vst [vmem:[%s714 + $0xb8] sm:$0xff] %v1921
        %1954 = vst [vmem:[%s714 + $0xc0] sm:$0xff] %v1922
        %1955 = vst [vmem:[%s714 + $0xc8] sm:$0xff] %v1923
        %1956 = vst [vmem:[%s714 + $0xd0] sm:$0xff] %v1924
        %1957 = vst [vmem:[%s714 + $0xd8] sm:$0xff] %v1925
        %1958 = vst [vmem:[%s714 + $0xe0] sm:$0xff] %v1926
        %1959 = vst [vmem:[%s714 + $0xe8] sm:$0xff] %v1927
        %1960 = vst [vmem:[%s714 + $0xf0] sm:$0xff] %v1928
        %1961 = vst [vmem:[%s714 + $0xf8] sm:$0xff] %v1929
        %s1962 = smul.u32 32, %s14
        %p1963 = scmp.lt.s32.totalorder %s1962, 63
        %s1964 = scalar_select %p1963, %s1962, 63
        %s1965 = smul.addr %s1964, 8
        %s1966 = scalar_lea.vmem %s3, %s1965
        // Predicated region
        $region71: #{net_forward.3} parent=65 // pred_check
          %p1967 = pneg %p100
        $region72: #{net_forward.3} parent=65 // pred_check_branch
          %1969 = sbr.rel (%p1967) target = $region74
        $region73: #{net_forward.3} parent=65 // pred_region
          %s1970 = smul.u32 32, %s14
        $region74: #{net_forward.3} parent=65 // pred_fallthru
          _
      $region66: #{net_forward.3} parent=5 // pred_fallthru
        _
      %p1971 = scmp.le.s32.totalorder 2, %s9
      // Predicated region
      $region75: #{net_forward.3} parent=5 // pred_check
        %p1972 = pneg %p1971
      $region76: #{net_forward.3} parent=5 // pred_check_branch
        %1974 = sbr.rel (%p1972) target = $region78
      $region77: #{net_forward.3} parent=5 // pred_region
        %s1975 = ssub.s32 %s9, 2
        // Predicated region
        $region79: #{net_forward.3} parent=77 // pred_check
          %p1976 = pneg %p106
        $region80: #{net_forward.3} parent=77 // pred_check_branch
          %1978 = sbr.rel (%p1976) target = $region82
        $region81: #{net_forward.3} parent=77 // pred_region
          %s1979 = smul.u32 32, %s15
          %p1980 = scmp.lt.s32.totalorder %s1979, 63
          %s1981 = scalar_select %p1980, %s1979, 63
          %s1982 = smul.addr %s1981, 8
          %s1983 = scalar_lea.vmem %s3, %s1982
        $region82: #{net_forward.3} parent=77 // pred_fallthru
          _
      $region78: #{net_forward.3} parent=5 // pred_fallthru
        _
    $region6: #{net_forward.3} parent=1 // loop_footer
      %s13 = sadd.s32 1, %s9
    $region7: #{net_forward.3} parent=1 // loop_footer_branch
      %8 = sbr.rel target = $region3
    $region8: #{net_forward.3} parent=1 // loop_exit
      _

// kernel: net_forward.4
$region0: #{net_forward.4}
  #allocation0 [shape = 'u32[]', space=smem, size = 0x4, offset = 0x4, fixed_abs, tag = 'smem constant byte address 0x4 - core index']
  #allocation1 [shape = 'u32[144,128]{1,0:T(1,128)}', space=vmem, size = 0x12000, scoped, tag = 'internal scratch']
  %s0 = inlined_call_operand.vmem [shape: f32[4,56,256], index: 0, kind: input, shape index: {}]
  %s1 = inlined_call_operand.vmem [shape: f32[256,128], index: 1, kind: input, shape index: {}]
  %s2 = inlined_call_operand.vmem [shape: f32[1,128], index: 2, kind: input, shape index: {}]
  %s3 = inlined_call_operand.vmem [shape: f32[56,128], index: 3, kind: output, shape index: {}]
  %s4 = sld [smem:[#allocation0]]
  $region22: #{net_forward.4} parent=0
    _
  %s6 = ssub.s32 1, %s4
  %s7 = scalar_select 0, %s6, %s4
  // Predicated region
  $region2: #{net_forward.4} parent=0 // pred_check
    _
  $region3: #{net_forward.4} parent=0 // pred_check_branch
    %9 = sbr.rel (0) target = $region5
  $region4: #{net_forward.4} parent=0 // pred_region
    _
  $region5: #{net_forward.4} parent=0 // pred_fallthru
    _
  // Predicated region
  $region6: #{net_forward.4} parent=0 // pred_check
    _
  $region7: #{net_forward.4} parent=0 // pred_check_branch
    %11 = sbr.rel (0) target = $region9
  $region8: #{net_forward.4} parent=0 // pred_region
    _
  $region9: #{net_forward.4} parent=0 // pred_fallthru
    _
  // Predicated region
  $region10: #{net_forward.4} parent=0 // pred_check
    _
  $region11: #{net_forward.4} parent=0 // pred_check_branch
    %13 = sbr.rel (0) target = $region13
  $region12: #{net_forward.4} parent=0 // pred_region
    _
  $region13: #{net_forward.4} parent=0 // pred_fallthru
    _
  %v14 = vld [vmem:[%s1] sm:$0xff]
  %v15 = vld [vmem:[%s1 + $0x8] sm:$0xff]
  %v16 = vld [vmem:[%s1 + $0x10] sm:$0xff]
  %v17 = vld [vmem:[%s1 + $0x18] sm:$0xff]
  %v18 = vld [vmem:[%s1 + $0x20] sm:$0xff]
  %v19 = vld [vmem:[%s1 + $0x28] sm:$0xff]
  %v20 = vld [vmem:[%s1 + $0x30] sm:$0xff]
  %v21 = vld [vmem:[%s1 + $0x38] sm:$0xff]
  %v22 = vld [vmem:[%s1 + $0x40] sm:$0xff]
  %v23 = vld [vmem:[%s1 + $0x48] sm:$0xff]
  %v24 = vld [vmem:[%s1 + $0x50] sm:$0xff]
  %v25 = vld [vmem:[%s1 + $0x58] sm:$0xff]
  %v26 = vld [vmem:[%s1 + $0x60] sm:$0xff]
  %v27 = vld [vmem:[%s1 + $0x68] sm:$0xff]
  %v28 = vld [vmem:[%s1 + $0x70] sm:$0xff]
  %v29 = vld [vmem:[%s1 + $0x78] sm:$0xff]
  %v30 = vld [vmem:[%s1 + $0x80] sm:$0xff]
  %v31 = vld [vmem:[%s1 + $0x88] sm:$0xff]
  %v32 = vld [vmem:[%s1 + $0x90] sm:$0xff]
  %v33 = vld [vmem:[%s1 + $0x98] sm:$0xff]
  %v34 = vld [vmem:[%s1 + $0xa0] sm:$0xff]
  %v35 = vld [vmem:[%s1 + $0xa8] sm:$0xff]
  %v36 = vld [vmem:[%s1 + $0xb0] sm:$0xff]
  %v37 = vld [vmem:[%s1 + $0xb8] sm:$0xff]
  %v38 = vld [vmem:[%s1 + $0xc0] sm:$0xff]
  %v39 = vld [vmem:[%s1 + $0xc8] sm:$0xff]
  %v40 = vld [vmem:[%s1 + $0xd0] sm:$0xff]
  %v41 = vld [vmem:[%s1 + $0xd8] sm:$0xff]
  %v42 = vld [vmem:[%s1 + $0xe0] sm:$0xff]
  %v43 = vld [vmem:[%s1 + $0xe8] sm:$0xff]
  %v44 = vld [vmem:[%s1 + $0xf0] sm:$0xff]
  %v45 = vld [vmem:[%s1 + $0xf8] sm:$0xff]
  %v46 = vld [vmem:[%s0] sm:$0xff]
  %v47 = vld [vmem:[%s0 + $0x8] sm:$0xff]
  %v48 = vld [vmem:[%s0 + $0x10] sm:$0xff]
  %v49 = vld [vmem:[%s0 + $0x18] sm:$0xff]
  %v50 = vld [vmem:[%s0 + $0x20] sm:$0xff]
  %v51 = vld [vmem:[%s0 + $0x28] sm:$0xff]
  %v52 = vld [vmem:[%s0 + $0x30] sm:$0xff]
  %v53 = vld [vmem:[%s0 + $0x38] sm:$0xff]
  %v54 = vld [vmem:[%s0 + $0x40] sm:$0xff]
  %v55 = vld [vmem:[%s0 + $0x48] sm:$0xff]
  %v56 = vld [vmem:[%s0 + $0x50] sm:$0xff]
  %v57 = vld [vmem:[%s0 + $0x58] sm:$0xff]
  %v58 = vld [vmem:[%s0 + $0x60] sm:$0xff]
  %v59 = vld [vmem:[%s0 + $0x68] sm:$0xff]
  %60 = vmatprep.subr.mxu0 0.0
  %61 = vmatpush1.msra.mxu0 %v14
  %62 = vmatprep.subr.mxu0 0.0
  %63 = vmatpush1.msra.mxu0 %v15
  %64 = vmatprep.subr.mxu0 0.0
  %65 = vmatpush1.msra.mxu0 %v16
  %66 = vmatprep.subr.mxu0 0.0
  %67 = vmatpush1.msra.mxu0 %v17
  %68 = vmatprep.subr.mxu0 0.0
  %69 = vmatpush1.msra.mxu0 %v18
  %70 = vmatprep.subr.mxu0 0.0
  %71 = vmatpush1.msra.mxu0 %v19
  %72 = vmatprep.subr.mxu0 0.0
  %73 = vmatpush1.msra.mxu0 %v20
  %74 = vmatprep.subr.mxu0 0.0
  %75 = vmatpush1.msra.mxu0 %v21
  %76 = vmatprep.subr.mxu0 0.0
  %77 = vmatpush1.msra.mxu0 %v22
  %78 = vmatprep.subr.mxu0 0.0
  %79 = vmatpush1.msra.mxu0 %v23
  %80 = vmatprep.subr.mxu0 0.0
  %81 = vmatpush1.msra.mxu0 %v24
  %82 = vmatprep.subr.mxu0 0.0
  %83 = vmatpush1.msra.mxu0 %v25
  %84 = vmatprep.subr.mxu0 0.0
  %85 = vmatpush1.msra.mxu0 %v26
  %86 = vmatprep.subr.mxu0 0.0
  %87 = vmatpush1.msra.mxu0 %v27
  %88 = vmatprep.subr.mxu0 0.0
  %89 = vmatpush1.msra.mxu0 %v28
  %90 = vmatprep.subr.mxu0 0.0
  %91 = vmatpush1.msra.mxu0 %v29
  %92 = vmatprep.subr.mxu0 0.0
  %93 = vmatpush1.msra.mxu0 %v30
  %94 = vmatprep.subr.mxu0 0.0
  %95 = vmatpush1.msra.mxu0 %v31
  %96 = vmatprep.subr.mxu0 0.0
  %97 = vmatpush1.msra.mxu0 %v32
  %98 = vmatprep.subr.mxu0 0.0
  %99 = vmatpush1.msra.mxu0 %v33
  %100 = vmatprep.subr.mxu0 0.0
  %101 = vmatpush1.msra.mxu0 %v34
  %102 = vmatprep.subr.mxu0 0.0
  %103 = vmatpush1.msra.mxu0 %v35
  %104 = vmatprep.subr.mxu0 0.0
  %105 = vmatpush1.msra.mxu0 %v36
  %106 = vmatprep.subr.mxu0 0.0
  %107 = vmatpush1.msra.mxu0 %v37
  %108 = vmatprep.subr.mxu0 0.0
  %109 = vmatpush1.msra.mxu0 %v38
  %110 = vmatprep.subr.mxu0 0.0
  %111 = vmatpush1.msra.mxu0 %v39
  %112 = vmatprep.subr.mxu0 0.0
  %113 = vmatpush1.msra.mxu0 %v40
  %114 = vmatprep.subr.mxu0 0.0
  %115 = vmatpush1.msra.mxu0 %v41
  %116 = vmatprep.subr.mxu0 0.0
  %117 = vmatpush1.msra.mxu0 %v42
  %118 = vmatprep.subr.mxu0 0.0
  %119 = vmatpush1.msra.mxu0 %v43
  %120 = vmatprep.subr.mxu0 0.0
  %121 = vmatpush1.msra.mxu0 %v44
  %122 = vmatprep.subr.mxu0 0.0
  %123 = vmatpush1.msra.mxu0 %v45
  %124 = vmatprep.mubr.f32.mxu0 %v47
  %125 = vmatmul.mubr.f32.gmra.mrb[0].mxu0 %v46
  %v126 = vpop.f32.mrb[0].mxu0
  %v127 = vadd.f32 0.0, %v126
  %v128 = vpop.f32.mrb[0].mxu0
  %129 = vmatprep.mubr.f32.mxu0 %v49
  %130 = vmatmul.mubr.f32.gmra.mrb[0].mxu0 %v48
  %v131 = vpop.f32.mrb[0].mxu0
  %v132 = vadd.f32 0.0, %v131
  %v133 = vpop.f32.mrb[0].mxu0
  %134 = vmatprep.mubr.f32.mxu0 %v51
  %135 = vmatmul.mubr.f32.gmra.mrb[0].mxu0 %v50
  %v136 = vpop.f32.mrb[0].mxu0
  %v137 = vadd.f32 0.0, %v136
  %v138 = vpop.f32.mrb[0].mxu0
  %139 = vmatprep.mubr.f32.mxu0 %v53
  %140 = vmatmul.mubr.f32.gmra.mrb[0].mxu0 %v52
  %v141 = vpop.f32.mrb[0].mxu0
  %v142 = vadd.f32 0.0, %v141
  %v143 = vpop.f32.mrb[0].mxu0
  %144 = vmatprep.mubr.f32.mxu0 %v55
  %145 = vmatmul.mubr.f32.gmra.mrb[0].mxu0 %v54
  %v146 = vpop.f32.mrb[0].mxu0
  %v147 = vadd.f32 0.0, %v146
  %v148 = vpop.f32.mrb[0].mxu0
  %149 = vmatprep.mubr.f32.mxu0 %v57
  %150 = vmatmul.mubr.f32.gmra.mrb[0].mxu0 %v56
  %v151 = vpop.f32.mrb[0].mxu0
  %v152 = vadd.f32 0.0, %v151
  %v153 = vpop.f32.mrb[0].mxu0
  %154 = vmatprep.mubr.f32.mxu0 %v59
  %155 = vmatmul.mubr.f32.gmra.mrb[0].mxu0 %v58
  %v156 = vpop.f32.mrb[0].mxu0
  %v157 = vadd.f32 0.0, %v156
  %v158 = vpop.f32.mrb[0].mxu0
  %159 = vdwg.mxu0
  %s160 = scalar_lea.vmem %s0, 112
  %v161 = vld [vmem:[%s160] sm:$0xff]
  %v162 = vld [vmem:[%s160 + $0x8] sm:$0xff]
  %v163 = vld [vmem:[%s160 + $0x10] sm:$0xff]
  %v164 = vld [vmem:[%s160 + $0x18] sm:$0xff]
  %v165 = vld [vmem:[%s160 + $0x20] sm:$0xff]
  %v166 = vld [vmem:[%s160 + $0x28] sm:$0xff]
  %v167 = vld [vmem:[%s160 + $0x30] sm:$0xff]
  %v168 = vld [vmem:[%s160 + $0x38] sm:$0xff]
  %v169 = vld [vmem:[%s160 + $0x40] sm:$0xff]
  %v170 = vld [vmem:[%s160 + $0x48] sm:$0xff]
  %v171 = vld [vmem:[%s160 + $0x50] sm:$0xff]
  %v172 = vld [vmem:[%s160 + $0x58] sm:$0xff]
  %v173 = vld [vmem:[%s160 + $0x60] sm:$0xff]
  %v174 = vld [vmem:[%s160 + $0x68] sm:$0xff]
  %175 = vmatprep.subr.mxu0 0.0
  %176 = vmatpush1.msra.mxu0 %v14
  %177 = vmatprep.subr.mxu0 0.0
  %178 = vmatpush1.msra.mxu0 %v15
  %179 = vmatprep.subr.mxu0 0.0
  %180 = vmatpush1.msra.mxu0 %v16
  %181 = vmatprep.subr.mxu0 0.0
  %182 = vmatpush1.msra.mxu0 %v17
  %183 = vmatprep.subr.mxu0 0.0
  %184 = vmatpush1.msra.mxu0 %v18
  %185 = vmatprep.subr.mxu0 0.0
  %186 = vmatpush1.msra.mxu0 %v19
  %187 = vmatprep.subr.mxu0 0.0
  %188 = vmatpush1.msra.mxu0 %v20
  %189 = vmatprep.subr.mxu0 0.0
  %190 = vmatpush1.msra.mxu0 %v21
  %191 = vmatprep.subr.mxu0 0.0
  %192 = vmatpush1.msra.mxu0 %v22
  %193 = vmatprep.subr.mxu0 0.0
  %194 = vmatpush1.msra.mxu0 %v23
  %195 = vmatprep.subr.mxu0 0.0
  %196 = vmatpush1.msra.mxu0 %v24
  %197 = vmatprep.subr.mxu0 0.0
  %198 = vmatpush1.msra.mxu0 %v25
  %199 = vmatprep.subr.mxu0 0.0
  %200 = vmatpush1.msra.mxu0 %v26
  %201 = vmatprep.subr.mxu0 0.0
  %202 = vmatpush1.msra.mxu0 %v27
  %203 = vmatprep.subr.mxu0 0.0
  %204 = vmatpush1.msra.mxu0 %v28
  %205 = vmatprep.subr.mxu0 0.0
  %206 = vmatpush1.msra.mxu0 %v29
  %207 = vmatprep.subr.mxu0 0.0
  %208 = vmatpush1.msra.mxu0 %v30
  %209 = vmatprep.subr.mxu0 0.0
  %210 = vmatpush1.msra.mxu0 %v31
  %211 = vmatprep.subr.mxu0 0.0
  %212 = vmatpush1.msra.mxu0 %v32
  %213 = vmatprep.subr.mxu0 0.0
  %214 = vmatpush1.msra.mxu0 %v33
  %215 = vmatprep.subr.mxu0 0.0
  %216 = vmatpush1.msra.mxu0 %v34
  %217 = vmatprep.subr.mxu0 0.0
  %218 = vmatpush1.msra.mxu0 %v35
  %219 = vmatprep.subr.mxu0 0.0
  %220 = vmatpush1.msra.mxu0 %v36
  %221 = vmatprep.subr.mxu0 0.0
  %222 = vmatpush1.msra.mxu0 %v37
  %223 = vmatprep.subr.mxu0 0.0
  %224 = vmatpush1.msra.mxu0 %v38
  %225 = vmatprep.subr.mxu0 0.0
  %226 = vmatpush1.msra.mxu0 %v39
  %227 = vmatprep.subr.mxu0 0.0
  %228 = vmatpush1.msra.mxu0 %v40
  %229 = vmatprep.subr.mxu0 0.0
  %230 = vmatpush1.msra.mxu0 %v41
  %231 = vmatprep.subr.mxu0 0.0
  %232 = vmatpush1.msra.mxu0 %v42
  %233 = vmatprep.subr.mxu0 0.0
  %234 = vmatpush1.msra.mxu0 %v43
  %235 = vmatprep.subr.mxu0 0.0
  %236 = vmatpush1.msra.mxu0 %v44
  %237 = vmatprep.subr.mxu0 0.0
  %238 = vmatpush1.msra.mxu0 %v45
  %239 = vmatprep.mubr.f32.mxu0 %v162
  %240 = vmatmul.mubr.f32.gmra.mrb[0].mxu0 %v161
  %v241 = vpop.f32.mrb[0].mxu0
  %v242 = vadd.f32 0.0, %v241
  %v243 = vpop.f32.mrb[0].mxu0
  %244 = vmatprep.mubr.f32.mxu0 %v164
  %245 = vmatmul.mubr.f32.gmra.mrb[0].mxu0 %v163
  %v246 = vpop.f32.mrb[0].mxu0
  %v247 = vadd.f32 0.0, %v246
  %v248 = vpop.f32.mrb[0].mxu0
  %249 = vmatprep.mubr.f32.mxu0 %v166
  %250 = vmatmul.mubr.f32.gmra.mrb[0].mxu0 %v165
  %v251 = vpop.f32.mrb[0].mxu0
  %v252 = vadd.f32 0.0, %v251
  %v253 = vpop.f32.mrb[0].mxu0
  %254 = vmatprep.mubr.f32.mxu0 %v168
  %255 = vmatmul.mubr.f32.gmra.mrb[0].mxu0 %v167
  %v256 = vpop.f32.mrb[0].mxu0
  %v257 = vadd.f32 0.0, %v256
  %v258 = vpop.f32.mrb[0].mxu0
  %259 = vmatprep.mubr.f32.mxu0 %v170
  %260 = vmatmul.mubr.f32.gmra.mrb[0].mxu0 %v169
  %v261 = vpop.f32.mrb[0].mxu0
  %v262 = vadd.f32 0.0, %v261
  %v263 = vpop.f32.mrb[0].mxu0
  %264 = vmatprep.mubr.f32.mxu0 %v172
  %265 = vmatmul.mubr.f32.gmra.mrb[0].mxu0 %v171
  %v266 = vpop.f32.mrb[0].mxu0
  %v267 = vadd.f32 0.0, %v266
  %v268 = vpop.f32.mrb[0].mxu0
  %269 = vmatprep.mubr.f32.mxu0 %v174
  %270 = vmatmul.mubr.f32.gmra.mrb[0].mxu0 %v173
  %v271 = vpop.f32.mrb[0].mxu0
  %v272 = vadd.f32 0.0, %v271
  %v273 = vpop.f32.mrb[0].mxu0
  %274 = vdwg.mxu0
  %v275 = vmax.f32 %v127, %v242
  %v276 = vmax.f32 %v132, %v247
  %v277 = vmax.f32 %v137, %v252
  %v278 = vmax.f32 %v142, %v257
  %v279 = vmax.f32 %v147, %v262
  %v280 = vmax.f32 %v152, %v267
  %v281 = vmax.f32 %v157, %v272
  %s282 = scalar_lea.vmem %s0, 224
  %v283 = vld [vmem:[%s282] sm:$0xff]
  %v284 = vld [vmem:[%s282 + $0x8] sm:$0xff]
  %v285 = vld [vmem:[%s282 + $0x10] sm:$0xff]
  %v286 = vld [vmem:[%s282 + $0x18] sm:$0xff]
  %v287 = vld [vmem:[%s282 + $0x20] sm:$0xff]
  %v288 = vld [vmem:[%s282 + $0x28] sm:$0xff]
  %v289 = vld [vmem:[%s282 + $0x30] sm:$0xff]
  %v290 = vld [vmem:[%s282 + $0x38] sm:$0xff]
  %v291 = vld [vmem:[%s282 + $0x40] sm:$0xff]
  %v292 = vld [vmem:[%s282 + $0x48] sm:$0xff]
  %v293 = vld [vmem:[%s282 + $0x50] sm:$0xff]
  %v294 = vld [vmem:[%s282 + $0x58] sm:$0xff]
  %v295 = vld [vmem:[%s282 + $0x60] sm:$0xff]
  %v296 = vld [vmem:[%s282 + $0x68] sm:$0xff]
  %297 = vmatprep.subr.mxu0 0.0
  %298 = vmatpush1.msra.mxu0 %v14
  %299 = vmatprep.subr.mxu0 0.0
  %300 = vmatpush1.msra.mxu0 %v15
  %301 = vmatprep.subr.mxu0 0.0
  %302 = vmatpush1.msra.mxu0 %v16
  %303 = vmatprep.subr.mxu0 0.0
  %304 = vmatpush1.msra.mxu0 %v17
  %305 = vmatprep.subr.mxu0 0.0
  %306 = vmatpush1.msra.mxu0 %v18
  %307 = vmatprep.subr.mxu0 0.0
  %308 = vmatpush1.msra.mxu0 %v19
  %309 = vmatprep.subr.mxu0 0.0
  %310 = vmatpush1.msra.mxu0 %v20
  %311 = vmatprep.subr.mxu0 0.0
  %312 = vmatpush1.msra.mxu0 %v21
  %313 = vmatprep.subr.mxu0 0.0
  %314 = vmatpush1.msra.mxu0 %v22
  %315 = vmatprep.subr.mxu0 0.0
  %316 = vmatpush1.msra.mxu0 %v23
  %317 = vmatprep.subr.mxu0 0.0
  %318 = vmatpush1.msra.mxu0 %v24
  %319 = vmatprep.subr.mxu0 0.0
  %320 = vmatpush1.msra.mxu0 %v25
  %321 = vmatprep.subr.mxu0 0.0
  %322 = vmatpush1.msra.mxu0 %v26
  %323 = vmatprep.subr.mxu0 0.0
  %324 = vmatpush1.msra.mxu0 %v27
  %325 = vmatprep.subr.mxu0 0.0
  %326 = vmatpush1.msra.mxu0 %v28
  %327 = vmatprep.subr.mxu0 0.0
  %328 = vmatpush1.msra.mxu0 %v29
  %329 = vmatprep.subr.mxu0 0.0
  %330 = vmatpush1.msra.mxu0 %v30
  %331 = vmatprep.subr.mxu0 0.0
  %332 = vmatpush1.msra.mxu0 %v31
  %333 = vmatprep.subr.mxu0 0.0
  %334 = vmatpush1.msra.mxu0 %v32
  %335 = vmatprep.subr.mxu0 0.0
  %336 = vmatpush1.msra.mxu0 %v33
  %337 = vmatprep.subr.mxu0 0.0
  %338 = vmatpush1.msra.mxu0 %v34
  %339 = vmatprep.subr.mxu0 0.0
  %340 = vmatpush1.msra.mxu0 %v35
  %341 = vmatprep.subr.mxu0 0.0
  %342 = vmatpush1.msra.mxu0 %v36
  %343 = vmatprep.subr.mxu0 0.0
  %344 = vmatpush1.msra.mxu0 %v37
  %345 = vmatprep.subr.mxu0 0.0
  %346 = vmatpush1.msra.mxu0 %v38
  %347 = vmatprep.subr.mxu0 0.0
  %348 = vmatpush1.msra.mxu0 %v39
  %349 = vmatprep.subr.mxu0 0.0
  %350 = vmatpush1.msra.mxu0 %v40
  %351 = vmatprep.subr.mxu0 0.0
  %352 = vmatpush1.msra.mxu0 %v41
  %353 = vmatprep.subr.mxu0 0.0
  %354 = vmatpush1.msra.mxu0 %v42
  %355 = vmatprep.subr.mxu0 0.0
  %356 = vmatpush1.msra.mxu0 %v43
  %357 = vmatprep.subr.mxu0 0.0
  %358 = vmatpush1.msra.mxu0 %v44
  %359 = vmatprep.subr.mxu0 0.0
  %360 = vmatpush1.msra.mxu0 %v45
  %361 = vmatprep.mubr.f32.mxu0 %v284
  %362 = vmatmul.mubr.f32.gmra.mrb[0].mxu0 %v283
  %v363 = vpop.f32.mrb[0].mxu0
  %v364 = vadd.f32 0.0, %v363
  %v365 = vpop.f32.mrb[0].mxu0
  %366 = vmatprep.mubr.f32.mxu0 %v286
  %367 = vmatmul.mubr.f32.gmra.mrb[0].mxu0 %v285
  %v368 = vpop.f32.mrb[0].mxu0
  %v369 = vadd.f32 0.0, %v368
  %v370 = vpop.f32.mrb[0].mxu0
  %371 = vmatprep.mubr.f32.mxu0 %v288
  %372 = vmatmul.mubr.f32.gmra.mrb[0].mxu0 %v287
  %v373 = vpop.f32.mrb[0].mxu0
  %v374 = vadd.f32 0.0, %v373
  %v375 = vpop.f32.mrb[0].mxu0
  %376 = vmatprep.mubr.f32.mxu0 %v290
  %377 = vmatmul.mubr.f32.gmra.mrb[0].mxu0 %v289
  %v378 = vpop.f32.mrb[0].mxu0
  %v379 = vadd.f32 0.0, %v378
  %v380 = vpop.f32.mrb[0].mxu0
  %381 = vmatprep.mubr.f32.mxu0 %v292
  %382 = vmatmul.mubr.f32.gmra.mrb[0].mxu0 %v291
  %v383 = vpop.f32.mrb[0].mxu0
  %v384 = vadd.f32 0.0, %v383
  %v385 = vpop.f32.mrb[0].mxu0
  %386 = vmatprep.mubr.f32.mxu0 %v294
  %387 = vmatmul.mubr.f32.gmra.mrb[0].mxu0 %v293
  %v388 = vpop.f32.mrb[0].mxu0
  %v389 = vadd.f32 0.0, %v388
  %v390 = vpop.f32.mrb[0].mxu0
  %391 = vmatprep.mubr.f32.mxu0 %v296
  %392 = vmatmul.mubr.f32.gmra.mrb[0].mxu0 %v295
  %v393 = vpop.f32.mrb[0].mxu0
  %v394 = vadd.f32 0.0, %v393
  %v395 = vpop.f32.mrb[0].mxu0
  %396 = vdwg.mxu0
  %v397 = vmax.f32 %v275, %v364
  %v398 = vmax.f32 %v276, %v369
  %v399 = vmax.f32 %v277, %v374
  %v400 = vmax.f32 %v278, %v379
  %v401 = vmax.f32 %v279, %v384
  %v402 = vmax.f32 %v280, %v389
  %v403 = vmax.f32 %v281, %v394
  %s404 = scalar_lea.vmem %s0, 336
  %v405 = vld [vmem:[%s404] sm:$0xff]
  %v406 = vld [vmem:[%s404 + $0x8] sm:$0xff]
  %v407 = vld [vmem:[%s404 + $0x10] sm:$0xff]
  %v408 = vld [vmem:[%s404 + $0x18] sm:$0xff]
  %v409 = vld [vmem:[%s404 + $0x20] sm:$0xff]
  %v410 = vld [vmem:[%s404 + $0x28] sm:$0xff]
  %v411 = vld [vmem:[%s404 + $0x30] sm:$0xff]
  %v412 = vld [vmem:[%s404 + $0x38] sm:$0xff]
  %v413 = vld [vmem:[%s404 + $0x40] sm:$0xff]
  %v414 = vld [vmem:[%s404 + $0x48] sm:$0xff]
  %v415 = vld [vmem:[%s404 + $0x50] sm:$0xff]
  %v416 = vld [vmem:[%s404 + $0x58] sm:$0xff]
  %v417 = vld [vmem:[%s404 + $0x60] sm:$0xff]
  %v418 = vld [vmem:[%s404 + $0x68] sm:$0xff]
  %419 = vmatprep.subr.mxu0 0.0
  %420 = vmatpush1.msra.mxu0 %v14
  %421 = vmatprep.subr.mxu0 0.0
  %422 = vmatpush1.msra.mxu0 %v15
  %423 = vmatprep.subr.mxu0 0.0
  %424 = vmatpush1.msra.mxu0 %v16
  %425 = vmatprep.subr.mxu0 0.0
  %426 = vmatpush1.msra.mxu0 %v17
  %427 = vmatprep.subr.mxu0 0.0
  %428 = vmatpush1.msra.mxu0 %v18
  %429 = vmatprep.subr.mxu0 0.0
  %430 = vmatpush1.msra.mxu0 %v19
  %431 = vmatprep.subr.mxu0 0.0
  %432 = vmatpush1.msra.mxu0 %v20
  %433 = vmatprep.subr.mxu0 0.0
  %434 = vmatpush1.msra.mxu0 %v21
  %435 = vmatprep.subr.mxu0 0.0
  %436 = vmatpush1.msra.mxu0 %v22
  %437 = vmatprep.subr.mxu0 0.0
  %438 = vmatpush1.msra.mxu0 %v23
  %439 = vmatprep.subr.mxu0 0.0
  %440 = vmatpush1.msra.mxu0 %v24
  %441 = vmatprep.subr.mxu0 0.0
  %442 = vmatpush1.msra.mxu0 %v25
  %443 = vmatprep.subr.mxu0 0.0
  %444 = vmatpush1.msra.mxu0 %v26
  %445 = vmatprep.subr.mxu0 0.0
  %446 = vmatpush1.msra.mxu0 %v27
  %447 = vmatprep.subr.mxu0 0.0
  %448 = vmatpush1.msra.mxu0 %v28
  %449 = vmatprep.subr.mxu0 0.0
  %450 = vmatpush1.msra.mxu0 %v29
  %451 = vmatprep.subr.mxu0 0.0
  %452 = vmatpush1.msra.mxu0 %v30
  %453 = vmatprep.subr.mxu0 0.0
  %454 = vmatpush1.msra.mxu0 %v31
  %455 = vmatprep.subr.mxu0 0.0
  %456 = vmatpush1.msra.mxu0 %v32
  %457 = vmatprep.subr.mxu0 0.0
  %458 = vmatpush1.msra.mxu0 %v33
  %459 = vmatprep.subr.mxu0 0.0
  %460 = vmatpush1.msra.mxu0 %v34
  %461 = vmatprep.subr.mxu0 0.0
  %462 = vmatpush1.msra.mxu0 %v35
  %463 = vmatprep.subr.mxu0 0.0
  %464 = vmatpush1.msra.mxu0 %v36
  %465 = vmatprep.subr.mxu0 0.0
  %466 = vmatpush1.msra.mxu0 %v37
  %467 = vmatprep.subr.mxu0 0.0
  %468 = vmatpush1.msra.mxu0 %v38
  %469 = vmatprep.subr.mxu0 0.0
  %470 = vmatpush1.msra.mxu0 %v39
  %471 = vmatprep.subr.mxu0 0.0
  %472 = vmatpush1.msra.mxu0 %v40
  %473 = vmatprep.subr.mxu0 0.0
  %474 = vmatpush1.msra.mxu0 %v41
  %475 = vmatprep.subr.mxu0 0.0
  %476 = vmatpush1.msra.mxu0 %v42
  %477 = vmatprep.subr.mxu0 0.0
  %478 = vmatpush1.msra.mxu0 %v43
  %479 = vmatprep.subr.mxu0 0.0
  %480 = vmatpush1.msra.mxu0 %v44
  %481 = vmatprep.subr.mxu0 0.0
  %482 = vmatpush1.msra.mxu0 %v45
  %483 = vmatprep.mubr.f32.mxu0 %v406
  %484 = vmatmul.mubr.f32.gmra.mrb[0].mxu0 %v405
  %v485 = vpop.f32.mrb[0].mxu0
  %v486 = vadd.f32 0.0, %v485
  %v487 = vpop.f32.mrb[0].mxu0
  %488 = vmatprep.mubr.f32.mxu0 %v408
  %489 = vmatmul.mubr.f32.gmra.mrb[0].mxu0 %v407
  %v490 = vpop.f32.mrb[0].mxu0
  %v491 = vadd.f32 0.0, %v490
  %v492 = vpop.f32.mrb[0].mxu0
  %493 = vmatprep.mubr.f32.mxu0 %v410
  %494 = vmatmul.mubr.f32.gmra.mrb[0].mxu0 %v409
  %v495 = vpop.f32.mrb[0].mxu0
  %v496 = vadd.f32 0.0, %v495
  %v497 = vpop.f32.mrb[0].mxu0
  %498 = vmatprep.mubr.f32.mxu0 %v412
  %499 = vmatmul.mubr.f32.gmra.mrb[0].mxu0 %v411
  %v500 = vpop.f32.mrb[0].mxu0
  %v501 = vadd.f32 0.0, %v500
  %v502 = vpop.f32.mrb[0].mxu0
  %503 = vmatprep.mubr.f32.mxu0 %v414
  %504 = vmatmul.mubr.f32.gmra.mrb[0].mxu0 %v413
  %v505 = vpop.f32.mrb[0].mxu0
  %v506 = vadd.f32 0.0, %v505
  %v507 = vpop.f32.mrb[0].mxu0
  %508 = vmatprep.mubr.f32.mxu0 %v416
  %509 = vmatmul.mubr.f32.gmra.mrb[0].mxu0 %v415
  %v510 = vpop.f32.mrb[0].mxu0
  %v511 = vadd.f32 0.0, %v510
  %v512 = vpop.f32.mrb[0].mxu0
  %513 = vmatprep.mubr.f32.mxu0 %v418
  %514 = vmatmul.mubr.f32.gmra.mrb[0].mxu0 %v417
  %v515 = vpop.f32.mrb[0].mxu0
  %v516 = vadd.f32 0.0, %v515
  %v517 = vpop.f32.mrb[0].mxu0
  %518 = vdwg.mxu0
  %v519 = vmax.f32 %v397, %v486
  %v520 = vmax.f32 %v398, %v491
  %v521 = vmax.f32 %v399, %v496
  %v522 = vmax.f32 %v400, %v501
  %v523 = vmax.f32 %v401, %v506
  %v524 = vmax.f32 %v402, %v511
  %v525 = vmax.f32 %v403, %v516
  %v526 = vld [vmem:[%s2] sm:$0x1]
  %v528 = vlaneseq
  %v529 = vshrl.u32 %v528, 7
  %v530 = vsub.s32 0, %v529
  %v531 = vrot.slane %v526, %v530
  %v533 = vadd.f32 %v519, %v531
  %v534 = vadd.f32 %v520, %v531
  %v535 = vadd.f32 %v521, %v531
  %v536 = vadd.f32 %v522, %v531
  %v537 = vadd.f32 %v523, %v531
  %v538 = vadd.f32 %v524, %v531
  %v539 = vadd.f32 %v525, %v531
  %v540 = vmax.f32 %v533, 0.0
  %v541 = vmax.f32 %v534, 0.0
  %v542 = vmax.f32 %v535, 0.0
  %v543 = vmax.f32 %v536, 0.0
  %v544 = vmax.f32 %v537, 0.0
  %v545 = vmax.f32 %v538, 0.0
  %v546 = vmax.f32 %v539, 0.0
  %547 = vst [vmem:[%s3] sm:$0xff] %v540
  %548 = vst [vmem:[%s3 + $0x8] sm:$0xff] %v541
  %549 = vst [vmem:[%s3 + $0x10] sm:$0xff] %v542
  %550 = vst [vmem:[%s3 + $0x18] sm:$0xff] %v543
  %551 = vst [vmem:[%s3 + $0x20] sm:$0xff] %v544
  %552 = vst [vmem:[%s3 + $0x28] sm:$0xff] %v545
  %553 = vst [vmem:[%s3 + $0x30] sm:$0xff] %v546
  // Predicated region
  $region14: #{net_forward.4} parent=0 // pred_check
    _
  $region15: #{net_forward.4} parent=0 // pred_check_branch
    %555 = sbr.rel (0) target = $region17
  $region16: #{net_forward.4} parent=0 // pred_region
    _
  $region17: #{net_forward.4} parent=0 // pred_fallthru
    _
  // Predicated region
  $region18: #{net_forward.4} parent=0 // pred_check
    _
  $region19: #{net_forward.4} parent=0 // pred_check_branch
    %557 = sbr.rel (0) target = $region21
  $region20: #{net_forward.4} parent=0 // pred_region
    _
  $region21: #{net_forward.4} parent=0 // pred_fallthru
    _

// kernel: net_forward.5
$region0: #{net_forward.5}
  #allocation0 [shape = 'u32[]', space=smem, size = 0x4, offset = 0x4, fixed_abs, tag = 'smem constant byte address 0x4 - core index']
  #allocation1 [shape = 'u32[144,128]{1,0:T(1,128)}', space=vmem, size = 0x12000, scoped, tag = 'internal scratch']
  %s0 = inlined_call_operand.vmem [shape: f32[8,512], index: 0, kind: input, shape index: {}]
  %s1 = inlined_call_operand.vmem [shape: f32[512,128], index: 1, kind: input, shape index: {}]
  %s2 = inlined_call_operand.vmem [shape: f32[1,128], index: 2, kind: input, shape index: {}]
  %s3 = inlined_call_operand.vmem [shape: f32[128,128], index: 3, kind: input, shape index: {}]
  %s4 = inlined_call_operand.vmem [shape: f32[1,128], index: 4, kind: input, shape index: {}]
  %s5 = inlined_call_operand.vmem [shape: f32[128,128], index: 5, kind: input, shape index: {}]
  %s6 = inlined_call_operand.vmem [shape: f32[1,128], index: 6, kind: input, shape index: {}]
  %s7 = inlined_call_operand.vmem [shape: f32[8,128], index: 7, kind: output, shape index: {}]
  %s8 = sld [smem:[#allocation0]]
  $region38: #{net_forward.5} parent=0
    _
  %s10 = ssub.s32 1, %s8
  %s11 = scalar_select 0, %s10, %s8
  // Predicated region
  $region2: #{net_forward.5} parent=0 // pred_check
    _
  $region3: #{net_forward.5} parent=0 // pred_check_branch
    %13 = sbr.rel (0) target = $region5
  $region4: #{net_forward.5} parent=0 // pred_region
    _
  $region5: #{net_forward.5} parent=0 // pred_fallthru
    _
  // Predicated region
  $region6: #{net_forward.5} parent=0 // pred_check
    _
  $region7: #{net_forward.5} parent=0 // pred_check_branch
    %15 = sbr.rel (0) target = $region9
  $region8: #{net_forward.5} parent=0 // pred_region
    _
  $region9: #{net_forward.5} parent=0 // pred_fallthru
    _
  // Predicated region
  $region10: #{net_forward.5} parent=0 // pred_check
    _
  $region11: #{net_forward.5} parent=0 // pred_check_branch
    %17 = sbr.rel (0) target = $region13
  $region12: #{net_forward.5} parent=0 // pred_region
    _
  $region13: #{net_forward.5} parent=0 // pred_fallthru
    _
  // Predicated region
  $region14: #{net_forward.5} parent=0 // pred_check
    _
  $region15: #{net_forward.5} parent=0 // pred_check_branch
    %19 = sbr.rel (0) target = $region17
  $region16: #{net_forward.5} parent=0 // pred_region
    _
  $region17: #{net_forward.5} parent=0 // pred_fallthru
    _
  // Predicated region
  $region18: #{net_forward.5} parent=0 // pred_check
    _
  $region19: #{net_forward.5} parent=0 // pred_check_branch
    %21 = sbr.rel (0) target = $region21
  $region20: #{net_forward.5} parent=0 // pred_region
    _
  $region21: #{net_forward.5} parent=0 // pred_fallthru
    _
  // Predicated region
  $region22: #{net_forward.5} parent=0 // pred_check
    _
  $region23: #{net_forward.5} parent=0 // pred_check_branch
    %23 = sbr.rel (0) target = $region25
  $region24: #{net_forward.5} parent=0 // pred_region
    _
  $region25: #{net_forward.5} parent=0 // pred_fallthru
    _
  // Predicated region
  $region26: #{net_forward.5} parent=0 // pred_check
    _
  $region27: #{net_forward.5} parent=0 // pred_check_branch
    %25 = sbr.rel (0) target = $region29
  $region28: #{net_forward.5} parent=0 // pred_region
    _
  $region29: #{net_forward.5} parent=0 // pred_fallthru
    _
  %v26 = vld [vmem:[%s0] sm:$0xff]
  %v27 = vld [vmem:[%s0 + $0x8] sm:$0xff]
  %v28 = vld [vmem:[%s0 + $0x10] sm:$0xff]
  %v29 = vld [vmem:[%s0 + $0x18] sm:$0xff]
  %v30 = vld [vmem:[%s1] sm:$0xff]
  %v31 = vld [vmem:[%s1 + $0x8] sm:$0xff]
  %v32 = vld [vmem:[%s1 + $0x10] sm:$0xff]
  %v33 = vld [vmem:[%s1 + $0x18] sm:$0xff]
  %v34 = vld [vmem:[%s1 + $0x20] sm:$0xff]
  %v35 = vld [vmem:[%s1 + $0x28] sm:$0xff]
  %v36 = vld [vmem:[%s1 + $0x30] sm:$0xff]
  %v37 = vld [vmem:[%s1 + $0x38] sm:$0xff]
  %v38 = vld [vmem:[%s1 + $0x40] sm:$0xff]
  %v39 = vld [vmem:[%s1 + $0x48] sm:$0xff]
  %v40 = vld [vmem:[%s1 + $0x50] sm:$0xff]
  %v41 = vld [vmem:[%s1 + $0x58] sm:$0xff]
  %v42 = vld [vmem:[%s1 + $0x60] sm:$0xff]
  %v43 = vld [vmem:[%s1 + $0x68] sm:$0xff]
  %v44 = vld [vmem:[%s1 + $0x70] sm:$0xff]
  %v45 = vld [vmem:[%s1 + $0x78] sm:$0xff]
  %v46 = vld [vmem:[%s1 + $0x80] sm:$0xff]
  %v47 = vld [vmem:[%s1 + $0x88] sm:$0xff]
  %v48 = vld [vmem:[%s1 + $0x90] sm:$0xff]
  %v49 = vld [vmem:[%s1 + $0x98] sm:$0xff]
  %v50 = vld [vmem:[%s1 + $0xa0] sm:$0xff]
  %v51 = vld [vmem:[%s1 + $0xa8] sm:$0xff]
  %v52 = vld [vmem:[%s1 + $0xb0] sm:$0xff]
  %v53 = vld [vmem:[%s1 + $0xb8] sm:$0xff]
  %v54 = vld [vmem:[%s1 + $0xc0] sm:$0xff]
  %v55 = vld [vmem:[%s1 + $0xc8] sm:$0xff]
  %v56 = vld [vmem:[%s1 + $0xd0] sm:$0xff]
  %v57 = vld [vmem:[%s1 + $0xd8] sm:$0xff]
  %v58 = vld [vmem:[%s1 + $0xe0] sm:$0xff]
  %v59 = vld [vmem:[%s1 + $0xe8] sm:$0xff]
  %v60 = vld [vmem:[%s1 + $0xf0] sm:$0xff]
  %v61 = vld [vmem:[%s1 + $0xf8] sm:$0xff]
  %v62 = vld [vmem:[%s1 + $0x100] sm:$0xff]
  %v63 = vld [vmem:[%s1 + $0x108] sm:$0xff]
  %v64 = vld [vmem:[%s1 + $0x110] sm:$0xff]
  %v65 = vld [vmem:[%s1 + $0x118] sm:$0xff]
  %v66 = vld [vmem:[%s1 + $0x120] sm:$0xff]
  %v67 = vld [vmem:[%s1 + $0x128] sm:$0xff]
  %v68 = vld [vmem:[%s1 + $0x130] sm:$0xff]
  %v69 = vld [vmem:[%s1 + $0x138] sm:$0xff]
  %v70 = vld [vmem:[%s1 + $0x140] sm:$0xff]
  %v71 = vld [vmem:[%s1 + $0x148] sm:$0xff]
  %v72 = vld [vmem:[%s1 + $0x150] sm:$0xff]
  %v73 = vld [vmem:[%s1 + $0x158] sm:$0xff]
  %v74 = vld [vmem:[%s1 + $0x160] sm:$0xff]
  %v75 = vld [vmem:[%s1 + $0x168] sm:$0xff]
  %v76 = vld [vmem:[%s1 + $0x170] sm:$0xff]
  %v77 = vld [vmem:[%s1 + $0x178] sm:$0xff]
  %v78 = vld [vmem:[%s1 + $0x180] sm:$0xff]
  %v79 = vld [vmem:[%s1 + $0x188] sm:$0xff]
  %v80 = vld [vmem:[%s1 + $0x190] sm:$0xff]
  %v81 = vld [vmem:[%s1 + $0x198] sm:$0xff]
  %v82 = vld [vmem:[%s1 + $0x1a0] sm:$0xff]
  %v83 = vld [vmem:[%s1 + $0x1a8] sm:$0xff]
  %v84 = vld [vmem:[%s1 + $0x1b0] sm:$0xff]
  %v85 = vld [vmem:[%s1 + $0x1b8] sm:$0xff]
  %v86 = vld [vmem:[%s1 + $0x1c0] sm:$0xff]
  %v87 = vld [vmem:[%s1 + $0x1c8] sm:$0xff]
  %v88 = vld [vmem:[%s1 + $0x1d0] sm:$0xff]
  %v89 = vld [vmem:[%s1 + $0x1d8] sm:$0xff]
  %v90 = vld [vmem:[%s1 + $0x1e0] sm:$0xff]
  %v91 = vld [vmem:[%s1 + $0x1e8] sm:$0xff]
  %v92 = vld [vmem:[%s1 + $0x1f0] sm:$0xff]
  %v93 = vld [vmem:[%s1 + $0x1f8] sm:$0xff]
  %v94 = vld [vmem:[%s2] sm:$0x1]
  %v96 = vlaneseq
  %v97 = vshrl.u32 %v96, 7
  %v98 = vsub.s32 0, %v97
  %v99 = vrot.slane %v94, %v98
  %101 = vmatprep.subr.mxu0 0.0
  %102 = vmatpush1.msra.mxu0 %v30
  %103 = vmatprep.subr.mxu0 0.0
  %104 = vmatpush1.msra.mxu0 %v31
  %105 = vmatprep.subr.mxu0 0.0
  %106 = vmatpush1.msra.mxu0 %v32
  %107 = vmatprep.subr.mxu0 0.0
  %108 = vmatpush1.msra.mxu0 %v33
  %109 = vmatprep.subr.mxu0 0.0
  %110 = vmatpush1.msra.mxu0 %v34
  %111 = vmatprep.subr.mxu0 0.0
  %112 = vmatpush1.msra.mxu0 %v35
  %113 = vmatprep.subr.mxu0 0.0
  %114 = vmatpush1.msra.mxu0 %v36
  %115 = vmatprep.subr.mxu0 0.0
  %116 = vmatpush1.msra.mxu0 %v37
  %117 = vmatprep.subr.mxu0 0.0
  %118 = vmatpush1.msra.mxu0 %v38
  %119 = vmatprep.subr.mxu0 0.0
  %120 = vmatpush1.msra.mxu0 %v39
  %121 = vmatprep.subr.mxu0 0.0
  %122 = vmatpush1.msra.mxu0 %v40
  %123 = vmatprep.subr.mxu0 0.0
  %124 = vmatpush1.msra.mxu0 %v41
  %125 = vmatprep.subr.mxu0 0.0
  %126 = vmatpush1.msra.mxu0 %v42
  %127 = vmatprep.subr.mxu0 0.0
  %128 = vmatpush1.msra.mxu0 %v43
  %129 = vmatprep.subr.mxu0 0.0
  %130 = vmatpush1.msra.mxu0 %v44
  %131 = vmatprep.subr.mxu0 0.0
  %132 = vmatpush1.msra.mxu0 %v45
  %133 = vmatprep.subr.mxu0 0.0
  %134 = vmatpush1.msra.mxu0 %v46
  %135 = vmatprep.subr.mxu0 0.0
  %136 = vmatpush1.msra.mxu0 %v47
  %137 = vmatprep.subr.mxu0 0.0
  %138 = vmatpush1.msra.mxu0 %v48
  %139 = vmatprep.subr.mxu0 0.0
  %140 = vmatpush1.msra.mxu0 %v49
  %141 = vmatprep.subr.mxu0 0.0
  %142 = vmatpush1.msra.mxu0 %v50
  %143 = vmatprep.subr.mxu0 0.0
  %144 = vmatpush1.msra.mxu0 %v51
  %145 = vmatprep.subr.mxu0 0.0
  %146 = vmatpush1.msra.mxu0 %v52
  %147 = vmatprep.subr.mxu0 0.0
  %148 = vmatpush1.msra.mxu0 %v53
  %149 = vmatprep.subr.mxu0 0.0
  %150 = vmatpush1.msra.mxu0 %v54
  %151 = vmatprep.subr.mxu0 0.0
  %152 = vmatpush1.msra.mxu0 %v55
  %153 = vmatprep.subr.mxu0 0.0
  %154 = vmatpush1.msra.mxu0 %v56
  %155 = vmatprep.subr.mxu0 0.0
  %156 = vmatpush1.msra.mxu0 %v57
  %157 = vmatprep.subr.mxu0 0.0
  %158 = vmatpush1.msra.mxu0 %v58
  %159 = vmatprep.subr.mxu0 0.0
  %160 = vmatpush1.msra.mxu0 %v59
  %161 = vmatprep.subr.mxu0 0.0
  %162 = vmatpush1.msra.mxu0 %v60
  %163 = vmatprep.subr.mxu0 0.0
  %164 = vmatpush1.msra.mxu0 %v61
  %165 = vmatprep.mubr.f32.mxu0 %v27
  %166 = vmatmul.mubr.f32.gmra.mrb[0].mxu0 %v26
  %v167 = vpop.f32.mrb[0].mxu0
  %v168 = vadd.f32 %v99, %v167
  %v169 = vpop.f32.mrb[0].mxu0
  %170 = vdwg.mxu0
  %171 = vmatprep.subr.mxu0 0.0
  %172 = vmatpush1.msra.mxu0 %v62
  %173 = vmatprep.subr.mxu0 0.0
  %174 = vmatpush1.msra.mxu0 %v63
  %175 = vmatprep.subr.mxu0 0.0
  %176 = vmatpush1.msra.mxu0 %v64
  %177 = vmatprep.subr.mxu0 0.0
  %178 = vmatpush1.msra.mxu0 %v65
  %179 = vmatprep.subr.mxu0 0.0
  %180 = vmatpush1.msra.mxu0 %v66
  %181 = vmatprep.subr.mxu0 0.0
  %182 = vmatpush1.msra.mxu0 %v67
  %183 = vmatprep.subr.mxu0 0.0
  %184 = vmatpush1.msra.mxu0 %v68
  %185 = vmatprep.subr.mxu0 0.0
  %186 = vmatpush1.msra.mxu0 %v69
  %187 = vmatprep.subr.mxu0 0.0
  %188 = vmatpush1.msra.mxu0 %v70
  %189 = vmatprep.subr.mxu0 0.0
  %190 = vmatpush1.msra.mxu0 %v71
  %191 = vmatprep.subr.mxu0 0.0
  %192 = vmatpush1.msra.mxu0 %v72
  %193 = vmatprep.subr.mxu0 0.0
  %194 = vmatpush1.msra.mxu0 %v73
  %195 = vmatprep.subr.mxu0 0.0
  %196 = vmatpush1.msra.mxu0 %v74
  %197 = vmatprep.subr.mxu0 0.0
  %198 = vmatpush1.msra.mxu0 %v75
  %199 = vmatprep.subr.mxu0 0.0
  %200 = vmatpush1.msra.mxu0 %v76
  %201 = vmatprep.subr.mxu0 0.0
  %202 = vmatpush1.msra.mxu0 %v77
  %203 = vmatprep.subr.mxu0 0.0
  %204 = vmatpush1.msra.mxu0 %v78
  %205 = vmatprep.subr.mxu0 0.0
  %206 = vmatpush1.msra.mxu0 %v79
  %207 = vmatprep.subr.mxu0 0.0
  %208 = vmatpush1.msra.mxu0 %v80
  %209 = vmatprep.subr.mxu0 0.0
  %210 = vmatpush1.msra.mxu0 %v81
  %211 = vmatprep.subr.mxu0 0.0
  %212 = vmatpush1.msra.mxu0 %v82
  %213 = vmatprep.subr.mxu0 0.0
  %214 = vmatpush1.msra.mxu0 %v83
  %215 = vmatprep.subr.mxu0 0.0
  %216 = vmatpush1.msra.mxu0 %v84
  %217 = vmatprep.subr.mxu0 0.0
  %218 = vmatpush1.msra.mxu0 %v85
  %219 = vmatprep.subr.mxu0 0.0
  %220 = vmatpush1.msra.mxu0 %v86
  %221 = vmatprep.subr.mxu0 0.0
  %222 = vmatpush1.msra.mxu0 %v87
  %223 = vmatprep.subr.mxu0 0.0
  %224 = vmatpush1.msra.mxu0 %v88
  %225 = vmatprep.subr.mxu0 0.0
  %226 = vmatpush1.msra.mxu0 %v89
  %227 = vmatprep.subr.mxu0 0.0
  %228 = vmatpush1.msra.mxu0 %v90
  %229 = vmatprep.subr.mxu0 0.0
  %230 = vmatpush1.msra.mxu0 %v91
  %231 = vmatprep.subr.mxu0 0.0
  %232 = vmatpush1.msra.mxu0 %v92
  %233 = vmatprep.subr.mxu0 0.0
  %234 = vmatpush1.msra.mxu0 %v93
  %235 = vmatprep.mubr.f32.mxu0 %v29
  %236 = vmatmul.mubr.f32.gmra.mrb[0].mxu0 %v28
  %v237 = vpop.f32.mrb[0].mxu0
  %v238 = vadd.f32 %v168, %v237
  %v239 = vpop.f32.mrb[0].mxu0
  %240 = vdwg.mxu0
  %v241 = vmax.f32 %v238, 0.0
  %v242 = vld [vmem:[%s3] sm:$0xff]
  %v243 = vld [vmem:[%s3 + $0x8] sm:$0xff]
  %v244 = vld [vmem:[%s3 + $0x10] sm:$0xff]
  %v245 = vld [vmem:[%s3 + $0x18] sm:$0xff]
  %v246 = vld [vmem:[%s3 + $0x20] sm:$0xff]
  %v247 = vld [vmem:[%s3 + $0x28] sm:$0xff]
  %v248 = vld [vmem:[%s3 + $0x30] sm:$0xff]
  %v249 = vld [vmem:[%s3 + $0x38] sm:$0xff]
  %v250 = vld [vmem:[%s3 + $0x40] sm:$0xff]
  %v251 = vld [vmem:[%s3 + $0x48] sm:$0xff]
  %v252 = vld [vmem:[%s3 + $0x50] sm:$0xff]
  %v253 = vld [vmem:[%s3 + $0x58] sm:$0xff]
  %v254 = vld [vmem:[%s3 + $0x60] sm:$0xff]
  %v255 = vld [vmem:[%s3 + $0x68] sm:$0xff]
  %v256 = vld [vmem:[%s3 + $0x70] sm:$0xff]
  %v257 = vld [vmem:[%s3 + $0x78] sm:$0xff]
  %v258 = vld [vmem:[%s4] sm:$0x1]
  %v260 = vlaneseq
  %v261 = vshrl.u32 %v260, 7
  %v262 = vsub.s32 0, %v261
  %v263 = vrot.slane %v258, %v262
  %265 = vmatprep.subr.mxu0 0.0
  %266 = vmatpush1.msra.mxu0 %v242
  %267 = vmatprep.subr.mxu0 0.0
  %268 = vmatpush1.msra.mxu0 %v243
  %269 = vmatprep.subr.mxu0 0.0
  %270 = vmatpush1.msra.mxu0 %v244
  %271 = vmatprep.subr.mxu0 0.0
  %272 = vmatpush1.msra.mxu0 %v245
  %273 = vmatprep.subr.mxu0 0.0
  %274 = vmatpush1.msra.mxu0 %v246
  %275 = vmatprep.subr.mxu0 0.0
  %276 = vmatpush1.msra.mxu0 %v247
  %277 = vmatprep.subr.mxu0 0.0
  %278 = vmatpush1.msra.mxu0 %v248
  %279 = vmatprep.subr.mxu0 0.0
  %280 = vmatpush1.msra.mxu0 %v249
  %281 = vmatprep.subr.mxu0 0.0
  %282 = vmatpush1.msra.mxu0 %v250
  %283 = vmatprep.subr.mxu0 0.0
  %284 = vmatpush1.msra.mxu0 %v251
  %285 = vmatprep.subr.mxu0 0.0
  %286 = vmatpush1.msra.mxu0 %v252
  %287 = vmatprep.subr.mxu0 0.0
  %288 = vmatpush1.msra.mxu0 %v253
  %289 = vmatprep.subr.mxu0 0.0
  %290 = vmatpush1.msra.mxu0 %v254
  %291 = vmatprep.subr.mxu0 0.0
  %292 = vmatpush1.msra.mxu0 %v255
  %293 = vmatprep.subr.mxu0 0.0
  %294 = vmatpush1.msra.mxu0 %v256
  %295 = vmatprep.subr.mxu0 0.0
  %296 = vmatpush1.msra.mxu0 %v257
  %297 = vmatprep.subr.mxu0 0.0
  %298 = vmatpush1.msra.mxu0 0.0
  %299 = vmatprep.subr.mxu0 0.0
  %300 = vmatpush1.msra.mxu0 0.0
  %301 = vmatprep.subr.mxu0 0.0
  %302 = vmatpush1.msra.mxu0 0.0
  %303 = vmatprep.subr.mxu0 0.0
  %304 = vmatpush1.msra.mxu0 0.0
  %305 = vmatprep.subr.mxu0 0.0
  %306 = vmatpush1.msra.mxu0 0.0
  %307 = vmatprep.subr.mxu0 0.0
  %308 = vmatpush1.msra.mxu0 0.0
  %309 = vmatprep.subr.mxu0 0.0
  %310 = vmatpush1.msra.mxu0 0.0
  %311 = vmatprep.subr.mxu0 0.0
  %312 = vmatpush1.msra.mxu0 0.0
  %313 = vmatprep.subr.mxu0 0.0
  %314 = vmatpush1.msra.mxu0 0.0
  %315 = vmatprep.subr.mxu0 0.0
  %316 = vmatpush1.msra.mxu0 0.0
  %317 = vmatprep.subr.mxu0 0.0
  %318 = vmatpush1.msra.mxu0 0.0
  %319 = vmatprep.subr.mxu0 0.0
  %320 = vmatpush1.msra.mxu0 0.0
  %321 = vmatprep.subr.mxu0 0.0
  %322 = vmatpush1.msra.mxu0 0.0
  %323 = vmatprep.subr.mxu0 0.0
  %324 = vmatpush1.msra.mxu0 0.0
  %325 = vmatprep.subr.mxu0 0.0
  %326 = vmatpush1.msra.mxu0 0.0
  %327 = vmatprep.subr.mxu0 0.0
  %328 = vmatpush1.msra.mxu0 0.0
  %329 = vmatprep.mubr.f32.mxu0 0.0
  %330 = vmatmul.mubr.f32.gmra.mrb[0].mxu0 %v241
  %v331 = vpop.f32.mrb[0].mxu0
  %v332 = vadd.f32 %v263, %v331
  %v333 = vpop.f32.mrb[0].mxu0
  %334 = vdwg.mxu0
  %v335 = vmax.f32 %v332, 0.0
  %v336 = vld [vmem:[%s5] sm:$0xff]
  %v337 = vld [vmem:[%s5 + $0x8] sm:$0xff]
  %v338 = vld [vmem:[%s5 + $0x10] sm:$0xff]
  %v339 = vld [vmem:[%s5 + $0x18] sm:$0xff]
  %v340 = vld [vmem:[%s5 + $0x20] sm:$0xff]
  %v341 = vld [vmem:[%s5 + $0x28] sm:$0xff]
  %v342 = vld [vmem:[%s5 + $0x30] sm:$0xff]
  %v343 = vld [vmem:[%s5 + $0x38] sm:$0xff]
  %v344 = vld [vmem:[%s5 + $0x40] sm:$0xff]
  %v345 = vld [vmem:[%s5 + $0x48] sm:$0xff]
  %v346 = vld [vmem:[%s5 + $0x50] sm:$0xff]
  %v347 = vld [vmem:[%s5 + $0x58] sm:$0xff]
  %v348 = vld [vmem:[%s5 + $0x60] sm:$0xff]
  %v349 = vld [vmem:[%s5 + $0x68] sm:$0xff]
  %v350 = vld [vmem:[%s5 + $0x70] sm:$0xff]
  %v351 = vld [vmem:[%s5 + $0x78] sm:$0xff]
  %v352 = vld [vmem:[%s6] sm:$0x1]
  %v354 = vlaneseq
  %v355 = vshrl.u32 %v354, 7
  %v356 = vsub.s32 0, %v355
  %v357 = vrot.slane %v352, %v356
  %359 = vmatprep.subr.mxu0 0.0
  %360 = vmatpush1.msra.mxu0 %v336
  %361 = vmatprep.subr.mxu0 0.0
  %362 = vmatpush1.msra.mxu0 %v337
  %363 = vmatprep.subr.mxu0 0.0
  %364 = vmatpush1.msra.mxu0 %v338
  %365 = vmatprep.subr.mxu0 0.0
  %366 = vmatpush1.msra.mxu0 %v339
  %367 = vmatprep.subr.mxu0 0.0
  %368 = vmatpush1.msra.mxu0 %v340
  %369 = vmatprep.subr.mxu0 0.0
  %370 = vmatpush1.msra.mxu0 %v341
  %371 = vmatprep.subr.mxu0 0.0
  %372 = vmatpush1.msra.mxu0 %v342
  %373 = vmatprep.subr.mxu0 0.0
  %374 = vmatpush1.msra.mxu0 %v343
  %375 = vmatprep.subr.mxu0 0.0
  %376 = vmatpush1.msra.mxu0 %v344
  %377 = vmatprep.subr.mxu0 0.0
  %378 = vmatpush1.msra.mxu0 %v345
  %379 = vmatprep.subr.mxu0 0.0
  %380 = vmatpush1.msra.mxu0 %v346
  %381 = vmatprep.subr.mxu0 0.0
  %382 = vmatpush1.msra.mxu0 %v347
  %383 = vmatprep.subr.mxu0 0.0
  %384 = vmatpush1.msra.mxu0 %v348
  %385 = vmatprep.subr.mxu0 0.0
  %386 = vmatpush1.msra.mxu0 %v349
  %387 = vmatprep.subr.mxu0 0.0
  %388 = vmatpush1.msra.mxu0 %v350
  %389 = vmatprep.subr.mxu0 0.0
  %390 = vmatpush1.msra.mxu0 %v351
  %391 = vmatprep.subr.mxu0 0.0
  %392 = vmatpush1.msra.mxu0 0.0
  %393 = vmatprep.subr.mxu0 0.0
  %394 = vmatpush1.msra.mxu0 0.0
  %395 = vmatprep.subr.mxu0 0.0
  %396 = vmatpush1.msra.mxu0 0.0
  %397 = vmatprep.subr.mxu0 0.0
  %398 = vmatpush1.msra.mxu0 0.0
  %399 = vmatprep.subr.mxu0 0.0
  %400 = vmatpush1.msra.mxu0 0.0
  %401 = vmatprep.subr.mxu0 0.0
  %402 = vmatpush1.msra.mxu0 0.0
  %403 = vmatprep.subr.mxu0 0.0
  %404 = vmatpush1.msra.mxu0 0.0
  %405 = vmatprep.subr.mxu0 0.0
  %406 = vmatpush1.msra.mxu0 0.0
  %407 = vmatprep.subr.mxu0 0.0
  %408 = vmatpush1.msra.mxu0 0.0
  %409 = vmatprep.subr.mxu0 0.0
  %410 = vmatpush1.msra.mxu0 0.0
  %411 = vmatprep.subr.mxu0 0.0
  %412 = vmatpush1.msra.mxu0 0.0
  %413 = vmatprep.subr.mxu0 0.0
  %414 = vmatpush1.msra.mxu0 0.0
  %415 = vmatprep.subr.mxu0 0.0
  %416 = vmatpush1.msra.mxu0 0.0
  %417 = vmatprep.subr.mxu0 0.0
  %418 = vmatpush1.msra.mxu0 0.0
  %419 = vmatprep.subr.mxu0 0.0
  %420 = vmatpush1.msra.mxu0 0.0
  %421 = vmatprep.subr.mxu0 0.0
  %422 = vmatpush1.msra.mxu0 0.0
  %423 = vmatprep.mubr.f32.mxu0 0.0
  %424 = vmatmul.mubr.f32.gmra.mrb[0].mxu0 %v335
  %v425 = vpop.f32.mrb[0].mxu0
  %v426 = vadd.f32 %v357, %v425
  %v427 = vpop.f32.mrb[0].mxu0
  %428 = vdwg.mxu0
  %429 = vst [vmem:[%s7] sm:$0xff] %v426
  // Predicated region
  $region30: #{net_forward.5} parent=0 // pred_check
    _
  $region31: #{net_forward.5} parent=0 // pred_check_branch
    %431 = sbr.rel (0) target = $region33
  $region32: #{net_forward.5} parent=0 // pred_region
    _
  $region33: #{net_forward.5} parent=0 // pred_fallthru
    _
  // Predicated region
  $region34: #{net_forward.5} parent=0 // pred_check
    _
  $region35: #{net_forward.5} parent=0 // pred_check_branch
    %433 = sbr.rel (0) target = $region37
  $region36: #{net_forward.5} parent=0 // pred_region
    _
  $region37: #{net_forward.5} parent=0 // pred_fallthru
    _

</llo_original>
